<compile_context>
chip_gen: v6e
topology: v6e:2x2x1
jax: 0.10.0
libtpu: 0.0.40
codegen_flags: <defaults>
</compile_context>

<pallas_src>
import jax
import jax.numpy as jnp
from jax.experimental import pallas as pl
from jax.experimental.pallas import tpu as pltpu


# ------------------------------------------------------------------ kernel --

def _lenet_kernel(pat_ref, w1_ref, b1_ref, w2_ref, b2_ref,
                  fc1w_ref, fc1b_ref, fc2w_ref, fc2b_ref,
                  out_ref, p1w_ref, p2h_ref, flat_ref):
    LW = p1w_ref.shape[1]                 # 128: lane-padded (j, conv1-channel) block
    PH2, OW2, OC2 = p2h_ref.shape         # 4, 8, 50
    OH2 = 2 * PH2                         # 8
    PW2 = OW2 // 2                        # 4
    K = w2_ref.shape[0] // LW             # 5 (conv2 kernel rows)
    n_par = pat_ref.shape[1]              # 4 pooling parities

    # ---- conv1 + ReLU + maxpool1: 2x2 pool folded as a max over 4 parity
    #      matmuls (max/ReLU commute, bias is parity-invariant). ---------------
    w1 = w1_ref[...]
    m = jnp.dot(pat_ref[0, 0], w1, preferred_element_type=jnp.float32)
    for q in range(1, n_par):
        m = jnp.maximum(m, jnp.dot(pat_ref[0, q], w1,
                                   preferred_element_type=jnp.float32))
    # rows = (h', w2) of the pooled map; lanes = (j*20 + c), zero-padded to 128.
    p1w_ref[...] = jnp.maximum(m + b1_ref[...], 0.0)          # (PH1*OW2, LW)

    # ---- conv2: ONE MXU matmul.  LHS = five 8-row-aligned slices (tap row i)
    #      lane-concatenated at 128-lane boundaries -> zero relayout. ----------
    lhs2 = jnp.concatenate(
        [p1w_ref[OW2 * i: OW2 * i + OH2 * OW2] for i in range(K)], axis=-1)
    acc2 = jnp.dot(lhs2, w2_ref[...],
                   preferred_element_type=jnp.float32)        # (OH2*OW2, OC2)

    # ---- maxpool2 H-pass (+ bias + ReLU) --------------------------------------
    acc2r = acc2.reshape(PH2, 2, OW2, OC2)
    p2h_ref[...] = jnp.maximum(
        jnp.maximum(acc2r[:, 0], acc2r[:, 1]) + b2_ref[...], 0.0)

    # ---- maxpool2 W-pass folded into the lane-aligned fc1 activation scatter -
    flat_ref[...] = jnp.zeros(flat_ref.shape, flat_ref.dtype)
    for t in range(PH2 * PW2):
        ph2, pw2 = divmod(t, PW2)
        v = jnp.maximum(p2h_ref[ph2, 2 * pw2: 2 * pw2 + 1, :],
                        p2h_ref[ph2, 2 * pw2 + 1: 2 * pw2 + 2, :])   # (1, OC2)
        flat_ref[:, t * LW: t * LW + OC2] = v.astype(flat_ref.dtype)

    # ---- fc1 + ReLU: one bf16 MXU matmul over the padded K = 16*128 slab -----
    h1 = jnp.maximum(
        jnp.dot(flat_ref[...], fc1w_ref[...],
                preferred_element_type=jnp.float32) + fc1b_ref[...], 0.0)

    # ---- fc2 + log-softmax (single matmul, EUP epilogue) ----------------------
    logits = jnp.dot(h1, fc2w_ref[...],
                     preferred_element_type=jnp.float32) + fc2b_ref[...]
    mx = jnp.max(logits, axis=-1, keepdims=True)
    s = logits - mx
    lse = jnp.log(jnp.sum(jnp.exp(s), axis=-1, keepdims=True))
    out_ref[...] = (s - lse).reshape(out_ref.shape)


# ----------------------------------------------------------------- wrapper --

def lenet_forward(x_nchw, prep):
    """Fused LeNet forward. x_nchw: (B, C, 28, 28) f32 -> (B, classes) f32."""
    B, C, H, W = x_nchw.shape
    K = 5                                  # both conv kernels are 5x5
    KW = 3 * K - 2                         # 13: wide-patch width (5 lane-stacked shifts)
    LW = prep["w1"].shape[1]               # 128
    OC2 = prep["w2"].shape[1]
    classes = prep["fc2w"].shape[1]
    OH1, OW1 = H - K + 1, W - K + 1        # 24, 24
    PH1, PW1 = OH1 // 2, OW1 // 2          # 12, 12
    OH2, OW2 = PH1 - K + 1, PW1 - K + 1    # 8, 8
    PH2, PW2 = OH2 // 2, OW2 // 2          # 4, 4
    assert OH1 % 2 == 0 and OW1 % 2 == 0 and OH2 % 2 == 0 and OW2 % 2 == 0
    assert prep["w1"].shape[0] == K * KW * C
    assert prep["w2"].shape[0] == K * LW
    assert prep["fc1w"].shape[0] == PH2 * PW2 * LW

    x = jnp.transpose(x_nchw, (0, 2, 3, 1)).astype(jnp.float32)     # NHWC

    # Wide im2col for conv1 (+ pool1 parity blocks), built once outside the
    # kernel: pat[b, (hp,wp), (h', w2), (kh, dj, c)] = x[b, 2h'+hp+kh, 2w2+wp+dj, c]
    blocks = []
    for hp in range(2):
        for wp in range(2):
            cols = []
            for kh in range(K):
                for dj in range(KW):
                    cols.append(x[:, hp + kh: hp + kh + 2 * PH1: 2,
                                     wp + dj: wp + dj + 2 * OW2: 2, :])
            blk = jnp.stack(cols, axis=3)                  # (B, PH1, OW2, K*KW, C)
            blocks.append(blk.reshape(B, PH1 * OW2, K * KW * C))
    pat = jnp.stack(blocks, axis=1)                        # (B, 4, PH1*OW2, K*KW*C)

    args = (pat, prep["w1"], prep["b1"], prep["w2"], prep["b2"],
            prep["fc1w"], prep["fc1b"], prep["fc2w"], prep["fc2b"])

    def _const_spec(shape):
        n = len(shape)
        return pl.BlockSpec(shape, lambda b, _n=n: (0,) * _n)

    in_specs = [pl.BlockSpec((1,) + pat.shape[1:], lambda b: (b, 0, 0, 0))]
    in_specs += [_const_spec(a.shape) for a in args[1:]]

    out = pl.pallas_call(
        _lenet_kernel,
        out_shape=jax.ShapeDtypeStruct((B, 1, classes), jnp.float32),
        grid=(B,),
        in_specs=in_specs,
        out_specs=pl.BlockSpec((1, 1, classes), lambda b: (b, 0, 0)),
        scratch_shapes=[
            pltpu.VMEM((PH1 * OW2, LW), jnp.float32),        # pooled conv1, j-stacked lanes
            pltpu.VMEM((PH2, OW2, OC2), jnp.float32),        # conv2 act, H-pooled
            pltpu.VMEM((1, PH2 * PW2 * LW), jnp.bfloat16),   # lane-aligned fc1 activation
        ],
        compiler_params=pltpu.CompilerParams(
            dimension_semantics=("parallel",),               # v7x: one image per core
            vmem_limit_bytes=32 * 1024 * 1024,
        ),
    )(*args)
    return out[:, 0, :]


# ------------------------------------------------------------------ params --

def init_params(key, num_channels=1, classes=10):
    """Deterministic PyTorch-style uniform(-1/sqrt(fan_in), 1/sqrt(fan_in))."""
    ks = jax.random.split(key, 8)

    def u(k, shape, fan_in):
        bound = 1.0 / float(fan_in) ** 0.5
        return jax.random.uniform(k, shape, jnp.float32, -bound, bound)

    return {
        "conv1_w": u(ks[0], (20, num_channels, 5, 5), num_channels * 25),
        "conv1_b": u(ks[1], (20,), num_channels * 25),
        "conv2_w": u(ks[2], (50, 20, 5, 5), 20 * 25),
        "conv2_b": u(ks[3], (50,), 20 * 25),
        "fc1_w":   u(ks[4], (500, 800), 800),
        "fc1_b":   u(ks[5], (500,), 800),
        "fc2_w":   u(ks[6], (classes, 500), 500),
        "fc2_b":   u(ks[7], (classes,), 500),
    }


def prepare_params(params):
    """One-time weight layout prep (PyTorch layouts -> kernel layouts)."""
    conv1_w = params["conv1_w"].astype(jnp.float32)   # (OC1, C, 5, 5)
    conv2_w = params["conv2_w"].astype(jnp.float32)   # (OC2, OC1, 5, 5)
    fc1_w = params["fc1_w"].astype(jnp.float32)       # (500, 800)
    fc2_w = params["fc2_w"].astype(jnp.float32)       # (classes, 500)
    OC1, C, K, _ = conv1_w.shape
    OC2 = conv2_w.shape[0]
    assert conv2_w.shape[2] == K and conv2_w.shape[3] == K
    N_HID, KFLAT = fc1_w.shape
    classes = fc2_w.shape[0]
    J = K                                   # lane-stacked horizontal shifts (= conv2 kw)
    KW = K + 2 * (J - 1)                    # 13: wide patch width
    LW = 128                                # lane-padded width of one j-stacked block
    assert J * OC1 <= LW
    S = KFLAT // OC2                        # 16 pooled spatial positions
    assert S * OC2 == KFLAT

    # conv1 "wide" weight: rows (kh, dj, ic), cols (j*OC1 + oc) padded to 128.
    # One width-13 patch row produces conv1 outputs for 5 horizontally-shifted
    # pixels, stacked on lanes (exactly the conv2 im2col layout).
    w1t = jnp.transpose(conv1_w, (2, 3, 1, 0))        # (kh, kw, ic, oc)
    w1w = jnp.zeros((K, KW, C, J * OC1), jnp.float32)
    for j in range(J):
        w1w = w1w.at[:, 2 * j: 2 * j + K, :, j * OC1:(j + 1) * OC1].set(w1t)
    w1w = jnp.pad(w1w.reshape(K * KW * C, J * OC1), ((0, 0), (0, LW - J * OC1)))
    b1w = jnp.pad(jnp.tile(params["conv1_b"].astype(jnp.float32), J),
                  (0, LW - J * OC1)).reshape(1, LW)

    # conv2 weight: rows (i, j*OC1 + ic) padded per-i to LW lanes, cols oc2.
    w2t = jnp.transpose(conv2_w, (2, 3, 1, 0)).reshape(K, K * OC1, OC2)
    w2p = jnp.pad(w2t, ((0, 0), (0, LW - K * OC1), (0, 0))).reshape(K * LW, OC2)
    b2p = params["conv2_b"].astype(jnp.float32).reshape(1, OC2)

    # fc1: absorb nn.Flatten's NCHW ordering; pad each (ph,pw) block to LW rows
    # so the in-kernel activation scatter is 128-lane aligned.
    fw = jnp.transpose(fc1_w.reshape(N_HID, OC2, S), (2, 1, 0))   # (S, OC2, N_HID)
    fc1p = jnp.zeros((S, LW, N_HID), jnp.float32).at[:, :OC2, :].set(fw)
    fc1p = fc1p.reshape(S * LW, N_HID).astype(jnp.bfloat16)

    return {
        "w1": w1w, "b1": b1w,
        "w2": w2p, "b2": b2p,
        "fc1w": fc1p,
        "fc1b": params["fc1_b"].astype(jnp.float32).reshape(1, N_HID),
        "fc2w": fc2_w.T,
        "fc2b": params["fc2_b"].astype(jnp.float32).reshape(1, classes),
    }


# --------------------------------------------------------------- reference --

def lenet_reference(x_nchw, params):
    """Plain-JAX float32 LeNet forward (PyTorch semantics) for validation."""
    x = x_nchw.astype(jnp.float32)
    dn = ("NCHW", "OIHW", "NCHW")
    a1 = jax.lax.conv_general_dilated(x, params["conv1_w"], (1, 1), "VALID",
                                      dimension_numbers=dn)
    a1 = jnp.maximum(a1 + params["conv1_b"][None, :, None, None], 0.0)
    B, C1, H1, W1 = a1.shape
    p1 = jnp.max(a1.reshape(B, C1, H1 // 2, 2, W1 // 2, 2), axis=(3, 5))
    a2 = jax.lax.conv_general_dilated(p1, params["conv2_w"], (1, 1), "VALID",
                                      dimension_numbers=dn)
    a2 = jnp.maximum(a2 + params["conv2_b"][None, :, None, None], 0.0)
    B, C2, H2, W2 = a2.shape
    p2 = jnp.max(a2.reshape(B, C2, H2 // 2, 2, W2 // 2, 2), axis=(3, 5))
    flat = p2.reshape(B, -1)
    h1 = jnp.maximum(flat @ params["fc1_w"].T + params["fc1_b"], 0.0)
    logits = h1 @ params["fc2_w"].T + params["fc2_b"]
    return jax.nn.log_softmax(logits, axis=1)


if __name__ == "__main__":
    key = jax.random.PRNGKey(0)
    pkey, xkey = jax.random.split(key)
    params = init_params(pkey, num_channels=1, classes=10)
    prep = prepare_params(params)          # one-time layout prep, no per-call cost
    # Linear(in_features=800) == 50*4*4 forces 28x28 single-channel inputs
    # (KMNIST size); batch kept small (2).
    x = jax.random.normal(xkey, (2, 1, 28, 28), jnp.float32)

    out = jax.jit(lenet_forward)(x, prep)
    out = jax.block_until_ready(out)
    assert out.shape == (2, 10) and out.dtype == jnp.float32
    assert bool(jnp.all(jnp.isfinite(out)))

    ref = jax.jit(lenet_reference)(x, params)
    err = float(jnp.max(jnp.abs(out - ref)))
    # bf16 fc1 + MXU rounding -> small drift vs f32 reference; generous bound.
    assert err < 2e-1, f"max|kernel - reference| = {err}"
    print("KERNEL_OK")
</pallas_src>

<mosaic_0001>
module attributes {stable_mosaic.version = 11 : i64} {
  func.func @_lenet_kernel(%arg0: i32, %arg1: memref<1x4x96x65xf32, #tpu.memory_space<vmem>>, %arg2: memref<65x128xf32, #tpu.memory_space<vmem>>, %arg3: memref<1x128xf32, #tpu.memory_space<vmem>>, %arg4: memref<640x50xf32, #tpu.memory_space<vmem>>, %arg5: memref<1x50xf32, #tpu.memory_space<vmem>>, %arg6: memref<2048x500xbf16, #tpu.memory_space<vmem>>, %arg7: memref<1x500xf32, #tpu.memory_space<vmem>>, %arg8: memref<500x10xf32, #tpu.memory_space<vmem>>, %arg9: memref<1x10xf32, #tpu.memory_space<vmem>>, %arg10: memref<1x1x10xf32, #tpu.memory_space<vmem>>, %arg11: memref<96x128xf32, #tpu.memory_space<vmem>>, %arg12: memref<4x8x50xf32, #tpu.memory_space<vmem>>, %arg13: memref<1x2048xbf16, #tpu.memory_space<vmem>>) attributes {dimension_semantics = [#tpu.dimension_semantics<parallel>], iteration_bounds = array<i64: 2>, scalar_prefetch = 0 : i64, scratch_operands = 3 : i64, tpu.core_type = #tpu.core_type<tc>, window_params = [{transform_indices = @transform_0, window_bounds = array<i64: 1, 4, 96, 65>}, {pipeline_mode = #tpu.pipeline_mode<synchronous>, transform_indices = @transform_1, window_bounds = array<i64: 65, 128>}, {pipeline_mode = #tpu.pipeline_mode<synchronous>, transform_indices = @transform_2, window_bounds = array<i64: 1, 128>}, {pipeline_mode = #tpu.pipeline_mode<synchronous>, transform_indices = @transform_3, window_bounds = array<i64: 640, 50>}, {pipeline_mode = #tpu.pipeline_mode<synchronous>, transform_indices = @transform_4, window_bounds = array<i64: 1, 50>}, {pipeline_mode = #tpu.pipeline_mode<synchronous>, transform_indices = @transform_5, window_bounds = array<i64: 2048, 500>}, {pipeline_mode = #tpu.pipeline_mode<synchronous>, transform_indices = @transform_6, window_bounds = array<i64: 1, 500>}, {pipeline_mode = #tpu.pipeline_mode<synchronous>, transform_indices = @transform_7, window_bounds = array<i64: 500, 10>}, {pipeline_mode = #tpu.pipeline_mode<synchronous>, transform_indices = @transform_8, window_bounds = array<i64: 1, 10>}, {transform_indices = @transform_9, window_bounds = array<i64: 1, 1, 10>}]} {
    %c0 = arith.constant 0 : index
    %c0_0 = arith.constant 0 : index
    %0 = vector.load %arg2[%c0, %c0_0] : memref<65x128xf32, #tpu.memory_space<vmem>>, vector<65x128xf32>
    %c0_1 = arith.constant 0 : index
    %c0_2 = arith.constant 0 : index
    %c0_3 = arith.constant 0 : index
    %c0_4 = arith.constant 0 : index
    %1 = vector.load %arg1[%c0_1, %c0_2, %c0_3, %c0_4] : memref<1x4x96x65xf32, #tpu.memory_space<vmem>>, vector<1x1x96x65xf32>
    %2 = vector.shape_cast %1 : vector<1x1x96x65xf32> to vector<96x65xf32>
    %cst = arith.constant dense<0.000000e+00> : vector<96x128xf32>
    %3 = tpu.matmul %2, %0, %cst {dimension_numbers = #tpu.dot_dimension_numbers<[1], [0], [0], [1], [0, 0, 1, 1], [], []>} : vector<96x65xf32>, vector<65x128xf32>, vector<96x128xf32> -> vector<96x128xf32>
    %c0_5 = arith.constant 0 : index
    %c1 = arith.constant 1 : index
    %c0_6 = arith.constant 0 : index
    %c0_7 = arith.constant 0 : index
    %4 = vector.load %arg1[%c0_5, %c1, %c0_6, %c0_7] : memref<1x4x96x65xf32, #tpu.memory_space<vmem>>, vector<1x1x96x65xf32>
    %5 = vector.shape_cast %4 : vector<1x1x96x65xf32> to vector<96x65xf32>
    %cst_8 = arith.constant dense<0.000000e+00> : vector<96x128xf32>
    %6 = tpu.matmul %5, %0, %cst_8 {dimension_numbers = #tpu.dot_dimension_numbers<[1], [0], [0], [1], [0, 0, 1, 1], [], []>} : vector<96x65xf32>, vector<65x128xf32>, vector<96x128xf32> -> vector<96x128xf32>
    %7 = arith.maximumf %3, %6 : vector<96x128xf32>
    %c0_9 = arith.constant 0 : index
    %c2 = arith.constant 2 : index
    %c0_10 = arith.constant 0 : index
    %c0_11 = arith.constant 0 : index
    %8 = vector.load %arg1[%c0_9, %c2, %c0_10, %c0_11] : memref<1x4x96x65xf32, #tpu.memory_space<vmem>>, vector<1x1x96x65xf32>
    %9 = vector.shape_cast %8 : vector<1x1x96x65xf32> to vector<96x65xf32>
    %cst_12 = arith.constant dense<0.000000e+00> : vector<96x128xf32>
    %10 = tpu.matmul %9, %0, %cst_12 {dimension_numbers = #tpu.dot_dimension_numbers<[1], [0], [0], [1], [0, 0, 1, 1], [], []>} : vector<96x65xf32>, vector<65x128xf32>, vector<96x128xf32> -> vector<96x128xf32>
    %11 = arith.maximumf %7, %10 : vector<96x128xf32>
    %c0_13 = arith.constant 0 : index
    %c3 = arith.constant 3 : index
    %c0_14 = arith.constant 0 : index
    %c0_15 = arith.constant 0 : index
    %12 = vector.load %arg1[%c0_13, %c3, %c0_14, %c0_15] : memref<1x4x96x65xf32, #tpu.memory_space<vmem>>, vector<1x1x96x65xf32>
    %13 = vector.shape_cast %12 : vector<1x1x96x65xf32> to vector<96x65xf32>
    %cst_16 = arith.constant dense<0.000000e+00> : vector<96x128xf32>
    %14 = tpu.matmul %13, %0, %cst_16 {dimension_numbers = #tpu.dot_dimension_numbers<[1], [0], [0], [1], [0, 0, 1, 1], [], []>} : vector<96x65xf32>, vector<65x128xf32>, vector<96x128xf32> -> vector<96x128xf32>
    %15 = arith.maximumf %11, %14 : vector<96x128xf32>
    %c0_17 = arith.constant 0 : index
    %c0_18 = arith.constant 0 : index
    %16 = vector.load %arg3[%c0_17, %c0_18] : memref<1x128xf32, #tpu.memory_space<vmem>>, vector<1x128xf32>
    %17 = vector.broadcast %16 : vector<1x128xf32> to vector<96x128xf32>
    %18 = arith.addf %15, %17 : vector<96x128xf32>
    %cst_19 = arith.constant 0.000000e+00 : f32
    %19 = vector.broadcast %cst_19 : f32 to vector<96x128xf32>
    %20 = arith.maximumf %18, %19 : vector<96x128xf32>
    %c0_20 = arith.constant 0 : index
    %c0_21 = arith.constant 0 : index
    %21 = vector.load %arg11[%c0_20, %c0_21] : memref<96x128xf32, #tpu.memory_space<vmem>>, vector<96x128xf32>
    tpu.vector_store %arg11[%c0_20, %c0_21], %20 {strides = array<i32>} : memref<96x128xf32, #tpu.memory_space<vmem>>, vector<96x128xf32>,
    %c0_22 = arith.constant 0 : index
    %c0_23 = arith.constant 0 : index
    %22 = vector.load %arg11[%c0_22, %c0_23] : memref<96x128xf32, #tpu.memory_space<vmem>>, vector<64x128xf32>
    %c8 = arith.constant 8 : index
    %c0_24 = arith.constant 0 : index
    %23 = vector.load %arg11[%c8, %c0_24] : memref<96x128xf32, #tpu.memory_space<vmem>>, vector<64x128xf32>
    %c16 = arith.constant 16 : index
    %c0_25 = arith.constant 0 : index
    %24 = vector.load %arg11[%c16, %c0_25] : memref<96x128xf32, #tpu.memory_space<vmem>>, vector<64x128xf32>
    %c24 = arith.constant 24 : index
    %c0_26 = arith.constant 0 : index
    %25 = vector.load %arg11[%c24, %c0_26] : memref<96x128xf32, #tpu.memory_space<vmem>>, vector<64x128xf32>
    %c32 = arith.constant 32 : index
    %c0_27 = arith.constant 0 : index
    %26 = vector.load %arg11[%c32, %c0_27] : memref<96x128xf32, #tpu.memory_space<vmem>>, vector<64x128xf32>
    %27 = tpu.concatenate %22, %23, %24, %25, %26 in 1 : vector<64x128xf32>, vector<64x128xf32>, vector<64x128xf32>, vector<64x128xf32>, vector<64x128xf32> -> vector<64x640xf32>
    %c0_28 = arith.constant 0 : index
    %c0_29 = arith.constant 0 : index
    %28 = vector.load %arg4[%c0_28, %c0_29] : memref<640x50xf32, #tpu.memory_space<vmem>>, vector<640x50xf32>
    %cst_30 = arith.constant dense<0.000000e+00> : vector<64x50xf32>
    %29 = tpu.matmul %27, %28, %cst_30 {dimension_numbers = #tpu.dot_dimension_numbers<[1], [0], [0], [1], [0, 0, 1, 1], [], []>} : vector<64x640xf32>, vector<640x50xf32>, vector<64x50xf32> -> vector<64x50xf32>
    %30 = vector.shape_cast %29 : vector<64x50xf32> to vector<4x2x8x50xf32>
    %31 = vector.extract_strided_slice %30 {offsets = [0, 0, 0, 0], sizes = [4, 1, 8, 50], strides = [1, 1, 1, 1]} : vector<4x2x8x50xf32> to vector<4x1x8x50xf32>
    %32 = vector.shape_cast %31 : vector<4x1x8x50xf32> to vector<4x8x50xf32>
    %33 = vector.extract_strided_slice %30 {offsets = [0, 1, 0, 0], sizes = [4, 1, 8, 50], strides = [1, 1, 1, 1]} : vector<4x2x8x50xf32> to vector<4x1x8x50xf32>
    %34 = vector.shape_cast %33 : vector<4x1x8x50xf32> to vector<4x8x50xf32>
    %35 = arith.maximumf %32, %34 : vector<4x8x50xf32>
    %c0_31 = arith.constant 0 : index
    %c0_32 = arith.constant 0 : index
    %36 = vector.load %arg5[%c0_31, %c0_32] : memref<1x50xf32, #tpu.memory_space<vmem>>, vector<1x50xf32>
    %37 = vector.shape_cast %36 : vector<1x50xf32> to vector<1x1x50xf32>
    %38 = vector.broadcast %37 : vector<1x1x50xf32> to vector<4x8x50xf32>
    %39 = arith.addf %35, %38 : vector<4x8x50xf32>
    %cst_33 = arith.constant 0.000000e+00 : f32
    %40 = vector.broadcast %cst_33 : f32 to vector<4x8x50xf32>
    %41 = arith.maximumf %39, %40 : vector<4x8x50xf32>
    %c0_34 = arith.constant 0 : index
    %c0_35 = arith.constant 0 : index
    %c0_36 = arith.constant 0 : index
    %42 = vector.load %arg12[%c0_34, %c0_35, %c0_36] : memref<4x8x50xf32, #tpu.memory_space<vmem>>, vector<4x8x50xf32>
    tpu.vector_store %arg12[%c0_34, %c0_35, %c0_36], %41 {strides = array<i32>} : memref<4x8x50xf32, #tpu.memory_space<vmem>>, vector<4x8x50xf32>,
    %cst_37 = arith.constant 0.000000e+00 : bf16
    %43 = vector.broadcast %cst_37 : bf16 to vector<1x2048xbf16>
    %c0_38 = arith.constant 0 : index
    %c0_39 = arith.constant 0 : index
    %44 = vector.load %arg13[%c0_38, %c0_39] : memref<1x2048xbf16, #tpu.memory_space<vmem>>, vector<1x2048xbf16>
    tpu.vector_store %arg13[%c0_38, %c0_39], %43 {strides = array<i32>} : memref<1x2048xbf16, #tpu.memory_space<vmem>>, vector<1x2048xbf16>,
    %c0_40 = arith.constant 0 : index
    %c0_41 = arith.constant 0 : index
    %c0_42 = arith.constant 0 : index
    %45 = vector.load %arg12[%c0_40, %c0_41, %c0_42] : memref<4x8x50xf32, #tpu.memory_space<vmem>>, vector<1x1x50xf32>
    %46 = vector.shape_cast %45 : vector<1x1x50xf32> to vector<1x50xf32>
    %c0_43 = arith.constant 0 : index
    %c1_44 = arith.constant 1 : index
    %c0_45 = arith.constant 0 : index
    %47 = vector.load %arg12[%c0_43, %c1_44, %c0_45] : memref<4x8x50xf32, #tpu.memory_space<vmem>>, vector<1x1x50xf32>
    %48 = vector.shape_cast %47 : vector<1x1x50xf32> to vector<1x50xf32>
    %49 = arith.maximumf %46, %48 : vector<1x50xf32>
    %50 = arith.truncf %49 : vector<1x50xf32> to vector<1x50xbf16>
    %c0_46 = arith.constant 0 : index
    %c0_47 = arith.constant 0 : index
    %51 = vector.load %arg13[%c0_46, %c0_47] : memref<1x2048xbf16, #tpu.memory_space<vmem>>, vector<1x50xbf16>
    tpu.vector_store %arg13[%c0_46, %c0_47], %50 {strides = array<i32>} : memref<1x2048xbf16, #tpu.memory_space<vmem>>, vector<1x50xbf16>,
    %c0_48 = arith.constant 0 : index
    %c2_49 = arith.constant 2 : index
    %c0_50 = arith.constant 0 : index
    %52 = vector.load %arg12[%c0_48, %c2_49, %c0_50] : memref<4x8x50xf32, #tpu.memory_space<vmem>>, vector<1x1x50xf32>
    %53 = vector.shape_cast %52 : vector<1x1x50xf32> to vector<1x50xf32>
    %c0_51 = arith.constant 0 : index
    %c3_52 = arith.constant 3 : index
    %c0_53 = arith.constant 0 : index
    %54 = vector.load %arg12[%c0_51, %c3_52, %c0_53] : memref<4x8x50xf32, #tpu.memory_space<vmem>>, vector<1x1x50xf32>
    %55 = vector.shape_cast %54 : vector<1x1x50xf32> to vector<1x50xf32>
    %56 = arith.maximumf %53, %55 : vector<1x50xf32>
    %57 = arith.truncf %56 : vector<1x50xf32> to vector<1x50xbf16>
    %c0_54 = arith.constant 0 : index
    %c128 = arith.constant 128 : index
    %58 = vector.load %arg13[%c0_54, %c128] : memref<1x2048xbf16, #tpu.memory_space<vmem>>, vector<1x50xbf16>
    tpu.vector_store %arg13[%c0_54, %c128], %57 {strides = array<i32>} : memref<1x2048xbf16, #tpu.memory_space<vmem>>, vector<1x50xbf16>,
    %c0_55 = arith.constant 0 : index
    %c4 = arith.constant 4 : index
    %c0_56 = arith.constant 0 : index
    %59 = vector.load %arg12[%c0_55, %c4, %c0_56] : memref<4x8x50xf32, #tpu.memory_space<vmem>>, vector<1x1x50xf32>
    %60 = vector.shape_cast %59 : vector<1x1x50xf32> to vector<1x50xf32>
    %c0_57 = arith.constant 0 : index
    %c5 = arith.constant 5 : index
    %c0_58 = arith.constant 0 : index
    %61 = vector.load %arg12[%c0_57, %c5, %c0_58] : memref<4x8x50xf32, #tpu.memory_space<vmem>>, vector<1x1x50xf32>
    %62 = vector.shape_cast %61 : vector<1x1x50xf32> to vector<1x50xf32>
    %63 = arith.maximumf %60, %62 : vector<1x50xf32>
    %64 = arith.truncf %63 : vector<1x50xf32> to vector<1x50xbf16>
    %c0_59 = arith.constant 0 : index
    %c256 = arith.constant 256 : index
    %65 = vector.load %arg13[%c0_59, %c256] : memref<1x2048xbf16, #tpu.memory_space<vmem>>, vector<1x50xbf16>
    tpu.vector_store %arg13[%c0_59, %c256], %64 {strides = array<i32>} : memref<1x2048xbf16, #tpu.memory_space<vmem>>, vector<1x50xbf16>,
    %c0_60 = arith.constant 0 : index
    %c6 = arith.constant 6 : index
    %c0_61 = arith.constant 0 : index
    %66 = vector.load %arg12[%c0_60, %c6, %c0_61] : memref<4x8x50xf32, #tpu.memory_space<vmem>>, vector<1x1x50xf32>
    %67 = vector.shape_cast %66 : vector<1x1x50xf32> to vector<1x50xf32>
    %c0_62 = arith.constant 0 : index
    %c7 = arith.constant 7 : index
    %c0_63 = arith.constant 0 : index
    %68 = vector.load %arg12[%c0_62, %c7, %c0_63] : memref<4x8x50xf32, #tpu.memory_space<vmem>>, vector<1x1x50xf32>
    %69 = vector.shape_cast %68 : vector<1x1x50xf32> to vector<1x50xf32>
    %70 = arith.maximumf %67, %69 : vector<1x50xf32>
    %71 = arith.truncf %70 : vector<1x50xf32> to vector<1x50xbf16>
    %c0_64 = arith.constant 0 : index
    %c384 = arith.constant 384 : index
    %72 = vector.load %arg13[%c0_64, %c384] : memref<1x2048xbf16, #tpu.memory_space<vmem>>, vector<1x50xbf16>
    tpu.vector_store %arg13[%c0_64, %c384], %71 {strides = array<i32>} : memref<1x2048xbf16, #tpu.memory_space<vmem>>, vector<1x50xbf16>,
    %c1_65 = arith.constant 1 : index
    %c0_66 = arith.constant 0 : index
    %c0_67 = arith.constant 0 : index
    %73 = vector.load %arg12[%c1_65, %c0_66, %c0_67] : memref<4x8x50xf32, #tpu.memory_space<vmem>>, vector<1x1x50xf32>
    %74 = vector.shape_cast %73 : vector<1x1x50xf32> to vector<1x50xf32>
    %c1_68 = arith.constant 1 : index
    %c1_69 = arith.constant 1 : index
    %c0_70 = arith.constant 0 : index
    %75 = vector.load %arg12[%c1_68, %c1_69, %c0_70] : memref<4x8x50xf32, #tpu.memory_space<vmem>>, vector<1x1x50xf32>
    %76 = vector.shape_cast %75 : vector<1x1x50xf32> to vector<1x50xf32>
    %77 = arith.maximumf %74, %76 : vector<1x50xf32>
    %78 = arith.truncf %77 : vector<1x50xf32> to vector<1x50xbf16>
    %c0_71 = arith.constant 0 : index
    %c512 = arith.constant 512 : index
    %79 = vector.load %arg13[%c0_71, %c512] : memref<1x2048xbf16, #tpu.memory_space<vmem>>, vector<1x50xbf16>
    tpu.vector_store %arg13[%c0_71, %c512], %78 {strides = array<i32>} : memref<1x2048xbf16, #tpu.memory_space<vmem>>, vector<1x50xbf16>,
    %c1_72 = arith.constant 1 : index
    %c2_73 = arith.constant 2 : index
    %c0_74 = arith.constant 0 : index
    %80 = vector.load %arg12[%c1_72, %c2_73, %c0_74] : memref<4x8x50xf32, #tpu.memory_space<vmem>>, vector<1x1x50xf32>
    %81 = vector.shape_cast %80 : vector<1x1x50xf32> to vector<1x50xf32>
    %c1_75 = arith.constant 1 : index
    %c3_76 = arith.constant 3 : index
    %c0_77 = arith.constant 0 : index
    %82 = vector.load %arg12[%c1_75, %c3_76, %c0_77] : memref<4x8x50xf32, #tpu.memory_space<vmem>>, vector<1x1x50xf32>
    %83 = vector.shape_cast %82 : vector<1x1x50xf32> to vector<1x50xf32>
    %84 = arith.maximumf %81, %83 : vector<1x50xf32>
    %85 = arith.truncf %84 : vector<1x50xf32> to vector<1x50xbf16>
    %c0_78 = arith.constant 0 : index
    %c640 = arith.constant 640 : index
    %86 = vector.load %arg13[%c0_78, %c640] : memref<1x2048xbf16, #tpu.memory_space<vmem>>, vector<1x50xbf16>
    tpu.vector_store %arg13[%c0_78, %c640], %85 {strides = array<i32>} : memref<1x2048xbf16, #tpu.memory_space<vmem>>, vector<1x50xbf16>,
    %c1_79 = arith.constant 1 : index
    %c4_80 = arith.constant 4 : index
    %c0_81 = arith.constant 0 : index
    %87 = vector.load %arg12[%c1_79, %c4_80, %c0_81] : memref<4x8x50xf32, #tpu.memory_space<vmem>>, vector<1x1x50xf32>
    %88 = vector.shape_cast %87 : vector<1x1x50xf32> to vector<1x50xf32>
    %c1_82 = arith.constant 1 : index
    %c5_83 = arith.constant 5 : index
    %c0_84 = arith.constant 0 : index
    %89 = vector.load %arg12[%c1_82, %c5_83, %c0_84] : memref<4x8x50xf32, #tpu.memory_space<vmem>>, vector<1x1x50xf32>
    %90 = vector.shape_cast %89 : vector<1x1x50xf32> to vector<1x50xf32>
    %91 = arith.maximumf %88, %90 : vector<1x50xf32>
    %92 = arith.truncf %91 : vector<1x50xf32> to vector<1x50xbf16>
    %c0_85 = arith.constant 0 : index
    %c768 = arith.constant 768 : index
    %93 = vector.load %arg13[%c0_85, %c768] : memref<1x2048xbf16, #tpu.memory_space<vmem>>, vector<1x50xbf16>
    tpu.vector_store %arg13[%c0_85, %c768], %92 {strides = array<i32>} : memref<1x2048xbf16, #tpu.memory_space<vmem>>, vector<1x50xbf16>,
    %c1_86 = arith.constant 1 : index
    %c6_87 = arith.constant 6 : index
    %c0_88 = arith.constant 0 : index
    %94 = vector.load %arg12[%c1_86, %c6_87, %c0_88] : memref<4x8x50xf32, #tpu.memory_space<vmem>>, vector<1x1x50xf32>
    %95 = vector.shape_cast %94 : vector<1x1x50xf32> to vector<1x50xf32>
    %c1_89 = arith.constant 1 : index
    %c7_90 = arith.constant 7 : index
    %c0_91 = arith.constant 0 : index
    %96 = vector.load %arg12[%c1_89, %c7_90, %c0_91] : memref<4x8x50xf32, #tpu.memory_space<vmem>>, vector<1x1x50xf32>
    %97 = vector.shape_cast %96 : vector<1x1x50xf32> to vector<1x50xf32>
    %98 = arith.maximumf %95, %97 : vector<1x50xf32>
    %99 = arith.truncf %98 : vector<1x50xf32> to vector<1x50xbf16>
    %c0_92 = arith.constant 0 : index
    %c896 = arith.constant 896 : index
    %100 = vector.load %arg13[%c0_92, %c896] : memref<1x2048xbf16, #tpu.memory_space<vmem>>, vector<1x50xbf16>
    tpu.vector_store %arg13[%c0_92, %c896], %99 {strides = array<i32>} : memref<1x2048xbf16, #tpu.memory_space<vmem>>, vector<1x50xbf16>,
    %c2_93 = arith.constant 2 : index
    %c0_94 = arith.constant 0 : index
    %c0_95 = arith.constant 0 : index
    %101 = vector.load %arg12[%c2_93, %c0_94, %c0_95] : memref<4x8x50xf32, #tpu.memory_space<vmem>>, vector<1x1x50xf32>
    %102 = vector.shape_cast %101 : vector<1x1x50xf32> to vector<1x50xf32>
    %c2_96 = arith.constant 2 : index
    %c1_97 = arith.constant 1 : index
    %c0_98 = arith.constant 0 : index
    %103 = vector.load %arg12[%c2_96, %c1_97, %c0_98] : memref<4x8x50xf32, #tpu.memory_space<vmem>>, vector<1x1x50xf32>
    %104 = vector.shape_cast %103 : vector<1x1x50xf32> to vector<1x50xf32>
    %105 = arith.maximumf %102, %104 : vector<1x50xf32>
    %106 = arith.truncf %105 : vector<1x50xf32> to vector<1x50xbf16>
    %c0_99 = arith.constant 0 : index
    %c1024 = arith.constant 1024 : index
    %107 = vector.load %arg13[%c0_99, %c1024] : memref<1x2048xbf16, #tpu.memory_space<vmem>>, vector<1x50xbf16>
    tpu.vector_store %arg13[%c0_99, %c1024], %106 {strides = array<i32>} : memref<1x2048xbf16, #tpu.memory_space<vmem>>, vector<1x50xbf16>,
    %c2_100 = arith.constant 2 : index
    %c2_101 = arith.constant 2 : index
    %c0_102 = arith.constant 0 : index
    %108 = vector.load %arg12[%c2_100, %c2_101, %c0_102] : memref<4x8x50xf32, #tpu.memory_space<vmem>>, vector<1x1x50xf32>
    %109 = vector.shape_cast %108 : vector<1x1x50xf32> to vector<1x50xf32>
    %c2_103 = arith.constant 2 : index
    %c3_104 = arith.constant 3 : index
    %c0_105 = arith.constant 0 : index
    %110 = vector.load %arg12[%c2_103, %c3_104, %c0_105] : memref<4x8x50xf32, #tpu.memory_space<vmem>>, vector<1x1x50xf32>
    %111 = vector.shape_cast %110 : vector<1x1x50xf32> to vector<1x50xf32>
    %112 = arith.maximumf %109, %111 : vector<1x50xf32>
    %113 = arith.truncf %112 : vector<1x50xf32> to vector<1x50xbf16>
    %c0_106 = arith.constant 0 : index
    %c1152 = arith.constant 1152 : index
    %114 = vector.load %arg13[%c0_106, %c1152] : memref<1x2048xbf16, #tpu.memory_space<vmem>>, vector<1x50xbf16>
    tpu.vector_store %arg13[%c0_106, %c1152], %113 {strides = array<i32>} : memref<1x2048xbf16, #tpu.memory_space<vmem>>, vector<1x50xbf16>,
    %c2_107 = arith.constant 2 : index
    %c4_108 = arith.constant 4 : index
    %c0_109 = arith.constant 0 : index
    %115 = vector.load %arg12[%c2_107, %c4_108, %c0_109] : memref<4x8x50xf32, #tpu.memory_space<vmem>>, vector<1x1x50xf32>
    %116 = vector.shape_cast %115 : vector<1x1x50xf32> to vector<1x50xf32>
    %c2_110 = arith.constant 2 : index
    %c5_111 = arith.constant 5 : index
    %c0_112 = arith.constant 0 : index
    %117 = vector.load %arg12[%c2_110, %c5_111, %c0_112] : memref<4x8x50xf32, #tpu.memory_space<vmem>>, vector<1x1x50xf32>
    %118 = vector.shape_cast %117 : vector<1x1x50xf32> to vector<1x50xf32>
    %119 = arith.maximumf %116, %118 : vector<1x50xf32>
    %120 = arith.truncf %119 : vector<1x50xf32> to vector<1x50xbf16>
    %c0_113 = arith.constant 0 : index
    %c1280 = arith.constant 1280 : index
    %121 = vector.load %arg13[%c0_113, %c1280] : memref<1x2048xbf16, #tpu.memory_space<vmem>>, vector<1x50xbf16>
    tpu.vector_store %arg13[%c0_113, %c1280], %120 {strides = array<i32>} : memref<1x2048xbf16, #tpu.memory_space<vmem>>, vector<1x50xbf16>,
    %c2_114 = arith.constant 2 : index
    %c6_115 = arith.constant 6 : index
    %c0_116 = arith.constant 0 : index
    %122 = vector.load %arg12[%c2_114, %c6_115, %c0_116] : memref<4x8x50xf32, #tpu.memory_space<vmem>>, vector<1x1x50xf32>
    %123 = vector.shape_cast %122 : vector<1x1x50xf32> to vector<1x50xf32>
    %c2_117 = arith.constant 2 : index
    %c7_118 = arith.constant 7 : index
    %c0_119 = arith.constant 0 : index
    %124 = vector.load %arg12[%c2_117, %c7_118, %c0_119] : memref<4x8x50xf32, #tpu.memory_space<vmem>>, vector<1x1x50xf32>
    %125 = vector.shape_cast %124 : vector<1x1x50xf32> to vector<1x50xf32>
    %126 = arith.maximumf %123, %125 : vector<1x50xf32>
    %127 = arith.truncf %126 : vector<1x50xf32> to vector<1x50xbf16>
    %c0_120 = arith.constant 0 : index
    %c1408 = arith.constant 1408 : index
    %128 = vector.load %arg13[%c0_120, %c1408] : memref<1x2048xbf16, #tpu.memory_space<vmem>>, vector<1x50xbf16>
    tpu.vector_store %arg13[%c0_120, %c1408], %127 {strides = array<i32>} : memref<1x2048xbf16, #tpu.memory_space<vmem>>, vector<1x50xbf16>,
    %c3_121 = arith.constant 3 : index
    %c0_122 = arith.constant 0 : index
    %c0_123 = arith.constant 0 : index
    %129 = vector.load %arg12[%c3_121, %c0_122, %c0_123] : memref<4x8x50xf32, #tpu.memory_space<vmem>>, vector<1x1x50xf32>
    %130 = vector.shape_cast %129 : vector<1x1x50xf32> to vector<1x50xf32>
    %c3_124 = arith.constant 3 : index
    %c1_125 = arith.constant 1 : index
    %c0_126 = arith.constant 0 : index
    %131 = vector.load %arg12[%c3_124, %c1_125, %c0_126] : memref<4x8x50xf32, #tpu.memory_space<vmem>>, vector<1x1x50xf32>
    %132 = vector.shape_cast %131 : vector<1x1x50xf32> to vector<1x50xf32>
    %133 = arith.maximumf %130, %132 : vector<1x50xf32>
    %134 = arith.truncf %133 : vector<1x50xf32> to vector<1x50xbf16>
    %c0_127 = arith.constant 0 : index
    %c1536 = arith.constant 1536 : index
    %135 = vector.load %arg13[%c0_127, %c1536] : memref<1x2048xbf16, #tpu.memory_space<vmem>>, vector<1x50xbf16>
    tpu.vector_store %arg13[%c0_127, %c1536], %134 {strides = array<i32>} : memref<1x2048xbf16, #tpu.memory_space<vmem>>, vector<1x50xbf16>,
    %c3_128 = arith.constant 3 : index
    %c2_129 = arith.constant 2 : index
    %c0_130 = arith.constant 0 : index
    %136 = vector.load %arg12[%c3_128, %c2_129, %c0_130] : memref<4x8x50xf32, #tpu.memory_space<vmem>>, vector<1x1x50xf32>
    %137 = vector.shape_cast %136 : vector<1x1x50xf32> to vector<1x50xf32>
    %c3_131 = arith.constant 3 : index
    %c3_132 = arith.constant 3 : index
    %c0_133 = arith.constant 0 : index
    %138 = vector.load %arg12[%c3_131, %c3_132, %c0_133] : memref<4x8x50xf32, #tpu.memory_space<vmem>>, vector<1x1x50xf32>
    %139 = vector.shape_cast %138 : vector<1x1x50xf32> to vector<1x50xf32>
    %140 = arith.maximumf %137, %139 : vector<1x50xf32>
    %141 = arith.truncf %140 : vector<1x50xf32> to vector<1x50xbf16>
    %c0_134 = arith.constant 0 : index
    %c1664 = arith.constant 1664 : index
    %142 = vector.load %arg13[%c0_134, %c1664] : memref<1x2048xbf16, #tpu.memory_space<vmem>>, vector<1x50xbf16>
    tpu.vector_store %arg13[%c0_134, %c1664], %141 {strides = array<i32>} : memref<1x2048xbf16, #tpu.memory_space<vmem>>, vector<1x50xbf16>,
    %c3_135 = arith.constant 3 : index
    %c4_136 = arith.constant 4 : index
    %c0_137 = arith.constant 0 : index
    %143 = vector.load %arg12[%c3_135, %c4_136, %c0_137] : memref<4x8x50xf32, #tpu.memory_space<vmem>>, vector<1x1x50xf32>
    %144 = vector.shape_cast %143 : vector<1x1x50xf32> to vector<1x50xf32>
    %c3_138 = arith.constant 3 : index
    %c5_139 = arith.constant 5 : index
    %c0_140 = arith.constant 0 : index
    %145 = vector.load %arg12[%c3_138, %c5_139, %c0_140] : memref<4x8x50xf32, #tpu.memory_space<vmem>>, vector<1x1x50xf32>
    %146 = vector.shape_cast %145 : vector<1x1x50xf32> to vector<1x50xf32>
    %147 = arith.maximumf %144, %146 : vector<1x50xf32>
    %148 = arith.truncf %147 : vector<1x50xf32> to vector<1x50xbf16>
    %c0_141 = arith.constant 0 : index
    %c1792 = arith.constant 1792 : index
    %149 = vector.load %arg13[%c0_141, %c1792] : memref<1x2048xbf16, #tpu.memory_space<vmem>>, vector<1x50xbf16>
    tpu.vector_store %arg13[%c0_141, %c1792], %148 {strides = array<i32>} : memref<1x2048xbf16, #tpu.memory_space<vmem>>, vector<1x50xbf16>,
    %c3_142 = arith.constant 3 : index
    %c6_143 = arith.constant 6 : index
    %c0_144 = arith.constant 0 : index
    %150 = vector.load %arg12[%c3_142, %c6_143, %c0_144] : memref<4x8x50xf32, #tpu.memory_space<vmem>>, vector<1x1x50xf32>
    %151 = vector.shape_cast %150 : vector<1x1x50xf32> to vector<1x50xf32>
    %c3_145 = arith.constant 3 : index
    %c7_146 = arith.constant 7 : index
    %c0_147 = arith.constant 0 : index
    %152 = vector.load %arg12[%c3_145, %c7_146, %c0_147] : memref<4x8x50xf32, #tpu.memory_space<vmem>>, vector<1x1x50xf32>
    %153 = vector.shape_cast %152 : vector<1x1x50xf32> to vector<1x50xf32>
    %154 = arith.maximumf %151, %153 : vector<1x50xf32>
    %155 = arith.truncf %154 : vector<1x50xf32> to vector<1x50xbf16>
    %c0_148 = arith.constant 0 : index
    %c1920 = arith.constant 1920 : index
    %156 = vector.load %arg13[%c0_148, %c1920] : memref<1x2048xbf16, #tpu.memory_space<vmem>>, vector<1x50xbf16>
    tpu.vector_store %arg13[%c0_148, %c1920], %155 {strides = array<i32>} : memref<1x2048xbf16, #tpu.memory_space<vmem>>, vector<1x50xbf16>,
    %c0_149 = arith.constant 0 : index
    %c0_150 = arith.constant 0 : index
    %157 = vector.load %arg13[%c0_149, %c0_150] : memref<1x2048xbf16, #tpu.memory_space<vmem>>, vector<1x2048xbf16>
    %c0_151 = arith.constant 0 : index
    %c0_152 = arith.constant 0 : index
    %158 = vector.load %arg6[%c0_151, %c0_152] : memref<2048x500xbf16, #tpu.memory_space<vmem>>, vector<2048x500xbf16>
    %cst_153 = arith.constant dense<0.000000e+00> : vector<1x500xf32>
    %159 = tpu.matmul %157, %158, %cst_153 {dimension_numbers = #tpu.dot_dimension_numbers<[1], [0], [0], [1], [0, 0, 1, 1], [], []>} : vector<1x2048xbf16>, vector<2048x500xbf16>, vector<1x500xf32> -> vector<1x500xf32>
    %c0_154 = arith.constant 0 : index
    %c0_155 = arith.constant 0 : index
    %160 = vector.load %arg7[%c0_154, %c0_155] : memref<1x500xf32, #tpu.memory_space<vmem>>, vector<1x500xf32>
    %161 = arith.addf %159, %160 : vector<1x500xf32>
    %cst_156 = arith.constant 0.000000e+00 : f32
    %162 = vector.broadcast %cst_156 : f32 to vector<1x500xf32>
    %163 = arith.maximumf %161, %162 : vector<1x500xf32>
    %c0_157 = arith.constant 0 : index
    %c0_158 = arith.constant 0 : index
    %164 = vector.load %arg8[%c0_157, %c0_158] : memref<500x10xf32, #tpu.memory_space<vmem>>, vector<500x10xf32>
    %cst_159 = arith.constant dense<0.000000e+00> : vector<1x10xf32>
    %165 = tpu.matmul %163, %164, %cst_159 {dimension_numbers = #tpu.dot_dimension_numbers<[1], [0], [0], [1], [0, 0, 1, 1], [], []>} : vector<1x500xf32>, vector<500x10xf32>, vector<1x10xf32> -> vector<1x10xf32>
    %c0_160 = arith.constant 0 : index
    %c0_161 = arith.constant 0 : index
    %166 = vector.load %arg9[%c0_160, %c0_161] : memref<1x10xf32, #tpu.memory_space<vmem>>, vector<1x10xf32>
    %167 = arith.addf %165, %166 : vector<1x10xf32>
    %cst_162 = arith.constant dense<0xFF800000> : vector<1xf32>
    %168 = vector.multi_reduction <maximumf>, %167, %cst_162 [1] : vector<1x10xf32> to vector<1xf32>
    %169 = vector.shape_cast %168 : vector<1xf32> to vector<1x1xf32>
    %170 = vector.broadcast %169 : vector<1x1xf32> to vector<1x10xf32>
    %171 = arith.subf %167, %170 : vector<1x10xf32>
    %172 = math.exp %171 : vector<1x10xf32>
    %cst_163 = arith.constant dense<0.000000e+00> : vector<1xf32>
    %173 = vector.multi_reduction <add>, %172, %cst_163 [1] : vector<1x10xf32> to vector<1xf32>
    %174 = vector.shape_cast %173 : vector<1xf32> to vector<1x1xf32>
    %175 = math.log %174 : vector<1x1xf32>
    %176 = vector.broadcast %175 : vector<1x1xf32> to vector<1x10xf32>
    %177 = arith.subf %171, %176 : vector<1x10xf32>
    %178 = vector.shape_cast %177 : vector<1x10xf32> to vector<1x1x10xf32>
    %c0_164 = arith.constant 0 : index
    %c0_165 = arith.constant 0 : index
    %c0_166 = arith.constant 0 : index
    %179 = vector.load %arg10[%c0_164, %c0_165, %c0_166] : memref<1x1x10xf32, #tpu.memory_space<vmem>>, vector<1x1x10xf32>
    tpu.vector_store %arg10[%c0_164, %c0_165, %c0_166], %178 {strides = array<i32>} : memref<1x1x10xf32, #tpu.memory_space<vmem>>, vector<1x1x10xf32>,
    return
  }
  func.func @transform_0(%arg0: i32) -> (i32, i32, i32, i32) {
    %c0_i32 = arith.constant 0 : i32
    %c0_i32_0 = arith.constant 0 : i32
    %c0_i32_1 = arith.constant 0 : i32
    %c0_i32_2 = arith.constant 0 : i32
    return %arg0, %c0_i32, %c0_i32_0, %c0_i32_1 : i32, i32, i32, i32
  }
  func.func @transform_1(%arg0: i32) -> (i32, i32) {
    %c0_i32 = arith.constant 0 : i32
    %c0_i32_0 = arith.constant 0 : i32
    %c0_i32_1 = arith.constant 0 : i32
    return %c0_i32, %c0_i32_0 : i32, i32
  }
  func.func @transform_2(%arg0: i32) -> (i32, i32) {
    %c0_i32 = arith.constant 0 : i32
    %c0_i32_0 = arith.constant 0 : i32
    %c0_i32_1 = arith.constant 0 : i32
    return %c0_i32, %c0_i32_0 : i32, i32
  }
  func.func @transform_3(%arg0: i32) -> (i32, i32) {
    %c0_i32 = arith.constant 0 : i32
    %c0_i32_0 = arith.constant 0 : i32
    %c0_i32_1 = arith.constant 0 : i32
    return %c0_i32, %c0_i32_0 : i32, i32
  }
  func.func @transform_4(%arg0: i32) -> (i32, i32) {
    %c0_i32 = arith.constant 0 : i32
    %c0_i32_0 = arith.constant 0 : i32
    %c0_i32_1 = arith.constant 0 : i32
    return %c0_i32, %c0_i32_0 : i32, i32
  }
  func.func @transform_5(%arg0: i32) -> (i32, i32) {
    %c0_i32 = arith.constant 0 : i32
    %c0_i32_0 = arith.constant 0 : i32
    %c0_i32_1 = arith.constant 0 : i32
    return %c0_i32, %c0_i32_0 : i32, i32
  }
  func.func @transform_6(%arg0: i32) -> (i32, i32) {
    %c0_i32 = arith.constant 0 : i32
    %c0_i32_0 = arith.constant 0 : i32
    %c0_i32_1 = arith.constant 0 : i32
    return %c0_i32, %c0_i32_0 : i32, i32
  }
  func.func @transform_7(%arg0: i32) -> (i32, i32) {
    %c0_i32 = arith.constant 0 : i32
    %c0_i32_0 = arith.constant 0 : i32
    %c0_i32_1 = arith.constant 0 : i32
    return %c0_i32, %c0_i32_0 : i32, i32
  }
  func.func @transform_8(%arg0: i32) -> (i32, i32) {
    %c0_i32 = arith.constant 0 : i32
    %c0_i32_0 = arith.constant 0 : i32
    %c0_i32_1 = arith.constant 0 : i32
    return %c0_i32, %c0_i32_0 : i32, i32
  }
  func.func @transform_9(%arg0: i32) -> (i32, i32, i32) {
    %c0_i32 = arith.constant 0 : i32
    %c0_i32_0 = arith.constant 0 : i32
    %c0_i32_1 = arith.constant 0 : i32
    return %arg0, %c0_i32, %c0_i32_0 : i32, i32, i32
  }
}

</mosaic_0001>

<llo_original>
// kernel: lenet_forward.1
$region0: #{lenet_forward.1}
  #allocation0 [shape = 'u32[]', space=smem, size = 0x4, offset = 0x4, fixed_abs, tag = 'smem constant byte address 0x4 - core index']
  #allocation1 [shape = 'u32[144,128]{1,0:T(1,128)}', space=vmem, size = 0x12000, scoped, tag = 'internal scratch']
  #allocation2 [shape = 'f32[96,128]{1,0:T(8,128)}', space=vmem, size = 0xc000, scoped, tag = 'scratch operand']
  #allocation3 [shape = 'f32[4,8,50]{2,1,0:T(8,128)}', space=vmem, size = 0x4000, scoped, tag = 'scratch operand']
  #allocation4 [shape = 'bf16[1,2048]{1,0:T(2,128)(2,1)}', space=vmem, size = 0x2000, scoped, tag = 'scratch operand']
  %s0 = inlined_call_operand.vmem [shape: f32[2,4,96,65], index: 0, kind: input, shape index: {}]
  %s1 = inlined_call_operand.vmem [shape: f32[65,128], index: 1, kind: input, shape index: {}]
  %s2 = inlined_call_operand.vmem [shape: f32[1,128], index: 2, kind: input, shape index: {}]
  %s3 = inlined_call_operand.vmem [shape: f32[640,50], index: 3, kind: input, shape index: {}]
  %s4 = inlined_call_operand.vmem [shape: f32[1,50], index: 4, kind: input, shape index: {}]
  %s5 = inlined_call_operand.vmem [shape: bf16[2048,500], index: 5, kind: input, shape index: {}]
  %s6 = inlined_call_operand.vmem [shape: f32[1,500], index: 6, kind: input, shape index: {}]
  %s7 = inlined_call_operand.vmem [shape: f32[500,10], index: 7, kind: input, shape index: {}]
  %s8 = inlined_call_operand.vmem [shape: f32[1,10], index: 8, kind: input, shape index: {}]
  %s9 = inlined_call_operand.hbm [shape: f32[2,1,10], index: 9, kind: output, shape index: {}]
  %s10 = sld [smem:[#allocation0]]
  $region69: #{lenet_forward.1} parent=0
    _
  %s12 = ssub.s32 1, %s10
  %s13 = scalar_select 0, %s12, %s10
  $region1: #{lenet_forward.1} parent=0
    #allocation5 [shape = 'u8[1024]{0}', space=vmem, size = 0x400, scoped, tag = 'output window, operand 0']
    #allocation6 [shape = 's32[2]{0}', space=sflag, size = 0x8, scoped, tag = 'scoped memory for lenet_forward.1']
    %14 = vsyncpa [#allocation6], 0
    %s15 = scalar_lea.sflag [#allocation6], 1
    %16 = vsyncpa %s15, 0
    loop: start=0, step=1, limit=4
    $region2: #{lenet_forward.1} parent=1 // loop_pre_header
      _
    $region3: #{lenet_forward.1} parent=1 // loop_header
      %s18 = sphi 0, %s22
      %p19 = scmp.ge.s32.totalorder %s18, 4
      %s28 = sphi 0, %s30
      %s31 = sphi 0, %s28
      %s32 = sphi 0, %s31
      %s48 = sphi 0, %s32
      %s52 = sphi 0, %s52
      %s54 = sphi 0, %s52
      %s55 = sphi 0, %s54
      %s69 = sphi 0, %s55
      %s73 = sphi 0, %s73
      %s75 = sphi 0, %s73
      %s76 = sphi 0, %s75
      %s90 = sphi 0, %s76
      %s94 = sphi 0, %s94
      %s96 = sphi 0, %s94
      %s97 = sphi 0, %s96
      %s111 = sphi 0, %s97
      %s115 = sphi 0, %s115
      %s117 = sphi 0, %s115
      %s118 = sphi 0, %s117
      %s132 = sphi 0, %s118
      %s136 = sphi 0, %s136
      %s138 = sphi 0, %s136
      %s139 = sphi 0, %s138
      %s153 = sphi 0, %s139
      %s157 = sphi 0, %s157
      %s159 = sphi 0, %s157
      %s160 = sphi 0, %s159
      %s174 = sphi 0, %s160
      %s178 = sphi 0, %s178
      %s180 = sphi 0, %s178
      %s181 = sphi 0, %s180
      %s195 = sphi 0, %s181
      %s199 = sphi 0, %s199
      %s201 = sphi 0, %s199
      %s202 = sphi 0, %s201
      %s216 = sphi 0, %s202
      %s222 = sphi 0, %s224
      %s225 = sphi 0, %s222
      %s226 = sphi 0, %s225
      %s242 = sphi 0, %s226
    $region4: #{lenet_forward.1} parent=1 // loop_header_branch
      %21 = sbr.rel (%p19) target = $region8
    $region5: #{lenet_forward.1} parent=1 // loop_body
      %s23 = ssub.s32 %s18, 1
      %s24 = ssub.s32 %s18, 2
      %s25 = sadd.s32 %s18, 1
      %s26 = ssub.s32 %s18, %s25
      %p27 = scmp.eq.s32.totalorder %s26, 0
      %s29 = sadd.s32 %s28, 1
      %s30 = scalar_select %p27, %s28, %s29
      %p33 = pneg %p27
      %p34 = scmp.eq.s32.totalorder %s18, 1
      %p35 = por %p33, %p34
      %p36 = scmp.ne.s32.totalorder %s28, %s31
      %p37 = scmp.eq.s32.totalorder %s18, 0
      %p38 = por %p36, %p37
      %p39 = scmp.ne.s32.totalorder %s28, %s31
      %p40 = scmp.eq.s32.totalorder %s23, 1
      %p41 = por %p39, %p40
      %p42 = scmp.ne.s32.totalorder %s31, %s32
      %p43 = scmp.eq.s32.totalorder %s23, 0
      %p44 = por %p42, %p43
      %p45 = scmp.ne.s32.totalorder %s31, %s32
      %p46 = scmp.eq.s32.totalorder %s24, 1
      %p47 = por %p45, %p46
      %p49 = scmp.ne.s32.totalorder %s32, %s48
      %p50 = scmp.eq.s32.totalorder %s24, 0
      %p51 = por %p49, %p50
      %s53 = sadd.s32 %s52, 1
      %p56 = scmp.eq.s32.totalorder %s18, 1
      %p57 = scmp.ne.s32.totalorder %s52, %s54
      %p58 = scmp.eq.s32.totalorder %s18, 0
      %p59 = por %p57, %p58
      %p60 = scmp.ne.s32.totalorder %s52, %s54
      %p61 = scmp.eq.s32.totalorder %s23, 1
      %p62 = por %p60, %p61
      %p63 = scmp.ne.s32.totalorder %s54, %s55
      %p64 = scmp.eq.s32.totalorder %s23, 0
      %p65 = por %p63, %p64
      %p66 = scmp.ne.s32.totalorder %s54, %s55
      %p67 = scmp.eq.s32.totalorder %s24, 1
      %p68 = por %p66, %p67
      %p70 = scmp.ne.s32.totalorder %s55, %s69
      %p71 = scmp.eq.s32.totalorder %s24, 0
      %p72 = por %p70, %p71
      %s74 = sadd.s32 %s73, 1
      %p77 = scmp.eq.s32.totalorder %s18, 1
      %p78 = scmp.ne.s32.totalorder %s73, %s75
      %p79 = scmp.eq.s32.totalorder %s18, 0
      %p80 = por %p78, %p79
      %p81 = scmp.ne.s32.totalorder %s73, %s75
      %p82 = scmp.eq.s32.totalorder %s23, 1
      %p83 = por %p81, %p82
      %p84 = scmp.ne.s32.totalorder %s75, %s76
      %p85 = scmp.eq.s32.totalorder %s23, 0
      %p86 = por %p84, %p85
      %p87 = scmp.ne.s32.totalorder %s75, %s76
      %p88 = scmp.eq.s32.totalorder %s24, 1
      %p89 = por %p87, %p88
      %p91 = scmp.ne.s32.totalorder %s76, %s90
      %p92 = scmp.eq.s32.totalorder %s24, 0
      %p93 = por %p91, %p92
      %s95 = sadd.s32 %s94, 1
      %p98 = scmp.eq.s32.totalorder %s18, 1
      %p99 = scmp.ne.s32.totalorder %s94, %s96
      %p100 = scmp.eq.s32.totalorder %s18, 0
      %p101 = por %p99, %p100
      %p102 = scmp.ne.s32.totalorder %s94, %s96
      %p103 = scmp.eq.s32.totalorder %s23, 1
      %p104 = por %p102, %p103
      %p105 = scmp.ne.s32.totalorder %s96, %s97
      %p106 = scmp.eq.s32.totalorder %s23, 0
      %p107 = por %p105, %p106
      %p108 = scmp.ne.s32.totalorder %s96, %s97
      %p109 = scmp.eq.s32.totalorder %s24, 1
      %p110 = por %p108, %p109
      %p112 = scmp.ne.s32.totalorder %s97, %s111
      %p113 = scmp.eq.s32.totalorder %s24, 0
      %p114 = por %p112, %p113
      %s116 = sadd.s32 %s115, 1
      %p119 = scmp.eq.s32.totalorder %s18, 1
      %p120 = scmp.ne.s32.totalorder %s115, %s117
      %p121 = scmp.eq.s32.totalorder %s18, 0
      %p122 = por %p120, %p121
      %p123 = scmp.ne.s32.totalorder %s115, %s117
      %p124 = scmp.eq.s32.totalorder %s23, 1
      %p125 = por %p123, %p124
      %p126 = scmp.ne.s32.totalorder %s117, %s118
      %p127 = scmp.eq.s32.totalorder %s23, 0
      %p128 = por %p126, %p127
      %p129 = scmp.ne.s32.totalorder %s117, %s118
      %p130 = scmp.eq.s32.totalorder %s24, 1
      %p131 = por %p129, %p130
      %p133 = scmp.ne.s32.totalorder %s118, %s132
      %p134 = scmp.eq.s32.totalorder %s24, 0
      %p135 = por %p133, %p134
      %s137 = sadd.s32 %s136, 1
      %p140 = scmp.eq.s32.totalorder %s18, 1
      %p141 = scmp.ne.s32.totalorder %s136, %s138
      %p142 = scmp.eq.s32.totalorder %s18, 0
      %p143 = por %p141, %p142
      %p144 = scmp.ne.s32.totalorder %s136, %s138
      %p145 = scmp.eq.s32.totalorder %s23, 1
      %p146 = por %p144, %p145
      %p147 = scmp.ne.s32.totalorder %s138, %s139
      %p148 = scmp.eq.s32.totalorder %s23, 0
      %p149 = por %p147, %p148
      %p150 = scmp.ne.s32.totalorder %s138, %s139
      %p151 = scmp.eq.s32.totalorder %s24, 1
      %p152 = por %p150, %p151
      %p154 = scmp.ne.s32.totalorder %s139, %s153
      %p155 = scmp.eq.s32.totalorder %s24, 0
      %p156 = por %p154, %p155
      %s158 = sadd.s32 %s157, 1
      %p161 = scmp.eq.s32.totalorder %s18, 1
      %p162 = scmp.ne.s32.totalorder %s157, %s159
      %p163 = scmp.eq.s32.totalorder %s18, 0
      %p164 = por %p162, %p163
      %p165 = scmp.ne.s32.totalorder %s157, %s159
      %p166 = scmp.eq.s32.totalorder %s23, 1
      %p167 = por %p165, %p166
      %p168 = scmp.ne.s32.totalorder %s159, %s160
      %p169 = scmp.eq.s32.totalorder %s23, 0
      %p170 = por %p168, %p169
      %p171 = scmp.ne.s32.totalorder %s159, %s160
      %p172 = scmp.eq.s32.totalorder %s24, 1
      %p173 = por %p171, %p172
      %p175 = scmp.ne.s32.totalorder %s160, %s174
      %p176 = scmp.eq.s32.totalorder %s24, 0
      %p177 = por %p175, %p176
      %s179 = sadd.s32 %s178, 1
      %p182 = scmp.eq.s32.totalorder %s18, 1
      %p183 = scmp.ne.s32.totalorder %s178, %s180
      %p184 = scmp.eq.s32.totalorder %s18, 0
      %p185 = por %p183, %p184
      %p186 = scmp.ne.s32.totalorder %s178, %s180
      %p187 = scmp.eq.s32.totalorder %s23, 1
      %p188 = por %p186, %p187
      %p189 = scmp.ne.s32.totalorder %s180, %s181
      %p190 = scmp.eq.s32.totalorder %s23, 0
      %p191 = por %p189, %p190
      %p192 = scmp.ne.s32.totalorder %s180, %s181
      %p193 = scmp.eq.s32.totalorder %s24, 1
      %p194 = por %p192, %p193
      %p196 = scmp.ne.s32.totalorder %s181, %s195
      %p197 = scmp.eq.s32.totalorder %s24, 0
      %p198 = por %p196, %p197
      %s200 = sadd.s32 %s199, 1
      %p203 = scmp.eq.s32.totalorder %s18, 1
      %p204 = scmp.ne.s32.totalorder %s199, %s201
      %p205 = scmp.eq.s32.totalorder %s18, 0
      %p206 = por %p204, %p205
      %p207 = scmp.ne.s32.totalorder %s199, %s201
      %p208 = scmp.eq.s32.totalorder %s23, 1
      %p209 = por %p207, %p208
      %p210 = scmp.ne.s32.totalorder %s201, %s202
      %p211 = scmp.eq.s32.totalorder %s23, 0
      %p212 = por %p210, %p211
      %p213 = scmp.ne.s32.totalorder %s201, %s202
      %p214 = scmp.eq.s32.totalorder %s24, 1
      %p215 = por %p213, %p214
      %p217 = scmp.ne.s32.totalorder %s202, %s216
      %p218 = scmp.eq.s32.totalorder %s24, 0
      %p219 = por %p217, %p218
      %s220 = ssub.s32 %s18, %s25
      %p221 = scmp.eq.s32.totalorder %s220, 0
      %s223 = sadd.s32 %s222, 1
      %s224 = scalar_select %p221, %s222, %s223
      %p227 = pneg %p221
      %p228 = scmp.eq.s32.totalorder %s18, 1
      %p229 = por %p227, %p228
      %p230 = scmp.ne.s32.totalorder %s222, %s225
      %p231 = scmp.eq.s32.totalorder %s18, 0
      %p232 = por %p230, %p231
      %p233 = scmp.ne.s32.totalorder %s222, %s225
      %p234 = scmp.eq.s32.totalorder %s23, 1
      %p235 = por %p233, %p234
      %p236 = scmp.ne.s32.totalorder %s225, %s226
      %p237 = scmp.eq.s32.totalorder %s23, 0
      %p238 = por %p236, %p237
      %p239 = scmp.ne.s32.totalorder %s225, %s226
      %p240 = scmp.eq.s32.totalorder %s24, 1
      %p241 = por %p239, %p240
      %p243 = scmp.ne.s32.totalorder %s226, %s242
      %p244 = scmp.eq.s32.totalorder %s24, 0
      %p245 = por %p243, %p244
      %p246 = scmp.le.s32.totalorder 1, %s18
      %p247 = scmp.lt.s32.totalorder %s18, 3
      %p248 = pnand %p246, %p247
      %p249 = pneg %p248
      // Predicated region
      $region9: #{lenet_forward.1} parent=5 // pred_check
        _
      $region10: #{lenet_forward.1} parent=5 // pred_check_branch
        %251 = sbr.rel (%p248) target = $region12
      $region11: #{lenet_forward.1} parent=5 // pred_region
        %s252 = ssub.s32 %s18, 1
        // Predicated region
        $region13: #{lenet_forward.1} parent=11 // pred_check
          %p253 = pneg %p65
        $region14: #{lenet_forward.1} parent=11 // pred_check_branch
          %255 = sbr.rel (%p253) target = $region16
        $region15: #{lenet_forward.1} parent=11 // pred_region
          _
        $region16: #{lenet_forward.1} parent=11 // pred_fallthru
          _
        // Predicated region
        $region17: #{lenet_forward.1} parent=11 // pred_check
          %p256 = pneg %p86
        $region18: #{lenet_forward.1} parent=11 // pred_check_branch
          %258 = sbr.rel (%p256) target = $region20
        $region19: #{lenet_forward.1} parent=11 // pred_region
          _
        $region20: #{lenet_forward.1} parent=11 // pred_fallthru
          _
        // Predicated region
        $region21: #{lenet_forward.1} parent=11 // pred_check
          %p259 = pneg %p107
        $region22: #{lenet_forward.1} parent=11 // pred_check_branch
          %261 = sbr.rel (%p259) target = $region24
        $region23: #{lenet_forward.1} parent=11 // pred_region
          _
        $region24: #{lenet_forward.1} parent=11 // pred_fallthru
          _
        // Predicated region
        $region25: #{lenet_forward.1} parent=11 // pred_check
          %p262 = pneg %p128
        $region26: #{lenet_forward.1} parent=11 // pred_check_branch
          %264 = sbr.rel (%p262) target = $region28
        $region27: #{lenet_forward.1} parent=11 // pred_region
          _
        $region28: #{lenet_forward.1} parent=11 // pred_fallthru
          _
        // Predicated region
        $region29: #{lenet_forward.1} parent=11 // pred_check
          %p265 = pneg %p149
        $region30: #{lenet_forward.1} parent=11 // pred_check_branch
          %267 = sbr.rel (%p265) target = $region32
        $region31: #{lenet_forward.1} parent=11 // pred_region
          _
        $region32: #{lenet_forward.1} parent=11 // pred_fallthru
          _
        // Predicated region
        $region33: #{lenet_forward.1} parent=11 // pred_check
          %p268 = pneg %p170
        $region34: #{lenet_forward.1} parent=11 // pred_check_branch
          %270 = sbr.rel (%p268) target = $region36
        $region35: #{lenet_forward.1} parent=11 // pred_region
          _
        $region36: #{lenet_forward.1} parent=11 // pred_fallthru
          _
        // Predicated region
        $region37: #{lenet_forward.1} parent=11 // pred_check
          %p271 = pneg %p191
        $region38: #{lenet_forward.1} parent=11 // pred_check_branch
          %273 = sbr.rel (%p271) target = $region40
        $region39: #{lenet_forward.1} parent=11 // pred_region
          _
        $region40: #{lenet_forward.1} parent=11 // pred_fallthru
          _
        // Predicated region
        $region41: #{lenet_forward.1} parent=11 // pred_check
          %p274 = pneg %p212
        $region42: #{lenet_forward.1} parent=11 // pred_check_branch
          %276 = sbr.rel (%p274) target = $region44
        $region43: #{lenet_forward.1} parent=11 // pred_region
          _
        $region44: #{lenet_forward.1} parent=11 // pred_fallthru
          _
      $region12: #{lenet_forward.1} parent=5 // pred_fallthru
        _
      %p277 = scmp.lt.s32.totalorder %s18, 2
      // Predicated region
      $region45: #{lenet_forward.1} parent=5 // pred_check
        %p278 = pneg %p277
      $region46: #{lenet_forward.1} parent=5 // pred_check_branch
        %280 = sbr.rel (%p278) target = $region48
      $region47: #{lenet_forward.1} parent=5 // pred_region
        // Predicated region
        $region49: #{lenet_forward.1} parent=47 // pred_check
          %p281 = pneg %p38
        $region50: #{lenet_forward.1} parent=47 // pred_check_branch
          %283 = sbr.rel (%p281) target = $region52
        $region51: #{lenet_forward.1} parent=47 // pred_region
          %p284 = scmp.lt.s32.totalorder %s18, 1
          %s285 = scalar_select %p284, %s18, 1
          %s286 = smul.addr %s285, 48
          %s287 = smul.addr %s286, 8
          %s288 = scalar_lea.vmem %s0, %s287
        $region52: #{lenet_forward.1} parent=47 // pred_fallthru
          _
      $region48: #{lenet_forward.1} parent=5 // pred_fallthru
        _
      %p289 = scmp.le.s32.totalorder 1, %s18
      %p290 = scmp.lt.s32.totalorder %s18, 3
      %p291 = pnand %p289, %p290
      %p292 = pneg %p291
      // Predicated region
      $region53: #{lenet_forward.1} parent=5 // pred_check
        _
      $region54: #{lenet_forward.1} parent=5 // pred_check_branch
        %294 = sbr.rel (%p291) target = $region56
      $region55: #{lenet_forward.1} parent=5 // pred_region
        %s295 = ssub.s32 %s18, 1
        %p296 = scmp.lt.s32.totalorder %s23, 1
        %s297 = scalar_select %p296, %s23, 1
        %s298 = smul.addr %s297, 48
        %s299 = smul.addr %s298, 8
        %s300 = scalar_lea.vmem %s0, %s299
        %p301 = pneg %p44
        %p302 = pneg %p41
        %p303 = pneg %p65
        %p304 = pneg %p62
        %p305 = pneg %p86
        %p306 = pneg %p83
        %p307 = pneg %p107
        %p308 = pneg %p104
        %p309 = pneg %p128
        %p310 = pneg %p125
        %p311 = pneg %p149
        %p312 = pneg %p146
        %p313 = pneg %p170
        %p314 = pneg %p167
        %p315 = pneg %p191
        %p316 = pneg %p188
        %p317 = pneg %p212
        %p318 = pneg %p209
        %p319 = pneg %p238
        %p320 = pneg %p235
        %s321 = sand.u32 %s225, 1
        %s322 = scalar_lea.sflag [#allocation6], %s321
        %s323 = sand.u32 %s225, 1
        %s324 = scalar_lea.vmem [#allocation5], %s323
        %p325 = scmp.lt.s32.totalorder %s23, 1
        %s326 = scalar_select %p325, %s23, 1
        %s327 = smul.addr %s326, 48
        %s328 = smul.addr %s327, 8
        %s329 = scalar_lea.vmem %s0, %s328
        %v331 = vld [vmem:[%s1] sm:$0xff]
        %v332 = vld [vmem:[%s1 + $0x8] sm:$0xff]
        %v333 = vld [vmem:[%s1 + $0x10] sm:$0xff]
        %v334 = vld [vmem:[%s1 + $0x18] sm:$0xff]
        %v335 = vld [vmem:[%s1 + $0x20] sm:$0xff]
        %v336 = vld [vmem:[%s1 + $0x28] sm:$0xff]
        %v337 = vld [vmem:[%s1 + $0x30] sm:$0xff]
        %v338 = vld [vmem:[%s1 + $0x38] sm:$0xff]
        %v339 = vld [vmem:[%s1 + $0x40] sm:$0x1]
        %v340 = vld [vmem:[%s329] sm:$0xff]
        %v341 = vld [vmem:[%s329 + $0x8] sm:$0xff]
        %v342 = vld [vmem:[%s329 + $0x10] sm:$0xff]
        %v343 = vld [vmem:[%s329 + $0x18] sm:$0xff]
        %v344 = vld [vmem:[%s329 + $0x20] sm:$0xff]
        %v345 = vld [vmem:[%s329 + $0x28] sm:$0xff]
        %v346 = vld [vmem:[%s329 + $0x30] sm:$0xff]
        %v347 = vld [vmem:[%s329 + $0x38] sm:$0xff]
        %v348 = vld [vmem:[%s329 + $0x40] sm:$0xff]
        %v349 = vld [vmem:[%s329 + $0x48] sm:$0xff]
        %v350 = vld [vmem:[%s329 + $0x50] sm:$0xff]
        %v351 = vld [vmem:[%s329 + $0x58] sm:$0xff]
        %vm352 = vcmask 531456
        %v354 = vsel %vm352, %v340, 0
        %v357 = vsel %vm352, %v341, 0
        %v360 = vsel %vm352, %v342, 0
        %v363 = vsel %vm352, %v343, 0
        %v366 = vsel %vm352, %v344, 0
        %v369 = vsel %vm352, %v345, 0
        %v372 = vsel %vm352, %v346, 0
        %v375 = vsel %vm352, %v347, 0
        %v378 = vsel %vm352, %v348, 0
        %v381 = vsel %vm352, %v349, 0
        %v384 = vsel %vm352, %v350, 0
        %v387 = vsel %vm352, %v351, 0
        %vm389 = vcmask 1040384
        %v391 = vsel %vm389, %v339, 0
        %393 = vmatprep.subr.mxu0 0.0
        %394 = vmatpush1.msra.mxu0 0.0
        %395 = vmatprep.subr.mxu0 0.0
        %396 = vmatpush1.msra.mxu0 0.0
        %397 = vmatprep.subr.mxu0 0.0
        %398 = vmatpush1.msra.mxu0 0.0
        %399 = vmatprep.subr.mxu0 0.0
        %400 = vmatpush1.msra.mxu0 0.0
        %401 = vmatprep.subr.mxu0 0.0
        %402 = vmatpush1.msra.mxu0 0.0
        %403 = vmatprep.subr.mxu0 0.0
        %404 = vmatpush1.msra.mxu0 0.0
        %405 = vmatprep.subr.mxu0 0.0
        %406 = vmatpush1.msra.mxu0 0.0
        %407 = vmatprep.subr.mxu0 0.0
        %408 = vmatpush1.msra.mxu0 %v391
        %409 = vmatprep.subr.mxu0 0.0
        %410 = vmatpush1.msra.mxu0 %v338
        %411 = vmatprep.subr.mxu0 0.0
        %412 = vmatpush1.msra.mxu0 %v337
        %413 = vmatprep.subr.mxu0 0.0
        %414 = vmatpush1.msra.mxu0 %v336
        %415 = vmatprep.subr.mxu0 0.0
        %416 = vmatpush1.msra.mxu0 %v335
        %417 = vmatprep.subr.mxu0 0.0
        %418 = vmatpush1.msra.mxu0 %v334
        %419 = vmatprep.subr.mxu0 0.0
        %420 = vmatpush1.msra.mxu0 %v333
        %421 = vmatprep.subr.mxu0 0.0
        %422 = vmatpush1.msra.mxu0 %v332
        %423 = vmatprep.subr.mxu0 0.0
        %424 = vmatpush1.msra.mxu0 %v331
        %425 = vmatprep.subr.mxu0 0.0
        %426 = vmatpush2.msra.mxu0 0.0
        %427 = vmatprep.subr.mxu0 0.0
        %428 = vmatpush2.msra.mxu0 0.0
        %429 = vmatprep.subr.mxu0 0.0
        %430 = vmatpush2.msra.mxu0 0.0
        %431 = vmatprep.subr.mxu0 0.0
        %432 = vmatpush2.msra.mxu0 0.0
        %433 = vmatprep.subr.mxu0 0.0
        %434 = vmatpush2.msra.mxu0 0.0
        %435 = vmatprep.subr.mxu0 0.0
        %436 = vmatpush2.msra.mxu0 0.0
        %437 = vmatprep.subr.mxu0 0.0
        %438 = vmatpush2.msra.mxu0 0.0
        %439 = vmatprep.subr.mxu0 0.0
        %440 = vmatpush2.msra.mxu0 0.0
        %441 = vmatprep.subr.mxu0 0.0
        %442 = vmatpush2.msra.mxu0 0.0
        %443 = vmatprep.subr.mxu0 0.0
        %444 = vmatpush2.msra.mxu0 0.0
        %445 = vmatprep.subr.mxu0 0.0
        %446 = vmatpush2.msra.mxu0 0.0
        %447 = vmatprep.subr.mxu0 0.0
        %448 = vmatpush2.msra.mxu0 0.0
        %449 = vmatprep.subr.mxu0 0.0
        %450 = vmatpush2.msra.mxu0 0.0
        %451 = vmatprep.subr.mxu0 0.0
        %452 = vmatpush2.msra.mxu0 0.0
        %453 = vmatprep.subr.mxu0 0.0
        %454 = vmatpush2.msra.mxu0 0.0
        %455 = vmatprep.subr.mxu0 0.0
        %456 = vmatpush2.msra.mxu0 0.0
        %457 = vmatprep.mubr.f32.mxu0 0.0
        %458 = vmatmul.mubr.f32.gmra.mxu0 %v354
        %v459 = vpop.f32.mrf.mxu0
        %v460 = vadd.f32 0.0, %v459
        %v461 = vpop.f32.mrf.mxu0
        %462 = vmatprep.mubr.f32.mxu0 0.0
        %463 = vmatmul.mubr.f32.gmra.mxu0 %v357
        %v464 = vpop.f32.mrf.mxu0
        %v465 = vadd.f32 0.0, %v464
        %v466 = vpop.f32.mrf.mxu0
        %467 = vmatprep.mubr.f32.mxu0 0.0
        %468 = vmatmul.mubr.f32.gmra.mxu0 %v360
        %v469 = vpop.f32.mrf.mxu0
        %v470 = vadd.f32 0.0, %v469
        %v471 = vpop.f32.mrf.mxu0
        %472 = vmatprep.mubr.f32.mxu0 0.0
        %473 = vmatmul.mubr.f32.gmra.mxu0 %v363
        %v474 = vpop.f32.mrf.mxu0
        %v475 = vadd.f32 0.0, %v474
        %v476 = vpop.f32.mrf.mxu0
        %477 = vmatprep.mubr.f32.mxu0 0.0
        %478 = vmatmul.mubr.f32.gmra.mxu0 %v366
        %v479 = vpop.f32.mrf.mxu0
        %v480 = vadd.f32 0.0, %v479
        %v481 = vpop.f32.mrf.mxu0
        %482 = vmatprep.mubr.f32.mxu0 0.0
        %483 = vmatmul.mubr.f32.gmra.mxu0 %v369
        %v484 = vpop.f32.mrf.mxu0
        %v485 = vadd.f32 0.0, %v484
        %v486 = vpop.f32.mrf.mxu0
        %487 = vmatprep.mubr.f32.mxu0 0.0
        %488 = vmatmul.mubr.f32.gmra.mxu0 %v372
        %v489 = vpop.f32.mrf.mxu0
        %v490 = vadd.f32 0.0, %v489
        %v491 = vpop.f32.mrf.mxu0
        %492 = vmatprep.mubr.f32.mxu0 0.0
        %493 = vmatmul.mubr.f32.gmra.mxu0 %v375
        %v494 = vpop.f32.mrf.mxu0
        %v495 = vadd.f32 0.0, %v494
        %v496 = vpop.f32.mrf.mxu0
        %497 = vmatprep.mubr.f32.mxu0 0.0
        %498 = vmatmul.mubr.f32.gmra.mxu0 %v378
        %v499 = vpop.f32.mrf.mxu0
        %v500 = vadd.f32 0.0, %v499
        %v501 = vpop.f32.mrf.mxu0
        %502 = vmatprep.mubr.f32.mxu0 0.0
        %503 = vmatmul.mubr.f32.gmra.mxu0 %v381
        %v504 = vpop.f32.mrf.mxu0
        %v505 = vadd.f32 0.0, %v504
        %v506 = vpop.f32.mrf.mxu0
        %507 = vmatprep.mubr.f32.mxu0 0.0
        %508 = vmatmul.mubr.f32.gmra.mxu0 %v384
        %v509 = vpop.f32.mrf.mxu0
        %v510 = vadd.f32 0.0, %v509
        %v511 = vpop.f32.mrf.mxu0
        %512 = vmatprep.mubr.f32.mxu0 0.0
        %513 = vmatmul.mubr.f32.gmra.mxu0 %v387
        %v514 = vpop.f32.mrf.mxu0
        %v515 = vadd.f32 0.0, %v514
        %v516 = vpop.f32.mrf.mxu0
        %517 = vdwg.mxu0
        %s518 = scalar_lea.vmem %s329, 96
        %v519 = vld [vmem:[%s518] sm:$0xff]
        %v520 = vld [vmem:[%s518 + $0x8] sm:$0xff]
        %v521 = vld [vmem:[%s518 + $0x10] sm:$0xff]
        %v522 = vld [vmem:[%s518 + $0x18] sm:$0xff]
        %v523 = vld [vmem:[%s518 + $0x20] sm:$0xff]
        %v524 = vld [vmem:[%s518 + $0x28] sm:$0xff]
        %v525 = vld [vmem:[%s518 + $0x30] sm:$0xff]
        %v526 = vld [vmem:[%s518 + $0x38] sm:$0xff]
        %v527 = vld [vmem:[%s518 + $0x40] sm:$0xff]
        %v528 = vld [vmem:[%s518 + $0x48] sm:$0xff]
        %v529 = vld [vmem:[%s518 + $0x50] sm:$0xff]
        %v530 = vld [vmem:[%s518 + $0x58] sm:$0xff]
        %v532 = vsel %vm352, %v519, 0
        %v535 = vsel %vm352, %v520, 0
        %v538 = vsel %vm352, %v521, 0
        %v541 = vsel %vm352, %v522, 0
        %v544 = vsel %vm352, %v523, 0
        %v547 = vsel %vm352, %v524, 0
        %v550 = vsel %vm352, %v525, 0
        %v553 = vsel %vm352, %v526, 0
        %v556 = vsel %vm352, %v527, 0
        %v559 = vsel %vm352, %v528, 0
        %v562 = vsel %vm352, %v529, 0
        %v565 = vsel %vm352, %v530, 0
        %567 = vmatprep.subr.mxu0 0.0
        %568 = vmatpush1.msra.mxu0 0.0
        %569 = vmatprep.subr.mxu0 0.0
        %570 = vmatpush1.msra.mxu0 0.0
        %571 = vmatprep.subr.mxu0 0.0
        %572 = vmatpush1.msra.mxu0 0.0
        %573 = vmatprep.subr.mxu0 0.0
        %574 = vmatpush1.msra.mxu0 0.0
        %575 = vmatprep.subr.mxu0 0.0
        %576 = vmatpush1.msra.mxu0 0.0
        %577 = vmatprep.subr.mxu0 0.0
        %578 = vmatpush1.msra.mxu0 0.0
        %579 = vmatprep.subr.mxu0 0.0
        %580 = vmatpush1.msra.mxu0 0.0
        %581 = vmatprep.subr.mxu0 0.0
        %582 = vmatpush1.msra.mxu0 %v391
        %583 = vmatprep.subr.mxu0 0.0
        %584 = vmatpush1.msra.mxu0 %v338
        %585 = vmatprep.subr.mxu0 0.0
        %586 = vmatpush1.msra.mxu0 %v337
        %587 = vmatprep.subr.mxu0 0.0
        %588 = vmatpush1.msra.mxu0 %v336
        %589 = vmatprep.subr.mxu0 0.0
        %590 = vmatpush1.msra.mxu0 %v335
        %591 = vmatprep.subr.mxu0 0.0
        %592 = vmatpush1.msra.mxu0 %v334
        %593 = vmatprep.subr.mxu0 0.0
        %594 = vmatpush1.msra.mxu0 %v333
        %595 = vmatprep.subr.mxu0 0.0
        %596 = vmatpush1.msra.mxu0 %v332
        %597 = vmatprep.subr.mxu0 0.0
        %598 = vmatpush1.msra.mxu0 %v331
        %599 = vmatprep.subr.mxu0 0.0
        %600 = vmatpush2.msra.mxu0 0.0
        %601 = vmatprep.subr.mxu0 0.0
        %602 = vmatpush2.msra.mxu0 0.0
        %603 = vmatprep.subr.mxu0 0.0
        %604 = vmatpush2.msra.mxu0 0.0
        %605 = vmatprep.subr.mxu0 0.0
        %606 = vmatpush2.msra.mxu0 0.0
        %607 = vmatprep.subr.mxu0 0.0
        %608 = vmatpush2.msra.mxu0 0.0
        %609 = vmatprep.subr.mxu0 0.0
        %610 = vmatpush2.msra.mxu0 0.0
        %611 = vmatprep.subr.mxu0 0.0
        %612 = vmatpush2.msra.mxu0 0.0
        %613 = vmatprep.subr.mxu0 0.0
        %614 = vmatpush2.msra.mxu0 0.0
        %615 = vmatprep.subr.mxu0 0.0
        %616 = vmatpush2.msra.mxu0 0.0
        %617 = vmatprep.subr.mxu0 0.0
        %618 = vmatpush2.msra.mxu0 0.0
        %619 = vmatprep.subr.mxu0 0.0
        %620 = vmatpush2.msra.mxu0 0.0
        %621 = vmatprep.subr.mxu0 0.0
        %622 = vmatpush2.msra.mxu0 0.0
        %623 = vmatprep.subr.mxu0 0.0
        %624 = vmatpush2.msra.mxu0 0.0
        %625 = vmatprep.subr.mxu0 0.0
        %626 = vmatpush2.msra.mxu0 0.0
        %627 = vmatprep.subr.mxu0 0.0
        %628 = vmatpush2.msra.mxu0 0.0
        %629 = vmatprep.subr.mxu0 0.0
        %630 = vmatpush2.msra.mxu0 0.0
        %631 = vmatprep.mubr.f32.mxu0 0.0
        %632 = vmatmul.mubr.f32.gmra.mxu0 %v532
        %v633 = vpop.f32.mrf.mxu0
        %v634 = vadd.f32 0.0, %v633
        %v635 = vpop.f32.mrf.mxu0
        %636 = vmatprep.mubr.f32.mxu0 0.0
        %637 = vmatmul.mubr.f32.gmra.mxu0 %v535
        %v638 = vpop.f32.mrf.mxu0
        %v639 = vadd.f32 0.0, %v638
        %v640 = vpop.f32.mrf.mxu0
        %641 = vmatprep.mubr.f32.mxu0 0.0
        %642 = vmatmul.mubr.f32.gmra.mxu0 %v538
        %v643 = vpop.f32.mrf.mxu0
        %v644 = vadd.f32 0.0, %v643
        %v645 = vpop.f32.mrf.mxu0
        %646 = vmatprep.mubr.f32.mxu0 0.0
        %647 = vmatmul.mubr.f32.gmra.mxu0 %v541
        %v648 = vpop.f32.mrf.mxu0
        %v649 = vadd.f32 0.0, %v648
        %v650 = vpop.f32.mrf.mxu0
        %651 = vmatprep.mubr.f32.mxu0 0.0
        %652 = vmatmul.mubr.f32.gmra.mxu0 %v544
        %v653 = vpop.f32.mrf.mxu0
        %v654 = vadd.f32 0.0, %v653
        %v655 = vpop.f32.mrf.mxu0
        %656 = vmatprep.mubr.f32.mxu0 0.0
        %657 = vmatmul.mubr.f32.gmra.mxu0 %v547
        %v658 = vpop.f32.mrf.mxu0
        %v659 = vadd.f32 0.0, %v658
        %v660 = vpop.f32.mrf.mxu0
        %661 = vmatprep.mubr.f32.mxu0 0.0
        %662 = vmatmul.mubr.f32.gmra.mxu0 %v550
        %v663 = vpop.f32.mrf.mxu0
        %v664 = vadd.f32 0.0, %v663
        %v665 = vpop.f32.mrf.mxu0
        %666 = vmatprep.mubr.f32.mxu0 0.0
        %667 = vmatmul.mubr.f32.gmra.mxu0 %v553
        %v668 = vpop.f32.mrf.mxu0
        %v669 = vadd.f32 0.0, %v668
        %v670 = vpop.f32.mrf.mxu0
        %671 = vmatprep.mubr.f32.mxu0 0.0
        %672 = vmatmul.mubr.f32.gmra.mxu0 %v556
        %v673 = vpop.f32.mrf.mxu0
        %v674 = vadd.f32 0.0, %v673
        %v675 = vpop.f32.mrf.mxu0
        %676 = vmatprep.mubr.f32.mxu0 0.0
        %677 = vmatmul.mubr.f32.gmra.mxu0 %v559
        %v678 = vpop.f32.mrf.mxu0
        %v679 = vadd.f32 0.0, %v678
        %v680 = vpop.f32.mrf.mxu0
        %681 = vmatprep.mubr.f32.mxu0 0.0
        %682 = vmatmul.mubr.f32.gmra.mxu0 %v562
        %v683 = vpop.f32.mrf.mxu0
        %v684 = vadd.f32 0.0, %v683
        %v685 = vpop.f32.mrf.mxu0
        %686 = vmatprep.mubr.f32.mxu0 0.0
        %687 = vmatmul.mubr.f32.gmra.mxu0 %v565
        %v688 = vpop.f32.mrf.mxu0
        %v689 = vadd.f32 0.0, %v688
        %v690 = vpop.f32.mrf.mxu0
        %691 = vdwg.mxu0
        %v692 = vmax.f32 %v460, %v634
        %v693 = vmax.f32 %v465, %v639
        %v694 = vmax.f32 %v470, %v644
        %v695 = vmax.f32 %v475, %v649
        %v696 = vmax.f32 %v480, %v654
        %v697 = vmax.f32 %v485, %v659
        %v698 = vmax.f32 %v490, %v664
        %v699 = vmax.f32 %v495, %v669
        %v700 = vmax.f32 %v500, %v674
        %v701 = vmax.f32 %v505, %v679
        %v702 = vmax.f32 %v510, %v684
        %v703 = vmax.f32 %v515, %v689
        %s704 = scalar_lea.vmem %s329, 192
        %v705 = vld [vmem:[%s704] sm:$0xff]
        %v706 = vld [vmem:[%s704 + $0x8] sm:$0xff]
        %v707 = vld [vmem:[%s704 + $0x10] sm:$0xff]
        %v708 = vld [vmem:[%s704 + $0x18] sm:$0xff]
        %v709 = vld [vmem:[%s704 + $0x20] sm:$0xff]
        %v710 = vld [vmem:[%s704 + $0x28] sm:$0xff]
        %v711 = vld [vmem:[%s704 + $0x30] sm:$0xff]
        %v712 = vld [vmem:[%s704 + $0x38] sm:$0xff]
        %v713 = vld [vmem:[%s704 + $0x40] sm:$0xff]
        %v714 = vld [vmem:[%s704 + $0x48] sm:$0xff]
        %v715 = vld [vmem:[%s704 + $0x50] sm:$0xff]
        %v716 = vld [vmem:[%s704 + $0x58] sm:$0xff]
        %v718 = vsel %vm352, %v705, 0
        %v721 = vsel %vm352, %v706, 0
        %v724 = vsel %vm352, %v707, 0
        %v727 = vsel %vm352, %v708, 0
        %v730 = vsel %vm352, %v709, 0
        %v733 = vsel %vm352, %v710, 0
        %v736 = vsel %vm352, %v711, 0
        %v739 = vsel %vm352, %v712, 0
        %v742 = vsel %vm352, %v713, 0
        %v745 = vsel %vm352, %v714, 0
        %v748 = vsel %vm352, %v715, 0
        %v751 = vsel %vm352, %v716, 0
        %753 = vmatprep.subr.mxu0 0.0
        %754 = vmatpush1.msra.mxu0 0.0
        %755 = vmatprep.subr.mxu0 0.0
        %756 = vmatpush1.msra.mxu0 0.0
        %757 = vmatprep.subr.mxu0 0.0
        %758 = vmatpush1.msra.mxu0 0.0
        %759 = vmatprep.subr.mxu0 0.0
        %760 = vmatpush1.msra.mxu0 0.0
        %761 = vmatprep.subr.mxu0 0.0
        %762 = vmatpush1.msra.mxu0 0.0
        %763 = vmatprep.subr.mxu0 0.0
        %764 = vmatpush1.msra.mxu0 0.0
        %765 = vmatprep.subr.mxu0 0.0
        %766 = vmatpush1.msra.mxu0 0.0
        %767 = vmatprep.subr.mxu0 0.0
        %768 = vmatpush1.msra.mxu0 %v391
        %769 = vmatprep.subr.mxu0 0.0
        %770 = vmatpush1.msra.mxu0 %v338
        %771 = vmatprep.subr.mxu0 0.0
        %772 = vmatpush1.msra.mxu0 %v337
        %773 = vmatprep.subr.mxu0 0.0
        %774 = vmatpush1.msra.mxu0 %v336
        %775 = vmatprep.subr.mxu0 0.0
        %776 = vmatpush1.msra.mxu0 %v335
        %777 = vmatprep.subr.mxu0 0.0
        %778 = vmatpush1.msra.mxu0 %v334
        %779 = vmatprep.subr.mxu0 0.0
        %780 = vmatpush1.msra.mxu0 %v333
        %781 = vmatprep.subr.mxu0 0.0
        %782 = vmatpush1.msra.mxu0 %v332
        %783 = vmatprep.subr.mxu0 0.0
        %784 = vmatpush1.msra.mxu0 %v331
        %785 = vmatprep.subr.mxu0 0.0
        %786 = vmatpush2.msra.mxu0 0.0
        %787 = vmatprep.subr.mxu0 0.0
        %788 = vmatpush2.msra.mxu0 0.0
        %789 = vmatprep.subr.mxu0 0.0
        %790 = vmatpush2.msra.mxu0 0.0
        %791 = vmatprep.subr.mxu0 0.0
        %792 = vmatpush2.msra.mxu0 0.0
        %793 = vmatprep.subr.mxu0 0.0
        %794 = vmatpush2.msra.mxu0 0.0
        %795 = vmatprep.subr.mxu0 0.0
        %796 = vmatpush2.msra.mxu0 0.0
        %797 = vmatprep.subr.mxu0 0.0
        %798 = vmatpush2.msra.mxu0 0.0
        %799 = vmatprep.subr.mxu0 0.0
        %800 = vmatpush2.msra.mxu0 0.0
        %801 = vmatprep.subr.mxu0 0.0
        %802 = vmatpush2.msra.mxu0 0.0
        %803 = vmatprep.subr.mxu0 0.0
        %804 = vmatpush2.msra.mxu0 0.0
        %805 = vmatprep.subr.mxu0 0.0
        %806 = vmatpush2.msra.mxu0 0.0
        %807 = vmatprep.subr.mxu0 0.0
        %808 = vmatpush2.msra.mxu0 0.0
        %809 = vmatprep.subr.mxu0 0.0
        %810 = vmatpush2.msra.mxu0 0.0
        %811 = vmatprep.subr.mxu0 0.0
        %812 = vmatpush2.msra.mxu0 0.0
        %813 = vmatprep.subr.mxu0 0.0
        %814 = vmatpush2.msra.mxu0 0.0
        %815 = vmatprep.subr.mxu0 0.0
        %816 = vmatpush2.msra.mxu0 0.0
        %817 = vmatprep.mubr.f32.mxu0 0.0
        %818 = vmatmul.mubr.f32.gmra.mxu0 %v718
        %v819 = vpop.f32.mrf.mxu0
        %v820 = vadd.f32 0.0, %v819
        %v821 = vpop.f32.mrf.mxu0
        %822 = vmatprep.mubr.f32.mxu0 0.0
        %823 = vmatmul.mubr.f32.gmra.mxu0 %v721
        %v824 = vpop.f32.mrf.mxu0
        %v825 = vadd.f32 0.0, %v824
        %v826 = vpop.f32.mrf.mxu0
        %827 = vmatprep.mubr.f32.mxu0 0.0
        %828 = vmatmul.mubr.f32.gmra.mxu0 %v724
        %v829 = vpop.f32.mrf.mxu0
        %v830 = vadd.f32 0.0, %v829
        %v831 = vpop.f32.mrf.mxu0
        %832 = vmatprep.mubr.f32.mxu0 0.0
        %833 = vmatmul.mubr.f32.gmra.mxu0 %v727
        %v834 = vpop.f32.mrf.mxu0
        %v835 = vadd.f32 0.0, %v834
        %v836 = vpop.f32.mrf.mxu0
        %837 = vmatprep.mubr.f32.mxu0 0.0
        %838 = vmatmul.mubr.f32.gmra.mxu0 %v730
        %v839 = vpop.f32.mrf.mxu0
        %v840 = vadd.f32 0.0, %v839
        %v841 = vpop.f32.mrf.mxu0
        %842 = vmatprep.mubr.f32.mxu0 0.0
        %843 = vmatmul.mubr.f32.gmra.mxu0 %v733
        %v844 = vpop.f32.mrf.mxu0
        %v845 = vadd.f32 0.0, %v844
        %v846 = vpop.f32.mrf.mxu0
        %847 = vmatprep.mubr.f32.mxu0 0.0
        %848 = vmatmul.mubr.f32.gmra.mxu0 %v736
        %v849 = vpop.f32.mrf.mxu0
        %v850 = vadd.f32 0.0, %v849
        %v851 = vpop.f32.mrf.mxu0
        %852 = vmatprep.mubr.f32.mxu0 0.0
        %853 = vmatmul.mubr.f32.gmra.mxu0 %v739
        %v854 = vpop.f32.mrf.mxu0
        %v855 = vadd.f32 0.0, %v854
        %v856 = vpop.f32.mrf.mxu0
        %857 = vmatprep.mubr.f32.mxu0 0.0
        %858 = vmatmul.mubr.f32.gmra.mxu0 %v742
        %v859 = vpop.f32.mrf.mxu0
        %v860 = vadd.f32 0.0, %v859
        %v861 = vpop.f32.mrf.mxu0
        %862 = vmatprep.mubr.f32.mxu0 0.0
        %863 = vmatmul.mubr.f32.gmra.mxu0 %v745
        %v864 = vpop.f32.mrf.mxu0
        %v865 = vadd.f32 0.0, %v864
        %v866 = vpop.f32.mrf.mxu0
        %867 = vmatprep.mubr.f32.mxu0 0.0
        %868 = vmatmul.mubr.f32.gmra.mxu0 %v748
        %v869 = vpop.f32.mrf.mxu0
        %v870 = vadd.f32 0.0, %v869
        %v871 = vpop.f32.mrf.mxu0
        %872 = vmatprep.mubr.f32.mxu0 0.0
        %873 = vmatmul.mubr.f32.gmra.mxu0 %v751
        %v874 = vpop.f32.mrf.mxu0
        %v875 = vadd.f32 0.0, %v874
        %v876 = vpop.f32.mrf.mxu0
        %877 = vdwg.mxu0
        %v878 = vmax.f32 %v692, %v820
        %v879 = vmax.f32 %v693, %v825
        %v880 = vmax.f32 %v694, %v830
        %v881 = vmax.f32 %v695, %v835
        %v882 = vmax.f32 %v696, %v840
        %v883 = vmax.f32 %v697, %v845
        %v884 = vmax.f32 %v698, %v850
        %v885 = vmax.f32 %v699, %v855
        %v886 = vmax.f32 %v700, %v860
        %v887 = vmax.f32 %v701, %v865
        %v888 = vmax.f32 %v702, %v870
        %v889 = vmax.f32 %v703, %v875
        %s890 = scalar_lea.vmem %s329, 288
        %v891 = vld [vmem:[%s890] sm:$0xff]
        %v892 = vld [vmem:[%s890 + $0x8] sm:$0xff]
        %v893 = vld [vmem:[%s890 + $0x10] sm:$0xff]
        %v894 = vld [vmem:[%s890 + $0x18] sm:$0xff]
        %v895 = vld [vmem:[%s890 + $0x20] sm:$0xff]
        %v896 = vld [vmem:[%s890 + $0x28] sm:$0xff]
        %v897 = vld [vmem:[%s890 + $0x30] sm:$0xff]
        %v898 = vld [vmem:[%s890 + $0x38] sm:$0xff]
        %v899 = vld [vmem:[%s890 + $0x40] sm:$0xff]
        %v900 = vld [vmem:[%s890 + $0x48] sm:$0xff]
        %v901 = vld [vmem:[%s890 + $0x50] sm:$0xff]
        %v902 = vld [vmem:[%s890 + $0x58] sm:$0xff]
        %v904 = vsel %vm352, %v891, 0
        %v907 = vsel %vm352, %v892, 0
        %v910 = vsel %vm352, %v893, 0
        %v913 = vsel %vm352, %v894, 0
        %v916 = vsel %vm352, %v895, 0
        %v919 = vsel %vm352, %v896, 0
        %v922 = vsel %vm352, %v897, 0
        %v925 = vsel %vm352, %v898, 0
        %v928 = vsel %vm352, %v899, 0
        %v931 = vsel %vm352, %v900, 0
        %v934 = vsel %vm352, %v901, 0
        %v937 = vsel %vm352, %v902, 0
        %939 = vmatprep.subr.mxu0 0.0
        %940 = vmatpush1.msra.mxu0 0.0
        %941 = vmatprep.subr.mxu0 0.0
        %942 = vmatpush1.msra.mxu0 0.0
        %943 = vmatprep.subr.mxu0 0.0
        %944 = vmatpush1.msra.mxu0 0.0
        %945 = vmatprep.subr.mxu0 0.0
        %946 = vmatpush1.msra.mxu0 0.0
        %947 = vmatprep.subr.mxu0 0.0
        %948 = vmatpush1.msra.mxu0 0.0
        %949 = vmatprep.subr.mxu0 0.0
        %950 = vmatpush1.msra.mxu0 0.0
        %951 = vmatprep.subr.mxu0 0.0
        %952 = vmatpush1.msra.mxu0 0.0
        %953 = vmatprep.subr.mxu0 0.0
        %954 = vmatpush1.msra.mxu0 %v391
        %955 = vmatprep.subr.mxu0 0.0
        %956 = vmatpush1.msra.mxu0 %v338
        %957 = vmatprep.subr.mxu0 0.0
        %958 = vmatpush1.msra.mxu0 %v337
        %959 = vmatprep.subr.mxu0 0.0
        %960 = vmatpush1.msra.mxu0 %v336
        %961 = vmatprep.subr.mxu0 0.0
        %962 = vmatpush1.msra.mxu0 %v335
        %963 = vmatprep.subr.mxu0 0.0
        %964 = vmatpush1.msra.mxu0 %v334
        %965 = vmatprep.subr.mxu0 0.0
        %966 = vmatpush1.msra.mxu0 %v333
        %967 = vmatprep.subr.mxu0 0.0
        %968 = vmatpush1.msra.mxu0 %v332
        %969 = vmatprep.subr.mxu0 0.0
        %970 = vmatpush1.msra.mxu0 %v331
        %971 = vmatprep.subr.mxu0 0.0
        %972 = vmatpush2.msra.mxu0 0.0
        %973 = vmatprep.subr.mxu0 0.0
        %974 = vmatpush2.msra.mxu0 0.0
        %975 = vmatprep.subr.mxu0 0.0
        %976 = vmatpush2.msra.mxu0 0.0
        %977 = vmatprep.subr.mxu0 0.0
        %978 = vmatpush2.msra.mxu0 0.0
        %979 = vmatprep.subr.mxu0 0.0
        %980 = vmatpush2.msra.mxu0 0.0
        %981 = vmatprep.subr.mxu0 0.0
        %982 = vmatpush2.msra.mxu0 0.0
        %983 = vmatprep.subr.mxu0 0.0
        %984 = vmatpush2.msra.mxu0 0.0
        %985 = vmatprep.subr.mxu0 0.0
        %986 = vmatpush2.msra.mxu0 0.0
        %987 = vmatprep.subr.mxu0 0.0
        %988 = vmatpush2.msra.mxu0 0.0
        %989 = vmatprep.subr.mxu0 0.0
        %990 = vmatpush2.msra.mxu0 0.0
        %991 = vmatprep.subr.mxu0 0.0
        %992 = vmatpush2.msra.mxu0 0.0
        %993 = vmatprep.subr.mxu0 0.0
        %994 = vmatpush2.msra.mxu0 0.0
        %995 = vmatprep.subr.mxu0 0.0
        %996 = vmatpush2.msra.mxu0 0.0
        %997 = vmatprep.subr.mxu0 0.0
        %998 = vmatpush2.msra.mxu0 0.0
        %999 = vmatprep.subr.mxu0 0.0
        %1000 = vmatpush2.msra.mxu0 0.0
        %1001 = vmatprep.subr.mxu0 0.0
        %1002 = vmatpush2.msra.mxu0 0.0
        %1003 = vmatprep.mubr.f32.mxu0 0.0
        %1004 = vmatmul.mubr.f32.gmra.mxu0 %v904
        %v1005 = vpop.f32.mrf.mxu0
        %v1006 = vadd.f32 0.0, %v1005
        %v1007 = vpop.f32.mrf.mxu0
        %1008 = vmatprep.mubr.f32.mxu0 0.0
        %1009 = vmatmul.mubr.f32.gmra.mxu0 %v907
        %v1010 = vpop.f32.mrf.mxu0
        %v1011 = vadd.f32 0.0, %v1010
        %v1012 = vpop.f32.mrf.mxu0
        %1013 = vmatprep.mubr.f32.mxu0 0.0
        %1014 = vmatmul.mubr.f32.gmra.mxu0 %v910
        %v1015 = vpop.f32.mrf.mxu0
        %v1016 = vadd.f32 0.0, %v1015
        %v1017 = vpop.f32.mrf.mxu0
        %1018 = vmatprep.mubr.f32.mxu0 0.0
        %1019 = vmatmul.mubr.f32.gmra.mxu0 %v913
        %v1020 = vpop.f32.mrf.mxu0
        %v1021 = vadd.f32 0.0, %v1020
        %v1022 = vpop.f32.mrf.mxu0
        %1023 = vmatprep.mubr.f32.mxu0 0.0
        %1024 = vmatmul.mubr.f32.gmra.mxu0 %v916
        %v1025 = vpop.f32.mrf.mxu0
        %v1026 = vadd.f32 0.0, %v1025
        %v1027 = vpop.f32.mrf.mxu0
        %1028 = vmatprep.mubr.f32.mxu0 0.0
        %1029 = vmatmul.mubr.f32.gmra.mxu0 %v919
        %v1030 = vpop.f32.mrf.mxu0
        %v1031 = vadd.f32 0.0, %v1030
        %v1032 = vpop.f32.mrf.mxu0
        %1033 = vmatprep.mubr.f32.mxu0 0.0
        %1034 = vmatmul.mubr.f32.gmra.mxu0 %v922
        %v1035 = vpop.f32.mrf.mxu0
        %v1036 = vadd.f32 0.0, %v1035
        %v1037 = vpop.f32.mrf.mxu0
        %1038 = vmatprep.mubr.f32.mxu0 0.0
        %1039 = vmatmul.mubr.f32.gmra.mxu0 %v925
        %v1040 = vpop.f32.mrf.mxu0
        %v1041 = vadd.f32 0.0, %v1040
        %v1042 = vpop.f32.mrf.mxu0
        %1043 = vmatprep.mubr.f32.mxu0 0.0
        %1044 = vmatmul.mubr.f32.gmra.mxu0 %v928
        %v1045 = vpop.f32.mrf.mxu0
        %v1046 = vadd.f32 0.0, %v1045
        %v1047 = vpop.f32.mrf.mxu0
        %1048 = vmatprep.mubr.f32.mxu0 0.0
        %1049 = vmatmul.mubr.f32.gmra.mxu0 %v931
        %v1050 = vpop.f32.mrf.mxu0
        %v1051 = vadd.f32 0.0, %v1050
        %v1052 = vpop.f32.mrf.mxu0
        %1053 = vmatprep.mubr.f32.mxu0 0.0
        %1054 = vmatmul.mubr.f32.gmra.mxu0 %v934
        %v1055 = vpop.f32.mrf.mxu0
        %v1056 = vadd.f32 0.0, %v1055
        %v1057 = vpop.f32.mrf.mxu0
        %1058 = vmatprep.mubr.f32.mxu0 0.0
        %1059 = vmatmul.mubr.f32.gmra.mxu0 %v937
        %v1060 = vpop.f32.mrf.mxu0
        %v1061 = vadd.f32 0.0, %v1060
        %v1062 = vpop.f32.mrf.mxu0
        %1063 = vdwg.mxu0
        %v1064 = vmax.f32 %v878, %v1006
        %v1065 = vmax.f32 %v879, %v1011
        %v1066 = vmax.f32 %v880, %v1016
        %v1067 = vmax.f32 %v881, %v1021
        %v1068 = vmax.f32 %v882, %v1026
        %v1069 = vmax.f32 %v883, %v1031
        %v1070 = vmax.f32 %v884, %v1036
        %v1071 = vmax.f32 %v885, %v1041
        %v1072 = vmax.f32 %v886, %v1046
        %v1073 = vmax.f32 %v887, %v1051
        %v1074 = vmax.f32 %v888, %v1056
        %v1075 = vmax.f32 %v889, %v1061
        %v1076 = vld [vmem:[%s2] sm:$0x1]
        %v1078 = vlaneseq
        %v1079 = vshrl.u32 %v1078, 7
        %v1080 = vsub.s32 0, %v1079
        %v1081 = vrot.slane %v1076, %v1080
        %v1083 = vadd.f32 %v1064, %v1081
        %v1084 = vadd.f32 %v1065, %v1081
        %v1085 = vadd.f32 %v1066, %v1081
        %v1086 = vadd.f32 %v1067, %v1081
        %v1087 = vadd.f32 %v1068, %v1081
        %v1088 = vadd.f32 %v1069, %v1081
        %v1089 = vadd.f32 %v1070, %v1081
        %v1090 = vadd.f32 %v1071, %v1081
        %v1091 = vadd.f32 %v1072, %v1081
        %v1092 = vadd.f32 %v1073, %v1081
        %v1093 = vadd.f32 %v1074, %v1081
        %v1094 = vadd.f32 %v1075, %v1081
        %v1095 = vmax.f32 %v1083, 0.0
        %v1096 = vmax.f32 %v1084, 0.0
        %v1097 = vmax.f32 %v1085, 0.0
        %v1098 = vmax.f32 %v1086, 0.0
        %v1099 = vmax.f32 %v1087, 0.0
        %v1100 = vmax.f32 %v1088, 0.0
        %v1101 = vmax.f32 %v1089, 0.0
        %v1102 = vmax.f32 %v1090, 0.0
        %v1103 = vmax.f32 %v1091, 0.0
        %v1104 = vmax.f32 %v1092, 0.0
        %v1105 = vmax.f32 %v1093, 0.0
        %v1106 = vmax.f32 %v1094, 0.0
        %1107 = vst [vmem:[#allocation2] sm:$0xff] %v1095
        %1108 = vst [vmem:[#allocation2 + $0x8] sm:$0xff] %v1096
        %1109 = vst [vmem:[#allocation2 + $0x10] sm:$0xff] %v1097
        %1110 = vst [vmem:[#allocation2 + $0x18] sm:$0xff] %v1098
        %1111 = vst [vmem:[#allocation2 + $0x20] sm:$0xff] %v1099
        %1112 = vst [vmem:[#allocation2 + $0x28] sm:$0xff] %v1100
        %1113 = vst [vmem:[#allocation2 + $0x30] sm:$0xff] %v1101
        %1114 = vst [vmem:[#allocation2 + $0x38] sm:$0xff] %v1102
        %1115 = vst [vmem:[#allocation2 + $0x40] sm:$0xff] %v1103
        %1116 = vst [vmem:[#allocation2 + $0x48] sm:$0xff] %v1104
        %1117 = vst [vmem:[#allocation2 + $0x50] sm:$0xff] %v1105
        %1118 = vst [vmem:[#allocation2 + $0x58] sm:$0xff] %v1106
        %v1119 = vld [vmem:[#allocation2] sm:$0xff]
        %v1120 = vld [vmem:[#allocation2 + $0x8] sm:$0xff]
        %v1121 = vld [vmem:[#allocation2 + $0x10] sm:$0xff]
        %v1122 = vld [vmem:[#allocation2 + $0x18] sm:$0xff]
        %v1123 = vld [vmem:[#allocation2 + $0x20] sm:$0xff]
        %v1124 = vld [vmem:[#allocation2 + $0x28] sm:$0xff]
        %v1125 = vld [vmem:[#allocation2 + $0x30] sm:$0xff]
        %v1126 = vld [vmem:[#allocation2 + $0x38] sm:$0xff]
        %v1127 = vld [vmem:[#allocation2 + $0x40] sm:$0xff]
        %v1128 = vld [vmem:[#allocation2 + $0x48] sm:$0xff]
        %v1129 = vld [vmem:[#allocation2 + $0x50] sm:$0xff]
        %v1130 = vld [vmem:[#allocation2 + $0x20] sm:$0xff]
        %v1131 = vld [vmem:[#allocation2 + $0x28] sm:$0xff]
        %v1132 = vld [vmem:[#allocation2 + $0x30] sm:$0xff]
        %v1133 = vld [vmem:[#allocation2 + $0x38] sm:$0xff]
        %v1134 = vld [vmem:[#allocation2 + $0x40] sm:$0xff]
        %v1135 = vld [vmem:[#allocation2 + $0x48] sm:$0xff]
        %v1136 = vld [vmem:[#allocation2 + $0x50] sm:$0xff]
        %v1137 = vld [vmem:[#allocation2 + $0x58] sm:$0xff]
        %v1138 = vld [vmem:[%s3] sm:$0xff]
        %v1139 = vld [vmem:[%s3 + $0x8] sm:$0xff]
        %v1140 = vld [vmem:[%s3 + $0x10] sm:$0xff]
        %v1141 = vld [vmem:[%s3 + $0x18] sm:$0xff]
        %v1142 = vld [vmem:[%s3 + $0x20] sm:$0xff]
        %v1143 = vld [vmem:[%s3 + $0x28] sm:$0xff]
        %v1144 = vld [vmem:[%s3 + $0x30] sm:$0xff]
        %v1145 = vld [vmem:[%s3 + $0x38] sm:$0xff]
        %v1146 = vld [vmem:[%s3 + $0x40] sm:$0xff]
        %v1147 = vld [vmem:[%s3 + $0x48] sm:$0xff]
        %v1148 = vld [vmem:[%s3 + $0x50] sm:$0xff]
        %v1149 = vld [vmem:[%s3 + $0x58] sm:$0xff]
        %v1150 = vld [vmem:[%s3 + $0x60] sm:$0xff]
        %v1151 = vld [vmem:[%s3 + $0x68] sm:$0xff]
        %v1152 = vld [vmem:[%s3 + $0x70] sm:$0xff]
        %v1153 = vld [vmem:[%s3 + $0x78] sm:$0xff]
        %v1154 = vld [vmem:[%s3 + $0x80] sm:$0xff]
        %v1155 = vld [vmem:[%s3 + $0x88] sm:$0xff]
        %v1156 = vld [vmem:[%s3 + $0x90] sm:$0xff]
        %v1157 = vld [vmem:[%s3 + $0x98] sm:$0xff]
        %v1158 = vld [vmem:[%s3 + $0xa0] sm:$0xff]
        %v1159 = vld [vmem:[%s3 + $0xa8] sm:$0xff]
        %v1160 = vld [vmem:[%s3 + $0xb0] sm:$0xff]
        %v1161 = vld [vmem:[%s3 + $0xb8] sm:$0xff]
        %v1162 = vld [vmem:[%s3 + $0xc0] sm:$0xff]
        %v1163 = vld [vmem:[%s3 + $0xc8] sm:$0xff]
        %v1164 = vld [vmem:[%s3 + $0xd0] sm:$0xff]
        %v1165 = vld [vmem:[%s3 + $0xd8] sm:$0xff]
        %v1166 = vld [vmem:[%s3 + $0xe0] sm:$0xff]
        %v1167 = vld [vmem:[%s3 + $0xe8] sm:$0xff]
        %v1168 = vld [vmem:[%s3 + $0xf0] sm:$0xff]
        %v1169 = vld [vmem:[%s3 + $0xf8] sm:$0xff]
        %v1170 = vld [vmem:[%s3 + $0x100] sm:$0xff]
        %v1171 = vld [vmem:[%s3 + $0x108] sm:$0xff]
        %v1172 = vld [vmem:[%s3 + $0x110] sm:$0xff]
        %v1173 = vld [vmem:[%s3 + $0x118] sm:$0xff]
        %v1174 = vld [vmem:[%s3 + $0x120] sm:$0xff]
        %v1175 = vld [vmem:[%s3 + $0x128] sm:$0xff]
        %v1176 = vld [vmem:[%s3 + $0x130] sm:$0xff]
        %v1177 = vld [vmem:[%s3 + $0x138] sm:$0xff]
        %v1178 = vld [vmem:[%s3 + $0x140] sm:$0xff]
        %v1179 = vld [vmem:[%s3 + $0x148] sm:$0xff]
        %v1180 = vld [vmem:[%s3 + $0x150] sm:$0xff]
        %v1181 = vld [vmem:[%s3 + $0x158] sm:$0xff]
        %v1182 = vld [vmem:[%s3 + $0x160] sm:$0xff]
        %v1183 = vld [vmem:[%s3 + $0x168] sm:$0xff]
        %v1184 = vld [vmem:[%s3 + $0x170] sm:$0xff]
        %v1185 = vld [vmem:[%s3 + $0x178] sm:$0xff]
        %v1186 = vld [vmem:[%s3 + $0x180] sm:$0xff]
        %v1187 = vld [vmem:[%s3 + $0x188] sm:$0xff]
        %v1188 = vld [vmem:[%s3 + $0x190] sm:$0xff]
        %v1189 = vld [vmem:[%s3 + $0x198] sm:$0xff]
        %v1190 = vld [vmem:[%s3 + $0x1a0] sm:$0xff]
        %v1191 = vld [vmem:[%s3 + $0x1a8] sm:$0xff]
        %v1192 = vld [vmem:[%s3 + $0x1b0] sm:$0xff]
        %v1193 = vld [vmem:[%s3 + $0x1b8] sm:$0xff]
        %v1194 = vld [vmem:[%s3 + $0x1c0] sm:$0xff]
        %v1195 = vld [vmem:[%s3 + $0x1c8] sm:$0xff]
        %v1196 = vld [vmem:[%s3 + $0x1d0] sm:$0xff]
        %v1197 = vld [vmem:[%s3 + $0x1d8] sm:$0xff]
        %v1198 = vld [vmem:[%s3 + $0x1e0] sm:$0xff]
        %v1199 = vld [vmem:[%s3 + $0x1e8] sm:$0xff]
        %v1200 = vld [vmem:[%s3 + $0x1f0] sm:$0xff]
        %v1201 = vld [vmem:[%s3 + $0x1f8] sm:$0xff]
        %v1202 = vld [vmem:[%s3 + $0x200] sm:$0xff]
        %v1203 = vld [vmem:[%s3 + $0x208] sm:$0xff]
        %v1204 = vld [vmem:[%s3 + $0x210] sm:$0xff]
        %v1205 = vld [vmem:[%s3 + $0x218] sm:$0xff]
        %v1206 = vld [vmem:[%s3 + $0x220] sm:$0xff]
        %v1207 = vld [vmem:[%s3 + $0x228] sm:$0xff]
        %v1208 = vld [vmem:[%s3 + $0x230] sm:$0xff]
        %v1209 = vld [vmem:[%s3 + $0x238] sm:$0xff]
        %v1210 = vld [vmem:[%s3 + $0x240] sm:$0xff]
        %v1211 = vld [vmem:[%s3 + $0x248] sm:$0xff]
        %v1212 = vld [vmem:[%s3 + $0x250] sm:$0xff]
        %v1213 = vld [vmem:[%s3 + $0x258] sm:$0xff]
        %v1214 = vld [vmem:[%s3 + $0x260] sm:$0xff]
        %v1215 = vld [vmem:[%s3 + $0x268] sm:$0xff]
        %v1216 = vld [vmem:[%s3 + $0x270] sm:$0xff]
        %v1217 = vld [vmem:[%s3 + $0x278] sm:$0xff]
        %1218 = vmatprep.subr.mxu0 0.0
        %1219 = vmatpush1.msra.mxu0 %v1153
        %1220 = vmatprep.subr.mxu0 0.0
        %1221 = vmatpush1.msra.mxu0 %v1152
        %1222 = vmatprep.subr.mxu0 0.0
        %1223 = vmatpush1.msra.mxu0 %v1151
        %1224 = vmatprep.subr.mxu0 0.0
        %1225 = vmatpush1.msra.mxu0 %v1150
        %1226 = vmatprep.subr.mxu0 0.0
        %1227 = vmatpush1.msra.mxu0 %v1149
        %1228 = vmatprep.subr.mxu0 0.0
        %1229 = vmatpush1.msra.mxu0 %v1148
        %1230 = vmatprep.subr.mxu0 0.0
        %1231 = vmatpush1.msra.mxu0 %v1147
        %1232 = vmatprep.subr.mxu0 0.0
        %1233 = vmatpush1.msra.mxu0 %v1146
        %1234 = vmatprep.subr.mxu0 0.0
        %1235 = vmatpush1.msra.mxu0 %v1145
        %1236 = vmatprep.subr.mxu0 0.0
        %1237 = vmatpush1.msra.mxu0 %v1144
        %1238 = vmatprep.subr.mxu0 0.0
        %1239 = vmatpush1.msra.mxu0 %v1143
        %1240 = vmatprep.subr.mxu0 0.0
        %1241 = vmatpush1.msra.mxu0 %v1142
        %1242 = vmatprep.subr.mxu0 0.0
        %1243 = vmatpush1.msra.mxu0 %v1141
        %1244 = vmatprep.subr.mxu0 0.0
        %1245 = vmatpush1.msra.mxu0 %v1140
        %1246 = vmatprep.subr.mxu0 0.0
        %1247 = vmatpush1.msra.mxu0 %v1139
        %1248 = vmatprep.subr.mxu0 0.0
        %1249 = vmatpush1.msra.mxu0 %v1138
        %1250 = vmatprep.subr.mxu0 0.0
        %1251 = vmatpush2.msra.mxu0 %v1169
        %1252 = vmatprep.subr.mxu0 0.0
        %1253 = vmatpush2.msra.mxu0 %v1168
        %1254 = vmatprep.subr.mxu0 0.0
        %1255 = vmatpush2.msra.mxu0 %v1167
        %1256 = vmatprep.subr.mxu0 0.0
        %1257 = vmatpush2.msra.mxu0 %v1166
        %1258 = vmatprep.subr.mxu0 0.0
        %1259 = vmatpush2.msra.mxu0 %v1165
        %1260 = vmatprep.subr.mxu0 0.0
        %1261 = vmatpush2.msra.mxu0 %v1164
        %1262 = vmatprep.subr.mxu0 0.0
        %1263 = vmatpush2.msra.mxu0 %v1163
        %1264 = vmatprep.subr.mxu0 0.0
        %1265 = vmatpush2.msra.mxu0 %v1162
        %1266 = vmatprep.subr.mxu0 0.0
        %1267 = vmatpush2.msra.mxu0 %v1161
        %1268 = vmatprep.subr.mxu0 0.0
        %1269 = vmatpush2.msra.mxu0 %v1160
        %1270 = vmatprep.subr.mxu0 0.0
        %1271 = vmatpush2.msra.mxu0 %v1159
        %1272 = vmatprep.subr.mxu0 0.0
        %1273 = vmatpush2.msra.mxu0 %v1158
        %1274 = vmatprep.subr.mxu0 0.0
        %1275 = vmatpush2.msra.mxu0 %v1157
        %1276 = vmatprep.subr.mxu0 0.0
        %1277 = vmatpush2.msra.mxu0 %v1156
        %1278 = vmatprep.subr.mxu0 0.0
        %1279 = vmatpush2.msra.mxu0 %v1155
        %1280 = vmatprep.subr.mxu0 0.0
        %1281 = vmatpush2.msra.mxu0 %v1154
        %1282 = vmatprep.mubr.f32.mxu0 %v1120
        %1283 = vmatmul.mubr.f32.gmra.mxu0 %v1119
        %v1284 = vpop.f32.mrf.mxu0
        %v1285 = vadd.f32 0.0, %v1284
        %v1286 = vpop.f32.mrf.mxu0
        %1287 = vmatprep.mubr.f32.mxu0 %v1121
        %1288 = vmatmul.mubr.f32.gmra.mxu0 %v1120
        %v1289 = vpop.f32.mrf.mxu0
        %v1290 = vadd.f32 0.0, %v1289
        %v1291 = vpop.f32.mrf.mxu0
        %1292 = vmatprep.mubr.f32.mxu0 %v1122
        %1293 = vmatmul.mubr.f32.gmra.mxu0 %v1121
        %v1294 = vpop.f32.mrf.mxu0
        %v1295 = vadd.f32 0.0, %v1294
        %v1296 = vpop.f32.mrf.mxu0
        %1297 = vmatprep.mubr.f32.mxu0 %v1123
        %1298 = vmatmul.mubr.f32.gmra.mxu0 %v1122
        %v1299 = vpop.f32.mrf.mxu0
        %v1300 = vadd.f32 0.0, %v1299
        %v1301 = vpop.f32.mrf.mxu0
        %1302 = vmatprep.mubr.f32.mxu0 %v1124
        %1303 = vmatmul.mubr.f32.gmra.mxu0 %v1123
        %v1304 = vpop.f32.mrf.mxu0
        %v1305 = vadd.f32 0.0, %v1304
        %v1306 = vpop.f32.mrf.mxu0
        %1307 = vmatprep.mubr.f32.mxu0 %v1125
        %1308 = vmatmul.mubr.f32.gmra.mxu0 %v1124
        %v1309 = vpop.f32.mrf.mxu0
        %v1310 = vadd.f32 0.0, %v1309
        %v1311 = vpop.f32.mrf.mxu0
        %1312 = vmatprep.mubr.f32.mxu0 %v1126
        %1313 = vmatmul.mubr.f32.gmra.mxu0 %v1125
        %v1314 = vpop.f32.mrf.mxu0
        %v1315 = vadd.f32 0.0, %v1314
        %v1316 = vpop.f32.mrf.mxu0
        %1317 = vmatprep.mubr.f32.mxu0 %v1127
        %1318 = vmatmul.mubr.f32.gmra.mxu0 %v1126
        %v1319 = vpop.f32.mrf.mxu0
        %v1320 = vadd.f32 0.0, %v1319
        %v1321 = vpop.f32.mrf.mxu0
        %1322 = vdwg.mxu0
        %1323 = vmatprep.subr.mxu0 0.0
        %1324 = vmatpush1.msra.mxu0 %v1185
        %1325 = vmatprep.subr.mxu0 0.0
        %1326 = vmatpush1.msra.mxu0 %v1184
        %1327 = vmatprep.subr.mxu0 0.0
        %1328 = vmatpush1.msra.mxu0 %v1183
        %1329 = vmatprep.subr.mxu0 0.0
        %1330 = vmatpush1.msra.mxu0 %v1182
        %1331 = vmatprep.subr.mxu0 0.0
        %1332 = vmatpush1.msra.mxu0 %v1181
        %1333 = vmatprep.subr.mxu0 0.0
        %1334 = vmatpush1.msra.mxu0 %v1180
        %1335 = vmatprep.subr.mxu0 0.0
        %1336 = vmatpush1.msra.mxu0 %v1179
        %1337 = vmatprep.subr.mxu0 0.0
        %1338 = vmatpush1.msra.mxu0 %v1178
        %1339 = vmatprep.subr.mxu0 0.0
        %1340 = vmatpush1.msra.mxu0 %v1177
        %1341 = vmatprep.subr.mxu0 0.0
        %1342 = vmatpush1.msra.mxu0 %v1176
        %1343 = vmatprep.subr.mxu0 0.0
        %1344 = vmatpush1.msra.mxu0 %v1175
        %1345 = vmatprep.subr.mxu0 0.0
        %1346 = vmatpush1.msra.mxu0 %v1174
        %1347 = vmatprep.subr.mxu0 0.0
        %1348 = vmatpush1.msra.mxu0 %v1173
        %1349 = vmatprep.subr.mxu0 0.0
        %1350 = vmatpush1.msra.mxu0 %v1172
        %1351 = vmatprep.subr.mxu0 0.0
        %1352 = vmatpush1.msra.mxu0 %v1171
        %1353 = vmatprep.subr.mxu0 0.0
        %1354 = vmatpush1.msra.mxu0 %v1170
        %1355 = vmatprep.subr.mxu0 0.0
        %1356 = vmatpush2.msra.mxu0 %v1201
        %1357 = vmatprep.subr.mxu0 0.0
        %1358 = vmatpush2.msra.mxu0 %v1200
        %1359 = vmatprep.subr.mxu0 0.0
        %1360 = vmatpush2.msra.mxu0 %v1199
        %1361 = vmatprep.subr.mxu0 0.0
        %1362 = vmatpush2.msra.mxu0 %v1198
        %1363 = vmatprep.subr.mxu0 0.0
        %1364 = vmatpush2.msra.mxu0 %v1197
        %1365 = vmatprep.subr.mxu0 0.0
        %1366 = vmatpush2.msra.mxu0 %v1196
        %1367 = vmatprep.subr.mxu0 0.0
        %1368 = vmatpush2.msra.mxu0 %v1195
        %1369 = vmatprep.subr.mxu0 0.0
        %1370 = vmatpush2.msra.mxu0 %v1194
        %1371 = vmatprep.subr.mxu0 0.0
        %1372 = vmatpush2.msra.mxu0 %v1193
        %1373 = vmatprep.subr.mxu0 0.0
        %1374 = vmatpush2.msra.mxu0 %v1192
        %1375 = vmatprep.subr.mxu0 0.0
        %1376 = vmatpush2.msra.mxu0 %v1191
        %1377 = vmatprep.subr.mxu0 0.0
        %1378 = vmatpush2.msra.mxu0 %v1190
        %1379 = vmatprep.subr.mxu0 0.0
        %1380 = vmatpush2.msra.mxu0 %v1189
        %1381 = vmatprep.subr.mxu0 0.0
        %1382 = vmatpush2.msra.mxu0 %v1188
        %1383 = vmatprep.subr.mxu0 0.0
        %1384 = vmatpush2.msra.mxu0 %v1187
        %1385 = vmatprep.subr.mxu0 0.0
        %1386 = vmatpush2.msra.mxu0 %v1186
        %1387 = vmatprep.mubr.f32.mxu0 %v1122
        %1388 = vmatmul.mubr.f32.gmra.mxu0 %v1121
        %v1389 = vpop.f32.mrf.mxu0
        %v1390 = vadd.f32 %v1285, %v1389
        %v1391 = vpop.f32.mrf.mxu0
        %1392 = vmatprep.mubr.f32.mxu0 %v1123
        %1393 = vmatmul.mubr.f32.gmra.mxu0 %v1122
        %v1394 = vpop.f32.mrf.mxu0
        %v1395 = vadd.f32 %v1290, %v1394
        %v1396 = vpop.f32.mrf.mxu0
        %1397 = vmatprep.mubr.f32.mxu0 %v1124
        %1398 = vmatmul.mubr.f32.gmra.mxu0 %v1123
        %v1399 = vpop.f32.mrf.mxu0
        %v1400 = vadd.f32 %v1295, %v1399
        %v1401 = vpop.f32.mrf.mxu0
        %1402 = vmatprep.mubr.f32.mxu0 %v1125
        %1403 = vmatmul.mubr.f32.gmra.mxu0 %v1124
        %v1404 = vpop.f32.mrf.mxu0
        %v1405 = vadd.f32 %v1300, %v1404
        %v1406 = vpop.f32.mrf.mxu0
        %1407 = vmatprep.mubr.f32.mxu0 %v1126
        %1408 = vmatmul.mubr.f32.gmra.mxu0 %v1125
        %v1409 = vpop.f32.mrf.mxu0
        %v1410 = vadd.f32 %v1305, %v1409
        %v1411 = vpop.f32.mrf.mxu0
        %1412 = vmatprep.mubr.f32.mxu0 %v1127
        %1413 = vmatmul.mubr.f32.gmra.mxu0 %v1126
        %v1414 = vpop.f32.mrf.mxu0
        %v1415 = vadd.f32 %v1310, %v1414
        %v1416 = vpop.f32.mrf.mxu0
        %1417 = vmatprep.mubr.f32.mxu0 %v1128
        %1418 = vmatmul.mubr.f32.gmra.mxu0 %v1127
        %v1419 = vpop.f32.mrf.mxu0
        %v1420 = vadd.f32 %v1315, %v1419
        %v1421 = vpop.f32.mrf.mxu0
        %1422 = vmatprep.mubr.f32.mxu0 %v1129
        %1423 = vmatmul.mubr.f32.gmra.mxu0 %v1128
        %v1424 = vpop.f32.mrf.mxu0
        %v1425 = vadd.f32 %v1320, %v1424
        %v1426 = vpop.f32.mrf.mxu0
        %1427 = vdwg.mxu0
        %1428 = vmatprep.subr.mxu0 0.0
        %1429 = vmatpush1.msra.mxu0 %v1217
        %1430 = vmatprep.subr.mxu0 0.0
        %1431 = vmatpush1.msra.mxu0 %v1216
        %1432 = vmatprep.subr.mxu0 0.0
        %1433 = vmatpush1.msra.mxu0 %v1215
        %1434 = vmatprep.subr.mxu0 0.0
        %1435 = vmatpush1.msra.mxu0 %v1214
        %1436 = vmatprep.subr.mxu0 0.0
        %1437 = vmatpush1.msra.mxu0 %v1213
        %1438 = vmatprep.subr.mxu0 0.0
        %1439 = vmatpush1.msra.mxu0 %v1212
        %1440 = vmatprep.subr.mxu0 0.0
        %1441 = vmatpush1.msra.mxu0 %v1211
        %1442 = vmatprep.subr.mxu0 0.0
        %1443 = vmatpush1.msra.mxu0 %v1210
        %1444 = vmatprep.subr.mxu0 0.0
        %1445 = vmatpush1.msra.mxu0 %v1209
        %1446 = vmatprep.subr.mxu0 0.0
        %1447 = vmatpush1.msra.mxu0 %v1208
        %1448 = vmatprep.subr.mxu0 0.0
        %1449 = vmatpush1.msra.mxu0 %v1207
        %1450 = vmatprep.subr.mxu0 0.0
        %1451 = vmatpush1.msra.mxu0 %v1206
        %1452 = vmatprep.subr.mxu0 0.0
        %1453 = vmatpush1.msra.mxu0 %v1205
        %1454 = vmatprep.subr.mxu0 0.0
        %1455 = vmatpush1.msra.mxu0 %v1204
        %1456 = vmatprep.subr.mxu0 0.0
        %1457 = vmatpush1.msra.mxu0 %v1203
        %1458 = vmatprep.subr.mxu0 0.0
        %1459 = vmatpush1.msra.mxu0 %v1202
        %1460 = vmatprep.subr.mxu0 0.0
        %1461 = vmatpush2.msra.mxu0 0.0
        %1462 = vmatprep.subr.mxu0 0.0
        %1463 = vmatpush2.msra.mxu0 0.0
        %1464 = vmatprep.subr.mxu0 0.0
        %1465 = vmatpush2.msra.mxu0 0.0
        %1466 = vmatprep.subr.mxu0 0.0
        %1467 = vmatpush2.msra.mxu0 0.0
        %1468 = vmatprep.subr.mxu0 0.0
        %1469 = vmatpush2.msra.mxu0 0.0
        %1470 = vmatprep.subr.mxu0 0.0
        %1471 = vmatpush2.msra.mxu0 0.0
        %1472 = vmatprep.subr.mxu0 0.0
        %1473 = vmatpush2.msra.mxu0 0.0
        %1474 = vmatprep.subr.mxu0 0.0
        %1475 = vmatpush2.msra.mxu0 0.0
        %1476 = vmatprep.subr.mxu0 0.0
        %1477 = vmatpush2.msra.mxu0 0.0
        %1478 = vmatprep.subr.mxu0 0.0
        %1479 = vmatpush2.msra.mxu0 0.0
        %1480 = vmatprep.subr.mxu0 0.0
        %1481 = vmatpush2.msra.mxu0 0.0
        %1482 = vmatprep.subr.mxu0 0.0
        %1483 = vmatpush2.msra.mxu0 0.0
        %1484 = vmatprep.subr.mxu0 0.0
        %1485 = vmatpush2.msra.mxu0 0.0
        %1486 = vmatprep.subr.mxu0 0.0
        %1487 = vmatpush2.msra.mxu0 0.0
        %1488 = vmatprep.subr.mxu0 0.0
        %1489 = vmatpush2.msra.mxu0 0.0
        %1490 = vmatprep.subr.mxu0 0.0
        %1491 = vmatpush2.msra.mxu0 0.0
        %1492 = vmatprep.mubr.f32.mxu0 0.0
        %1493 = vmatmul.mubr.f32.gmra.mxu0 %v1130
        %v1494 = vpop.f32.mrf.mxu0
        %v1495 = vadd.f32 %v1390, %v1494
        %v1496 = vpop.f32.mrf.mxu0
        %1497 = vmatprep.mubr.f32.mxu0 0.0
        %1498 = vmatmul.mubr.f32.gmra.mxu0 %v1131
        %v1499 = vpop.f32.mrf.mxu0
        %v1500 = vadd.f32 %v1395, %v1499
        %v1501 = vpop.f32.mrf.mxu0
        %1502 = vmatprep.mubr.f32.mxu0 0.0
        %1503 = vmatmul.mubr.f32.gmra.mxu0 %v1132
        %v1504 = vpop.f32.mrf.mxu0
        %v1505 = vadd.f32 %v1400, %v1504
        %v1506 = vpop.f32.mrf.mxu0
        %1507 = vmatprep.mubr.f32.mxu0 0.0
        %1508 = vmatmul.mubr.f32.gmra.mxu0 %v1133
        %v1509 = vpop.f32.mrf.mxu0
        %v1510 = vadd.f32 %v1405, %v1509
        %v1511 = vpop.f32.mrf.mxu0
        %1512 = vmatprep.mubr.f32.mxu0 0.0
        %1513 = vmatmul.mubr.f32.gmra.mxu0 %v1134
        %v1514 = vpop.f32.mrf.mxu0
        %v1515 = vadd.f32 %v1410, %v1514
        %v1516 = vpop.f32.mrf.mxu0
        %1517 = vmatprep.mubr.f32.mxu0 0.0
        %1518 = vmatmul.mubr.f32.gmra.mxu0 %v1135
        %v1519 = vpop.f32.mrf.mxu0
        %v1520 = vadd.f32 %v1415, %v1519
        %v1521 = vpop.f32.mrf.mxu0
        %1522 = vmatprep.mubr.f32.mxu0 0.0
        %1523 = vmatmul.mubr.f32.gmra.mxu0 %v1136
        %v1524 = vpop.f32.mrf.mxu0
        %v1525 = vadd.f32 %v1420, %v1524
        %v1526 = vpop.f32.mrf.mxu0
        %1527 = vmatprep.mubr.f32.mxu0 0.0
        %1528 = vmatmul.mubr.f32.gmra.mxu0 %v1137
        %v1529 = vpop.f32.mrf.mxu0
        %v1530 = vadd.f32 %v1425, %v1529
        %v1531 = vpop.f32.mrf.mxu0
        %1532 = vdwg.mxu0
        %v1533 = vmax.f32 %v1495, %v1500
        %v1534 = vmax.f32 %v1505, %v1510
        %v1535 = vmax.f32 %v1515, %v1520
        %v1536 = vmax.f32 %v1525, %v1530
        %v1537 = vld [vmem:[%s4] sm:$0x1]
        %v1539 = vlaneseq
        %v1540 = vshrl.u32 %v1539, 7
        %v1541 = vsub.s32 0, %v1540
        %v1542 = vrot.slane %v1537, %v1541
        %v1544 = vadd.f32 %v1533, %v1542
        %v1545 = vadd.f32 %v1534, %v1542
        %v1546 = vadd.f32 %v1535, %v1542
        %v1547 = vadd.f32 %v1536, %v1542
        %v1548 = vmax.f32 %v1544, 0.0
        %v1549 = vmax.f32 %v1545, 0.0
        %v1550 = vmax.f32 %v1546, 0.0
        %v1551 = vmax.f32 %v1547, 0.0
        %vm1552 = vcmask 408576
        %1553 = vst.msk [vmem:[#allocation3] sm:$0xff] %vm1552, %v1548
        %1554 = vst.msk [vmem:[#allocation3 + $0x8] sm:$0xff] %vm1552, %v1549
        %1555 = vst.msk [vmem:[#allocation3 + $0x10] sm:$0xff] %vm1552, %v1550
        %1556 = vst.msk [vmem:[#allocation3 + $0x18] sm:$0xff] %vm1552, %v1551
        %vm1557 = vcmask 1040384
        %vm1558 = vsmask.f32 256
        %vm1559 = vmand %vm1557, %vm1558
        %vm1560 = vcmask 1041409
        %vm1561 = vsmask.f32 1280
        %vm1562 = vmand %vm1560, %vm1561
        %vm1563 = vmor %vm1562, %vm1559
        %vm1564 = vcmask 1042434
        %vm1565 = vsmask.f32 2304
        %vm1566 = vmand %vm1564, %vm1565
        %vm1567 = vmor %vm1566, %vm1563
        %vm1568 = vcmask 1043459
        %vm1569 = vsmask.f32 3328
        %vm1570 = vmand %vm1568, %vm1569
        %vm1571 = vmor %vm1570, %vm1567
        %vm1572 = vcmask 1044484
        %vm1573 = vsmask.f32 4352
        %vm1574 = vmand %vm1572, %vm1573
        %vm1575 = vmor %vm1574, %vm1571
        %vm1576 = vcmask 1045509
        %vm1577 = vsmask.f32 5376
        %vm1578 = vmand %vm1576, %vm1577
        %vm1579 = vmor %vm1578, %vm1575
        %vm1580 = vcmask 1046534
        %vm1581 = vsmask.f32 6400
        %vm1582 = vmand %vm1580, %vm1581
        %vm1583 = vmor %vm1582, %vm1579
        %vm1584 = vcmask 1047559
        %vm1585 = vsmask.f32 7424
        %vm1586 = vmand %vm1584, %vm1585
        %vm1587 = vmor %vm1586, %vm1583
        %v1588 = vld [vmem:[#allocation4] sm:$0xff]
        %v1589 = vsel %vm1587, 0, %v1588
        %1590 = vst [vmem:[#allocation4] sm:$0xff] %v1589
        %v1591 = vld [vmem:[#allocation4 + $0x8] sm:$0xff]
        %v1592 = vsel %vm1587, 0, %v1591
        %1593 = vst [vmem:[#allocation4 + $0x8] sm:$0xff] %v1592
        %v1594 = vld [vmem:[#allocation3] sm:$0x1]
        %v1595 = vld [vmem:[#allocation3 + $0x1] sm:$0x1]
        %v1596 = vmax.f32 %v1594, %v1595
        %v1597 = vpack.c.bf16 %v1596, %v1596
        %vm1598 = vcmask 401408
        %vm1599 = vmand %vm1598, %vm1558
        %v1600 = vld [vmem:[#allocation4] sm:$0x1]
        %v1601 = vsel %vm1599, %v1597, %v1600
        %1602 = vst [vmem:[#allocation4] sm:$0x1] %v1601
        %v1603 = vld [vmem:[#allocation3 + $0x2] sm:$0x1]
        %v1604 = vld [vmem:[#allocation3 + $0x3] sm:$0x1]
        %v1605 = vmax.f32 %v1603, %v1604
        %v1606 = vpack.c.bf16 %v1605, %v1605
        %v1607 = vld [vmem:[#allocation4 + $0x1] sm:$0x1]
        %v1608 = vsel %vm1599, %v1606, %v1607
        %1609 = vst [vmem:[#allocation4 + $0x1] sm:$0x1] %v1608
        %v1610 = vld [vmem:[#allocation3 + $0x4] sm:$0x1]
        %v1611 = vld [vmem:[#allocation3 + $0x5] sm:$0x1]
        %v1612 = vmax.f32 %v1610, %v1611
        %v1613 = vpack.c.bf16 %v1612, %v1612
        %v1614 = vld [vmem:[#allocation4 + $0x2] sm:$0x1]
        %v1615 = vsel %vm1599, %v1613, %v1614
        %1616 = vst [vmem:[#allocation4 + $0x2] sm:$0x1] %v1615
        %v1617 = vld [vmem:[#allocation3 + $0x6] sm:$0x1]
        %v1618 = vld [vmem:[#allocation3 + $0x7] sm:$0x1]
        %v1619 = vmax.f32 %v1617, %v1618
        %v1620 = vpack.c.bf16 %v1619, %v1619
        %v1621 = vld [vmem:[#allocation4 + $0x3] sm:$0x1]
        %v1622 = vsel %vm1599, %v1620, %v1621
        %1623 = vst [vmem:[#allocation4 + $0x3] sm:$0x1] %v1622
        %s1624 = scalar_lea.vmem [#allocation3], 8
        %v1625 = vld [vmem:[%s1624] sm:$0x1]
        %v1626 = vld [vmem:[%s1624 + $0x1] sm:$0x1]
        %v1627 = vmax.f32 %v1625, %v1626
        %v1628 = vpack.c.bf16 %v1627, %v1627
        %v1629 = vld [vmem:[#allocation4 + $0x4] sm:$0x1]
        %v1630 = vsel %vm1599, %v1628, %v1629
        %1631 = vst [vmem:[#allocation4 + $0x4] sm:$0x1] %v1630
        %v1632 = vld [vmem:[%s1624 + $0x2] sm:$0x1]
        %v1633 = vld [vmem:[%s1624 + $0x3] sm:$0x1]
        %v1634 = vmax.f32 %v1632, %v1633
        %v1635 = vpack.c.bf16 %v1634, %v1634
        %v1636 = vld [vmem:[#allocation4 + $0x5] sm:$0x1]
        %v1637 = vsel %vm1599, %v1635, %v1636
        %1638 = vst [vmem:[#allocation4 + $0x5] sm:$0x1] %v1637
        %v1639 = vld [vmem:[%s1624 + $0x4] sm:$0x1]
        %v1640 = vld [vmem:[%s1624 + $0x5] sm:$0x1]
        %v1641 = vmax.f32 %v1639, %v1640
        %v1642 = vpack.c.bf16 %v1641, %v1641
        %v1643 = vld [vmem:[#allocation4 + $0x6] sm:$0x1]
        %v1644 = vsel %vm1599, %v1642, %v1643
        %1645 = vst [vmem:[#allocation4 + $0x6] sm:$0x1] %v1644
        %v1646 = vld [vmem:[%s1624 + $0x6] sm:$0x1]
        %v1647 = vld [vmem:[%s1624 + $0x7] sm:$0x1]
        %v1648 = vmax.f32 %v1646, %v1647
        %v1649 = vpack.c.bf16 %v1648, %v1648
        %v1650 = vld [vmem:[#allocation4 + $0x7] sm:$0x1]
        %v1651 = vsel %vm1599, %v1649, %v1650
        %1652 = vst [vmem:[#allocation4 + $0x7] sm:$0x1] %v1651
        %s1653 = scalar_lea.vmem [#allocation3], 16
        %v1654 = vld [vmem:[%s1653] sm:$0x1]
        %v1655 = vld [vmem:[%s1653 + $0x1] sm:$0x1]
        %v1656 = vmax.f32 %v1654, %v1655
        %v1657 = vpack.c.bf16 %v1656, %v1656
        %v1658 = vld [vmem:[#allocation4 + $0x8] sm:$0x1]
        %v1659 = vsel %vm1599, %v1657, %v1658
        %1660 = vst [vmem:[#allocation4 + $0x8] sm:$0x1] %v1659
        %v1661 = vld [vmem:[%s1653 + $0x2] sm:$0x1]
        %v1662 = vld [vmem:[%s1653 + $0x3] sm:$0x1]
        %v1663 = vmax.f32 %v1661, %v1662
        %v1664 = vpack.c.bf16 %v1663, %v1663
        %v1665 = vld [vmem:[#allocation4 + $0x9] sm:$0x1]
        %v1666 = vsel %vm1599, %v1664, %v1665
        %1667 = vst [vmem:[#allocation4 + $0x9] sm:$0x1] %v1666
        %v1668 = vld [vmem:[%s1653 + $0x4] sm:$0x1]
        %v1669 = vld [vmem:[%s1653 + $0x5] sm:$0x1]
        %v1670 = vmax.f32 %v1668, %v1669
        %v1671 = vpack.c.bf16 %v1670, %v1670
        %v1672 = vld [vmem:[#allocation4 + $0xa] sm:$0x1]
        %v1673 = vsel %vm1599, %v1671, %v1672
        %1674 = vst [vmem:[#allocation4 + $0xa] sm:$0x1] %v1673
        %v1675 = vld [vmem:[%s1653 + $0x6] sm:$0x1]
        %v1676 = vld [vmem:[%s1653 + $0x7] sm:$0x1]
        %v1677 = vmax.f32 %v1675, %v1676
        %v1678 = vpack.c.bf16 %v1677, %v1677
        %v1679 = vld [vmem:[#allocation4 + $0xb] sm:$0x1]
        %v1680 = vsel %vm1599, %v1678, %v1679
        %1681 = vst [vmem:[#allocation4 + $0xb] sm:$0x1] %v1680
        %s1682 = scalar_lea.vmem [#allocation3], 24
        %v1683 = vld [vmem:[%s1682] sm:$0x1]
        %v1684 = vld [vmem:[%s1682 + $0x1] sm:$0x1]
        %v1685 = vmax.f32 %v1683, %v1684
        %v1686 = vpack.c.bf16 %v1685, %v1685
        %v1687 = vld [vmem:[#allocation4 + $0xc] sm:$0x1]
        %v1688 = vsel %vm1599, %v1686, %v1687
        %1689 = vst [vmem:[#allocation4 + $0xc] sm:$0x1] %v1688
        %v1690 = vld [vmem:[%s1682 + $0x2] sm:$0x1]
        %v1691 = vld [vmem:[%s1682 + $0x3] sm:$0x1]
        %v1692 = vmax.f32 %v1690, %v1691
        %v1693 = vpack.c.bf16 %v1692, %v1692
        %v1694 = vld [vmem:[#allocation4 + $0xd] sm:$0x1]
        %v1695 = vsel %vm1599, %v1693, %v1694
        %1696 = vst [vmem:[#allocation4 + $0xd] sm:$0x1] %v1695
        %v1697 = vld [vmem:[%s1682 + $0x4] sm:$0x1]
        %v1698 = vld [vmem:[%s1682 + $0x5] sm:$0x1]
        %v1699 = vmax.f32 %v1697, %v1698
        %v1700 = vpack.c.bf16 %v1699, %v1699
        %v1701 = vld [vmem:[#allocation4 + $0xe] sm:$0x1]
        %v1702 = vsel %vm1599, %v1700, %v1701
        %1703 = vst [vmem:[#allocation4 + $0xe] sm:$0x1] %v1702
        %v1704 = vld [vmem:[%s1682 + $0x6] sm:$0x1]
        %v1705 = vld [vmem:[%s1682 + $0x7] sm:$0x1]
        %v1706 = vmax.f32 %v1704, %v1705
        %v1707 = vpack.c.bf16 %v1706, %v1706
        %v1708 = vld [vmem:[#allocation4 + $0xf] sm:$0x1]
        %v1709 = vsel %vm1599, %v1707, %v1708
        %1710 = vst [vmem:[#allocation4 + $0xf] sm:$0x1] %v1709
        %v1711 = vld [vmem:[#allocation4] sm:$0xff]
        %v1712 = vld [vmem:[#allocation4 + $0x8] sm:$0xff]
        %v1713 = vld [vmem:[%s5] sm:$0xff]
        %v1714 = vld [vmem:[%s5 + $0x8] sm:$0xff]
        %v1715 = vld [vmem:[%s5 + $0x10] sm:$0xff]
        %v1716 = vld [vmem:[%s5 + $0x18] sm:$0xff]
        %v1717 = vld [vmem:[%s5 + $0x20] sm:$0xff]
        %v1718 = vld [vmem:[%s5 + $0x28] sm:$0xff]
        %v1719 = vld [vmem:[%s5 + $0x30] sm:$0xff]
        %v1720 = vld [vmem:[%s5 + $0x38] sm:$0xff]
        %v1721 = vld [vmem:[%s5 + $0x40] sm:$0xff]
        %v1722 = vld [vmem:[%s5 + $0x48] sm:$0xff]
        %v1723 = vld [vmem:[%s5 + $0x50] sm:$0xff]
        %v1724 = vld [vmem:[%s5 + $0x58] sm:$0xff]
        %v1725 = vld [vmem:[%s5 + $0x60] sm:$0xff]
        %v1726 = vld [vmem:[%s5 + $0x68] sm:$0xff]
        %v1727 = vld [vmem:[%s5 + $0x70] sm:$0xff]
        %v1728 = vld [vmem:[%s5 + $0x78] sm:$0xff]
        %v1729 = vld [vmem:[%s5 + $0x80] sm:$0xff]
        %v1730 = vld [vmem:[%s5 + $0x88] sm:$0xff]
        %v1731 = vld [vmem:[%s5 + $0x90] sm:$0xff]
        %v1732 = vld [vmem:[%s5 + $0x98] sm:$0xff]
        %v1733 = vld [vmem:[%s5 + $0xa0] sm:$0xff]
        %v1734 = vld [vmem:[%s5 + $0xa8] sm:$0xff]
        %v1735 = vld [vmem:[%s5 + $0xb0] sm:$0xff]
        %v1736 = vld [vmem:[%s5 + $0xb8] sm:$0xff]
        %v1737 = vld [vmem:[%s5 + $0xc0] sm:$0xff]
        %v1738 = vld [vmem:[%s5 + $0xc8] sm:$0xff]
        %v1739 = vld [vmem:[%s5 + $0xd0] sm:$0xff]
        %v1740 = vld [vmem:[%s5 + $0xd8] sm:$0xff]
        %v1741 = vld [vmem:[%s5 + $0xe0] sm:$0xff]
        %v1742 = vld [vmem:[%s5 + $0xe8] sm:$0xff]
        %v1743 = vld [vmem:[%s5 + $0xf0] sm:$0xff]
        %v1744 = vld [vmem:[%s5 + $0xf8] sm:$0xff]
        %v1745 = vld [vmem:[%s5 + $0x100] sm:$0xff]
        %v1746 = vld [vmem:[%s5 + $0x108] sm:$0xff]
        %v1747 = vld [vmem:[%s5 + $0x110] sm:$0xff]
        %v1748 = vld [vmem:[%s5 + $0x118] sm:$0xff]
        %v1749 = vld [vmem:[%s5 + $0x120] sm:$0xff]
        %v1750 = vld [vmem:[%s5 + $0x128] sm:$0xff]
        %v1751 = vld [vmem:[%s5 + $0x130] sm:$0xff]
        %v1752 = vld [vmem:[%s5 + $0x138] sm:$0xff]
        %v1753 = vld [vmem:[%s5 + $0x140] sm:$0xff]
        %v1754 = vld [vmem:[%s5 + $0x148] sm:$0xff]
        %v1755 = vld [vmem:[%s5 + $0x150] sm:$0xff]
        %v1756 = vld [vmem:[%s5 + $0x158] sm:$0xff]
        %v1757 = vld [vmem:[%s5 + $0x160] sm:$0xff]
        %v1758 = vld [vmem:[%s5 + $0x168] sm:$0xff]
        %v1759 = vld [vmem:[%s5 + $0x170] sm:$0xff]
        %v1760 = vld [vmem:[%s5 + $0x178] sm:$0xff]
        %v1761 = vld [vmem:[%s5 + $0x180] sm:$0xff]
        %v1762 = vld [vmem:[%s5 + $0x188] sm:$0xff]
        %v1763 = vld [vmem:[%s5 + $0x190] sm:$0xff]
        %v1764 = vld [vmem:[%s5 + $0x198] sm:$0xff]
        %v1765 = vld [vmem:[%s5 + $0x1a0] sm:$0xff]
        %v1766 = vld [vmem:[%s5 + $0x1a8] sm:$0xff]
        %v1767 = vld [vmem:[%s5 + $0x1b0] sm:$0xff]
        %v1768 = vld [vmem:[%s5 + $0x1b8] sm:$0xff]
        %v1769 = vld [vmem:[%s5 + $0x1c0] sm:$0xff]
        %v1770 = vld [vmem:[%s5 + $0x1c8] sm:$0xff]
        %v1771 = vld [vmem:[%s5 + $0x1d0] sm:$0xff]
        %v1772 = vld [vmem:[%s5 + $0x1d8] sm:$0xff]
        %v1773 = vld [vmem:[%s5 + $0x1e0] sm:$0xff]
        %v1774 = vld [vmem:[%s5 + $0x1e8] sm:$0xff]
        %v1775 = vld [vmem:[%s5 + $0x1f0] sm:$0xff]
        %v1776 = vld [vmem:[%s5 + $0x1f8] sm:$0xff]
        %v1777 = vld [vmem:[%s5 + $0x200] sm:$0xff]
        %v1778 = vld [vmem:[%s5 + $0x208] sm:$0xff]
        %v1779 = vld [vmem:[%s5 + $0x210] sm:$0xff]
        %v1780 = vld [vmem:[%s5 + $0x218] sm:$0xff]
        %v1781 = vld [vmem:[%s5 + $0x220] sm:$0xff]
        %v1782 = vld [vmem:[%s5 + $0x228] sm:$0xff]
        %v1783 = vld [vmem:[%s5 + $0x230] sm:$0xff]
        %v1784 = vld [vmem:[%s5 + $0x238] sm:$0xff]
        %v1785 = vld [vmem:[%s5 + $0x240] sm:$0xff]
        %v1786 = vld [vmem:[%s5 + $0x248] sm:$0xff]
        %v1787 = vld [vmem:[%s5 + $0x250] sm:$0xff]
        %v1788 = vld [vmem:[%s5 + $0x258] sm:$0xff]
        %v1789 = vld [vmem:[%s5 + $0x260] sm:$0xff]
        %v1790 = vld [vmem:[%s5 + $0x268] sm:$0xff]
        %v1791 = vld [vmem:[%s5 + $0x270] sm:$0xff]
        %v1792 = vld [vmem:[%s5 + $0x278] sm:$0xff]
        %v1793 = vld [vmem:[%s5 + $0x280] sm:$0xff]
        %v1794 = vld [vmem:[%s5 + $0x288] sm:$0xff]
        %v1795 = vld [vmem:[%s5 + $0x290] sm:$0xff]
        %v1796 = vld [vmem:[%s5 + $0x298] sm:$0xff]
        %v1797 = vld [vmem:[%s5 + $0x2a0] sm:$0xff]
        %v1798 = vld [vmem:[%s5 + $0x2a8] sm:$0xff]
        %v1799 = vld [vmem:[%s5 + $0x2b0] sm:$0xff]
        %v1800 = vld [vmem:[%s5 + $0x2b8] sm:$0xff]
        %v1801 = vld [vmem:[%s5 + $0x2c0] sm:$0xff]
        %v1802 = vld [vmem:[%s5 + $0x2c8] sm:$0xff]
        %v1803 = vld [vmem:[%s5 + $0x2d0] sm:$0xff]
        %v1804 = vld [vmem:[%s5 + $0x2d8] sm:$0xff]
        %v1805 = vld [vmem:[%s5 + $0x2e0] sm:$0xff]
        %v1806 = vld [vmem:[%s5 + $0x2e8] sm:$0xff]
        %v1807 = vld [vmem:[%s5 + $0x2f0] sm:$0xff]
        %v1808 = vld [vmem:[%s5 + $0x2f8] sm:$0xff]
        %v1809 = vld [vmem:[%s5 + $0x300] sm:$0xff]
        %v1810 = vld [vmem:[%s5 + $0x308] sm:$0xff]
        %v1811 = vld [vmem:[%s5 + $0x310] sm:$0xff]
        %v1812 = vld [vmem:[%s5 + $0x318] sm:$0xff]
        %v1813 = vld [vmem:[%s5 + $0x320] sm:$0xff]
        %v1814 = vld [vmem:[%s5 + $0x328] sm:$0xff]
        %v1815 = vld [vmem:[%s5 + $0x330] sm:$0xff]
        %v1816 = vld [vmem:[%s5 + $0x338] sm:$0xff]
        %v1817 = vld [vmem:[%s5 + $0x340] sm:$0xff]
        %v1818 = vld [vmem:[%s5 + $0x348] sm:$0xff]
        %v1819 = vld [vmem:[%s5 + $0x350] sm:$0xff]
        %v1820 = vld [vmem:[%s5 + $0x358] sm:$0xff]
        %v1821 = vld [vmem:[%s5 + $0x360] sm:$0xff]
        %v1822 = vld [vmem:[%s5 + $0x368] sm:$0xff]
        %v1823 = vld [vmem:[%s5 + $0x370] sm:$0xff]
        %v1824 = vld [vmem:[%s5 + $0x378] sm:$0xff]
        %v1825 = vld [vmem:[%s5 + $0x380] sm:$0xff]
        %v1826 = vld [vmem:[%s5 + $0x388] sm:$0xff]
        %v1827 = vld [vmem:[%s5 + $0x390] sm:$0xff]
        %v1828 = vld [vmem:[%s5 + $0x398] sm:$0xff]
        %v1829 = vld [vmem:[%s5 + $0x3a0] sm:$0xff]
        %v1830 = vld [vmem:[%s5 + $0x3a8] sm:$0xff]
        %v1831 = vld [vmem:[%s5 + $0x3b0] sm:$0xff]
        %v1832 = vld [vmem:[%s5 + $0x3b8] sm:$0xff]
        %v1833 = vld [vmem:[%s5 + $0x3c0] sm:$0xff]
        %v1834 = vld [vmem:[%s5 + $0x3c8] sm:$0xff]
        %v1835 = vld [vmem:[%s5 + $0x3d0] sm:$0xff]
        %v1836 = vld [vmem:[%s5 + $0x3d8] sm:$0xff]
        %v1837 = vld [vmem:[%s5 + $0x3e0] sm:$0xff]
        %v1838 = vld [vmem:[%s5 + $0x3e8] sm:$0xff]
        %v1839 = vld [vmem:[%s5 + $0x3f0] sm:$0xff]
        %v1840 = vld [vmem:[%s5 + $0x3f8] sm:$0xff]
        %v1841 = vld [vmem:[%s5 + $0x400] sm:$0xff]
        %v1842 = vld [vmem:[%s5 + $0x408] sm:$0xff]
        %v1843 = vld [vmem:[%s5 + $0x410] sm:$0xff]
        %v1844 = vld [vmem:[%s5 + $0x418] sm:$0xff]
        %v1845 = vld [vmem:[%s5 + $0x420] sm:$0xff]
        %v1846 = vld [vmem:[%s5 + $0x428] sm:$0xff]
        %v1847 = vld [vmem:[%s5 + $0x430] sm:$0xff]
        %v1848 = vld [vmem:[%s5 + $0x438] sm:$0xff]
        %v1849 = vld [vmem:[%s5 + $0x440] sm:$0xff]
        %v1850 = vld [vmem:[%s5 + $0x448] sm:$0xff]
        %v1851 = vld [vmem:[%s5 + $0x450] sm:$0xff]
        %v1852 = vld [vmem:[%s5 + $0x458] sm:$0xff]
        %v1853 = vld [vmem:[%s5 + $0x460] sm:$0xff]
        %v1854 = vld [vmem:[%s5 + $0x468] sm:$0xff]
        %v1855 = vld [vmem:[%s5 + $0x470] sm:$0xff]
        %v1856 = vld [vmem:[%s5 + $0x478] sm:$0xff]
        %v1857 = vld [vmem:[%s5 + $0x480] sm:$0xff]
        %v1858 = vld [vmem:[%s5 + $0x488] sm:$0xff]
        %v1859 = vld [vmem:[%s5 + $0x490] sm:$0xff]
        %v1860 = vld [vmem:[%s5 + $0x498] sm:$0xff]
        %v1861 = vld [vmem:[%s5 + $0x4a0] sm:$0xff]
        %v1862 = vld [vmem:[%s5 + $0x4a8] sm:$0xff]
        %v1863 = vld [vmem:[%s5 + $0x4b0] sm:$0xff]
        %v1864 = vld [vmem:[%s5 + $0x4b8] sm:$0xff]
        %v1865 = vld [vmem:[%s5 + $0x4c0] sm:$0xff]
        %v1866 = vld [vmem:[%s5 + $0x4c8] sm:$0xff]
        %v1867 = vld [vmem:[%s5 + $0x4d0] sm:$0xff]
        %v1868 = vld [vmem:[%s5 + $0x4d8] sm:$0xff]
        %v1869 = vld [vmem:[%s5 + $0x4e0] sm:$0xff]
        %v1870 = vld [vmem:[%s5 + $0x4e8] sm:$0xff]
        %v1871 = vld [vmem:[%s5 + $0x4f0] sm:$0xff]
        %v1872 = vld [vmem:[%s5 + $0x4f8] sm:$0xff]
        %v1873 = vld [vmem:[%s5 + $0x500] sm:$0xff]
        %v1874 = vld [vmem:[%s5 + $0x508] sm:$0xff]
        %v1875 = vld [vmem:[%s5 + $0x510] sm:$0xff]
        %v1876 = vld [vmem:[%s5 + $0x518] sm:$0xff]
        %v1877 = vld [vmem:[%s5 + $0x520] sm:$0xff]
        %v1878 = vld [vmem:[%s5 + $0x528] sm:$0xff]
        %v1879 = vld [vmem:[%s5 + $0x530] sm:$0xff]
        %v1880 = vld [vmem:[%s5 + $0x538] sm:$0xff]
        %v1881 = vld [vmem:[%s5 + $0x540] sm:$0xff]
        %v1882 = vld [vmem:[%s5 + $0x548] sm:$0xff]
        %v1883 = vld [vmem:[%s5 + $0x550] sm:$0xff]
        %v1884 = vld [vmem:[%s5 + $0x558] sm:$0xff]
        %v1885 = vld [vmem:[%s5 + $0x560] sm:$0xff]
        %v1886 = vld [vmem:[%s5 + $0x568] sm:$0xff]
        %v1887 = vld [vmem:[%s5 + $0x570] sm:$0xff]
        %v1888 = vld [vmem:[%s5 + $0x578] sm:$0xff]
        %v1889 = vld [vmem:[%s5 + $0x580] sm:$0xff]
        %v1890 = vld [vmem:[%s5 + $0x588] sm:$0xff]
        %v1891 = vld [vmem:[%s5 + $0x590] sm:$0xff]
        %v1892 = vld [vmem:[%s5 + $0x598] sm:$0xff]
        %v1893 = vld [vmem:[%s5 + $0x5a0] sm:$0xff]
        %v1894 = vld [vmem:[%s5 + $0x5a8] sm:$0xff]
        %v1895 = vld [vmem:[%s5 + $0x5b0] sm:$0xff]
        %v1896 = vld [vmem:[%s5 + $0x5b8] sm:$0xff]
        %v1897 = vld [vmem:[%s5 + $0x5c0] sm:$0xff]
        %v1898 = vld [vmem:[%s5 + $0x5c8] sm:$0xff]
        %v1899 = vld [vmem:[%s5 + $0x5d0] sm:$0xff]
        %v1900 = vld [vmem:[%s5 + $0x5d8] sm:$0xff]
        %v1901 = vld [vmem:[%s5 + $0x5e0] sm:$0xff]
        %v1902 = vld [vmem:[%s5 + $0x5e8] sm:$0xff]
        %v1903 = vld [vmem:[%s5 + $0x5f0] sm:$0xff]
        %v1904 = vld [vmem:[%s5 + $0x5f8] sm:$0xff]
        %v1905 = vld [vmem:[%s5 + $0x600] sm:$0xff]
        %v1906 = vld [vmem:[%s5 + $0x608] sm:$0xff]
        %v1907 = vld [vmem:[%s5 + $0x610] sm:$0xff]
        %v1908 = vld [vmem:[%s5 + $0x618] sm:$0xff]
        %v1909 = vld [vmem:[%s5 + $0x620] sm:$0xff]
        %v1910 = vld [vmem:[%s5 + $0x628] sm:$0xff]
        %v1911 = vld [vmem:[%s5 + $0x630] sm:$0xff]
        %v1912 = vld [vmem:[%s5 + $0x638] sm:$0xff]
        %v1913 = vld [vmem:[%s5 + $0x640] sm:$0xff]
        %v1914 = vld [vmem:[%s5 + $0x648] sm:$0xff]
        %v1915 = vld [vmem:[%s5 + $0x650] sm:$0xff]
        %v1916 = vld [vmem:[%s5 + $0x658] sm:$0xff]
        %v1917 = vld [vmem:[%s5 + $0x660] sm:$0xff]
        %v1918 = vld [vmem:[%s5 + $0x668] sm:$0xff]
        %v1919 = vld [vmem:[%s5 + $0x670] sm:$0xff]
        %v1920 = vld [vmem:[%s5 + $0x678] sm:$0xff]
        %v1921 = vld [vmem:[%s5 + $0x680] sm:$0xff]
        %v1922 = vld [vmem:[%s5 + $0x688] sm:$0xff]
        %v1923 = vld [vmem:[%s5 + $0x690] sm:$0xff]
        %v1924 = vld [vmem:[%s5 + $0x698] sm:$0xff]
        %v1925 = vld [vmem:[%s5 + $0x6a0] sm:$0xff]
        %v1926 = vld [vmem:[%s5 + $0x6a8] sm:$0xff]
        %v1927 = vld [vmem:[%s5 + $0x6b0] sm:$0xff]
        %v1928 = vld [vmem:[%s5 + $0x6b8] sm:$0xff]
        %v1929 = vld [vmem:[%s5 + $0x6c0] sm:$0xff]
        %v1930 = vld [vmem:[%s5 + $0x6c8] sm:$0xff]
        %v1931 = vld [vmem:[%s5 + $0x6d0] sm:$0xff]
        %v1932 = vld [vmem:[%s5 + $0x6d8] sm:$0xff]
        %v1933 = vld [vmem:[%s5 + $0x6e0] sm:$0xff]
        %v1934 = vld [vmem:[%s5 + $0x6e8] sm:$0xff]
        %v1935 = vld [vmem:[%s5 + $0x6f0] sm:$0xff]
        %v1936 = vld [vmem:[%s5 + $0x6f8] sm:$0xff]
        %v1937 = vld [vmem:[%s5 + $0x700] sm:$0xff]
        %v1938 = vld [vmem:[%s5 + $0x708] sm:$0xff]
        %v1939 = vld [vmem:[%s5 + $0x710] sm:$0xff]
        %v1940 = vld [vmem:[%s5 + $0x718] sm:$0xff]
        %v1941 = vld [vmem:[%s5 + $0x720] sm:$0xff]
        %v1942 = vld [vmem:[%s5 + $0x728] sm:$0xff]
        %v1943 = vld [vmem:[%s5 + $0x730] sm:$0xff]
        %v1944 = vld [vmem:[%s5 + $0x738] sm:$0xff]
        %v1945 = vld [vmem:[%s5 + $0x740] sm:$0xff]
        %v1946 = vld [vmem:[%s5 + $0x748] sm:$0xff]
        %v1947 = vld [vmem:[%s5 + $0x750] sm:$0xff]
        %v1948 = vld [vmem:[%s5 + $0x758] sm:$0xff]
        %v1949 = vld [vmem:[%s5 + $0x760] sm:$0xff]
        %v1950 = vld [vmem:[%s5 + $0x768] sm:$0xff]
        %v1951 = vld [vmem:[%s5 + $0x770] sm:$0xff]
        %v1952 = vld [vmem:[%s5 + $0x778] sm:$0xff]
        %v1953 = vld [vmem:[%s5 + $0x780] sm:$0xff]
        %v1954 = vld [vmem:[%s5 + $0x788] sm:$0xff]
        %v1955 = vld [vmem:[%s5 + $0x790] sm:$0xff]
        %v1956 = vld [vmem:[%s5 + $0x798] sm:$0xff]
        %v1957 = vld [vmem:[%s5 + $0x7a0] sm:$0xff]
        %v1958 = vld [vmem:[%s5 + $0x7a8] sm:$0xff]
        %v1959 = vld [vmem:[%s5 + $0x7b0] sm:$0xff]
        %v1960 = vld [vmem:[%s5 + $0x7b8] sm:$0xff]
        %v1961 = vld [vmem:[%s5 + $0x7c0] sm:$0xff]
        %v1962 = vld [vmem:[%s5 + $0x7c8] sm:$0xff]
        %v1963 = vld [vmem:[%s5 + $0x7d0] sm:$0xff]
        %v1964 = vld [vmem:[%s5 + $0x7d8] sm:$0xff]
        %v1965 = vld [vmem:[%s5 + $0x7e0] sm:$0xff]
        %v1966 = vld [vmem:[%s5 + $0x7e8] sm:$0xff]
        %v1967 = vld [vmem:[%s5 + $0x7f0] sm:$0xff]
        %v1968 = vld [vmem:[%s5 + $0x7f8] sm:$0xff]
        %v1969 = vld [vmem:[%s5 + $0x800] sm:$0xff]
        %v1970 = vld [vmem:[%s5 + $0x808] sm:$0xff]
        %v1971 = vld [vmem:[%s5 + $0x810] sm:$0xff]
        %v1972 = vld [vmem:[%s5 + $0x818] sm:$0xff]
        %v1973 = vld [vmem:[%s5 + $0x820] sm:$0xff]
        %v1974 = vld [vmem:[%s5 + $0x828] sm:$0xff]
        %v1975 = vld [vmem:[%s5 + $0x830] sm:$0xff]
        %v1976 = vld [vmem:[%s5 + $0x838] sm:$0xff]
        %v1977 = vld [vmem:[%s5 + $0x840] sm:$0xff]
        %v1978 = vld [vmem:[%s5 + $0x848] sm:$0xff]
        %v1979 = vld [vmem:[%s5 + $0x850] sm:$0xff]
        %v1980 = vld [vmem:[%s5 + $0x858] sm:$0xff]
        %v1981 = vld [vmem:[%s5 + $0x860] sm:$0xff]
        %v1982 = vld [vmem:[%s5 + $0x868] sm:$0xff]
        %v1983 = vld [vmem:[%s5 + $0x870] sm:$0xff]
        %v1984 = vld [vmem:[%s5 + $0x878] sm:$0xff]
        %v1985 = vld [vmem:[%s5 + $0x880] sm:$0xff]
        %v1986 = vld [vmem:[%s5 + $0x888] sm:$0xff]
        %v1987 = vld [vmem:[%s5 + $0x890] sm:$0xff]
        %v1988 = vld [vmem:[%s5 + $0x898] sm:$0xff]
        %v1989 = vld [vmem:[%s5 + $0x8a0] sm:$0xff]
        %v1990 = vld [vmem:[%s5 + $0x8a8] sm:$0xff]
        %v1991 = vld [vmem:[%s5 + $0x8b0] sm:$0xff]
        %v1992 = vld [vmem:[%s5 + $0x8b8] sm:$0xff]
        %v1993 = vld [vmem:[%s5 + $0x8c0] sm:$0xff]
        %v1994 = vld [vmem:[%s5 + $0x8c8] sm:$0xff]
        %v1995 = vld [vmem:[%s5 + $0x8d0] sm:$0xff]
        %v1996 = vld [vmem:[%s5 + $0x8d8] sm:$0xff]
        %v1997 = vld [vmem:[%s5 + $0x8e0] sm:$0xff]
        %v1998 = vld [vmem:[%s5 + $0x8e8] sm:$0xff]
        %v1999 = vld [vmem:[%s5 + $0x8f0] sm:$0xff]
        %v2000 = vld [vmem:[%s5 + $0x8f8] sm:$0xff]
        %v2001 = vld [vmem:[%s5 + $0x900] sm:$0xff]
        %v2002 = vld [vmem:[%s5 + $0x908] sm:$0xff]
        %v2003 = vld [vmem:[%s5 + $0x910] sm:$0xff]
        %v2004 = vld [vmem:[%s5 + $0x918] sm:$0xff]
        %v2005 = vld [vmem:[%s5 + $0x920] sm:$0xff]
        %v2006 = vld [vmem:[%s5 + $0x928] sm:$0xff]
        %v2007 = vld [vmem:[%s5 + $0x930] sm:$0xff]
        %v2008 = vld [vmem:[%s5 + $0x938] sm:$0xff]
        %v2009 = vld [vmem:[%s5 + $0x940] sm:$0xff]
        %v2010 = vld [vmem:[%s5 + $0x948] sm:$0xff]
        %v2011 = vld [vmem:[%s5 + $0x950] sm:$0xff]
        %v2012 = vld [vmem:[%s5 + $0x958] sm:$0xff]
        %v2013 = vld [vmem:[%s5 + $0x960] sm:$0xff]
        %v2014 = vld [vmem:[%s5 + $0x968] sm:$0xff]
        %v2015 = vld [vmem:[%s5 + $0x970] sm:$0xff]
        %v2016 = vld [vmem:[%s5 + $0x978] sm:$0xff]
        %v2017 = vld [vmem:[%s5 + $0x980] sm:$0xff]
        %v2018 = vld [vmem:[%s5 + $0x988] sm:$0xff]
        %v2019 = vld [vmem:[%s5 + $0x990] sm:$0xff]
        %v2020 = vld [vmem:[%s5 + $0x998] sm:$0xff]
        %v2021 = vld [vmem:[%s5 + $0x9a0] sm:$0xff]
        %v2022 = vld [vmem:[%s5 + $0x9a8] sm:$0xff]
        %v2023 = vld [vmem:[%s5 + $0x9b0] sm:$0xff]
        %v2024 = vld [vmem:[%s5 + $0x9b8] sm:$0xff]
        %v2025 = vld [vmem:[%s5 + $0x9c0] sm:$0xff]
        %v2026 = vld [vmem:[%s5 + $0x9c8] sm:$0xff]
        %v2027 = vld [vmem:[%s5 + $0x9d0] sm:$0xff]
        %v2028 = vld [vmem:[%s5 + $0x9d8] sm:$0xff]
        %v2029 = vld [vmem:[%s5 + $0x9e0] sm:$0xff]
        %v2030 = vld [vmem:[%s5 + $0x9e8] sm:$0xff]
        %v2031 = vld [vmem:[%s5 + $0x9f0] sm:$0xff]
        %v2032 = vld [vmem:[%s5 + $0x9f8] sm:$0xff]
        %v2033 = vld [vmem:[%s5 + $0xa00] sm:$0xff]
        %v2034 = vld [vmem:[%s5 + $0xa08] sm:$0xff]
        %v2035 = vld [vmem:[%s5 + $0xa10] sm:$0xff]
        %v2036 = vld [vmem:[%s5 + $0xa18] sm:$0xff]
        %v2037 = vld [vmem:[%s5 + $0xa20] sm:$0xff]
        %v2038 = vld [vmem:[%s5 + $0xa28] sm:$0xff]
        %v2039 = vld [vmem:[%s5 + $0xa30] sm:$0xff]
        %v2040 = vld [vmem:[%s5 + $0xa38] sm:$0xff]
        %v2041 = vld [vmem:[%s5 + $0xa40] sm:$0xff]
        %v2042 = vld [vmem:[%s5 + $0xa48] sm:$0xff]
        %v2043 = vld [vmem:[%s5 + $0xa50] sm:$0xff]
        %v2044 = vld [vmem:[%s5 + $0xa58] sm:$0xff]
        %v2045 = vld [vmem:[%s5 + $0xa60] sm:$0xff]
        %v2046 = vld [vmem:[%s5 + $0xa68] sm:$0xff]
        %v2047 = vld [vmem:[%s5 + $0xa70] sm:$0xff]
        %v2048 = vld [vmem:[%s5 + $0xa78] sm:$0xff]
        %v2049 = vld [vmem:[%s5 + $0xa80] sm:$0xff]
        %v2050 = vld [vmem:[%s5 + $0xa88] sm:$0xff]
        %v2051 = vld [vmem:[%s5 + $0xa90] sm:$0xff]
        %v2052 = vld [vmem:[%s5 + $0xa98] sm:$0xff]
        %v2053 = vld [vmem:[%s5 + $0xaa0] sm:$0xff]
        %v2054 = vld [vmem:[%s5 + $0xaa8] sm:$0xff]
        %v2055 = vld [vmem:[%s5 + $0xab0] sm:$0xff]
        %v2056 = vld [vmem:[%s5 + $0xab8] sm:$0xff]
        %v2057 = vld [vmem:[%s5 + $0xac0] sm:$0xff]
        %v2058 = vld [vmem:[%s5 + $0xac8] sm:$0xff]
        %v2059 = vld [vmem:[%s5 + $0xad0] sm:$0xff]
        %v2060 = vld [vmem:[%s5 + $0xad8] sm:$0xff]
        %v2061 = vld [vmem:[%s5 + $0xae0] sm:$0xff]
        %v2062 = vld [vmem:[%s5 + $0xae8] sm:$0xff]
        %v2063 = vld [vmem:[%s5 + $0xaf0] sm:$0xff]
        %v2064 = vld [vmem:[%s5 + $0xaf8] sm:$0xff]
        %v2065 = vld [vmem:[%s5 + $0xb00] sm:$0xff]
        %v2066 = vld [vmem:[%s5 + $0xb08] sm:$0xff]
        %v2067 = vld [vmem:[%s5 + $0xb10] sm:$0xff]
        %v2068 = vld [vmem:[%s5 + $0xb18] sm:$0xff]
        %v2069 = vld [vmem:[%s5 + $0xb20] sm:$0xff]
        %v2070 = vld [vmem:[%s5 + $0xb28] sm:$0xff]
        %v2071 = vld [vmem:[%s5 + $0xb30] sm:$0xff]
        %v2072 = vld [vmem:[%s5 + $0xb38] sm:$0xff]
        %v2073 = vld [vmem:[%s5 + $0xb40] sm:$0xff]
        %v2074 = vld [vmem:[%s5 + $0xb48] sm:$0xff]
        %v2075 = vld [vmem:[%s5 + $0xb50] sm:$0xff]
        %v2076 = vld [vmem:[%s5 + $0xb58] sm:$0xff]
        %v2077 = vld [vmem:[%s5 + $0xb60] sm:$0xff]
        %v2078 = vld [vmem:[%s5 + $0xb68] sm:$0xff]
        %v2079 = vld [vmem:[%s5 + $0xb70] sm:$0xff]
        %v2080 = vld [vmem:[%s5 + $0xb78] sm:$0xff]
        %v2081 = vld [vmem:[%s5 + $0xb80] sm:$0xff]
        %v2082 = vld [vmem:[%s5 + $0xb88] sm:$0xff]
        %v2083 = vld [vmem:[%s5 + $0xb90] sm:$0xff]
        %v2084 = vld [vmem:[%s5 + $0xb98] sm:$0xff]
        %v2085 = vld [vmem:[%s5 + $0xba0] sm:$0xff]
        %v2086 = vld [vmem:[%s5 + $0xba8] sm:$0xff]
        %v2087 = vld [vmem:[%s5 + $0xbb0] sm:$0xff]
        %v2088 = vld [vmem:[%s5 + $0xbb8] sm:$0xff]
        %v2089 = vld [vmem:[%s5 + $0xbc0] sm:$0xff]
        %v2090 = vld [vmem:[%s5 + $0xbc8] sm:$0xff]
        %v2091 = vld [vmem:[%s5 + $0xbd0] sm:$0xff]
        %v2092 = vld [vmem:[%s5 + $0xbd8] sm:$0xff]
        %v2093 = vld [vmem:[%s5 + $0xbe0] sm:$0xff]
        %v2094 = vld [vmem:[%s5 + $0xbe8] sm:$0xff]
        %v2095 = vld [vmem:[%s5 + $0xbf0] sm:$0xff]
        %v2096 = vld [vmem:[%s5 + $0xbf8] sm:$0xff]
        %v2097 = vld [vmem:[%s5 + $0xc00] sm:$0xff]
        %v2098 = vld [vmem:[%s5 + $0xc08] sm:$0xff]
        %v2099 = vld [vmem:[%s5 + $0xc10] sm:$0xff]
        %v2100 = vld [vmem:[%s5 + $0xc18] sm:$0xff]
        %v2101 = vld [vmem:[%s5 + $0xc20] sm:$0xff]
        %v2102 = vld [vmem:[%s5 + $0xc28] sm:$0xff]
        %v2103 = vld [vmem:[%s5 + $0xc30] sm:$0xff]
        %v2104 = vld [vmem:[%s5 + $0xc38] sm:$0xff]
        %v2105 = vld [vmem:[%s5 + $0xc40] sm:$0xff]
        %v2106 = vld [vmem:[%s5 + $0xc48] sm:$0xff]
        %v2107 = vld [vmem:[%s5 + $0xc50] sm:$0xff]
        %v2108 = vld [vmem:[%s5 + $0xc58] sm:$0xff]
        %v2109 = vld [vmem:[%s5 + $0xc60] sm:$0xff]
        %v2110 = vld [vmem:[%s5 + $0xc68] sm:$0xff]
        %v2111 = vld [vmem:[%s5 + $0xc70] sm:$0xff]
        %v2112 = vld [vmem:[%s5 + $0xc78] sm:$0xff]
        %v2113 = vld [vmem:[%s5 + $0xc80] sm:$0xff]
        %v2114 = vld [vmem:[%s5 + $0xc88] sm:$0xff]
        %v2115 = vld [vmem:[%s5 + $0xc90] sm:$0xff]
        %v2116 = vld [vmem:[%s5 + $0xc98] sm:$0xff]
        %v2117 = vld [vmem:[%s5 + $0xca0] sm:$0xff]
        %v2118 = vld [vmem:[%s5 + $0xca8] sm:$0xff]
        %v2119 = vld [vmem:[%s5 + $0xcb0] sm:$0xff]
        %v2120 = vld [vmem:[%s5 + $0xcb8] sm:$0xff]
        %v2121 = vld [vmem:[%s5 + $0xcc0] sm:$0xff]
        %v2122 = vld [vmem:[%s5 + $0xcc8] sm:$0xff]
        %v2123 = vld [vmem:[%s5 + $0xcd0] sm:$0xff]
        %v2124 = vld [vmem:[%s5 + $0xcd8] sm:$0xff]
        %v2125 = vld [vmem:[%s5 + $0xce0] sm:$0xff]
        %v2126 = vld [vmem:[%s5 + $0xce8] sm:$0xff]
        %v2127 = vld [vmem:[%s5 + $0xcf0] sm:$0xff]
        %v2128 = vld [vmem:[%s5 + $0xcf8] sm:$0xff]
        %v2129 = vld [vmem:[%s5 + $0xd00] sm:$0xff]
        %v2130 = vld [vmem:[%s5 + $0xd08] sm:$0xff]
        %v2131 = vld [vmem:[%s5 + $0xd10] sm:$0xff]
        %v2132 = vld [vmem:[%s5 + $0xd18] sm:$0xff]
        %v2133 = vld [vmem:[%s5 + $0xd20] sm:$0xff]
        %v2134 = vld [vmem:[%s5 + $0xd28] sm:$0xff]
        %v2135 = vld [vmem:[%s5 + $0xd30] sm:$0xff]
        %v2136 = vld [vmem:[%s5 + $0xd38] sm:$0xff]
        %v2137 = vld [vmem:[%s5 + $0xd40] sm:$0xff]
        %v2138 = vld [vmem:[%s5 + $0xd48] sm:$0xff]
        %v2139 = vld [vmem:[%s5 + $0xd50] sm:$0xff]
        %v2140 = vld [vmem:[%s5 + $0xd58] sm:$0xff]
        %v2141 = vld [vmem:[%s5 + $0xd60] sm:$0xff]
        %v2142 = vld [vmem:[%s5 + $0xd68] sm:$0xff]
        %v2143 = vld [vmem:[%s5 + $0xd70] sm:$0xff]
        %v2144 = vld [vmem:[%s5 + $0xd78] sm:$0xff]
        %v2145 = vld [vmem:[%s5 + $0xd80] sm:$0xff]
        %v2146 = vld [vmem:[%s5 + $0xd88] sm:$0xff]
        %v2147 = vld [vmem:[%s5 + $0xd90] sm:$0xff]
        %v2148 = vld [vmem:[%s5 + $0xd98] sm:$0xff]
        %v2149 = vld [vmem:[%s5 + $0xda0] sm:$0xff]
        %v2150 = vld [vmem:[%s5 + $0xda8] sm:$0xff]
        %v2151 = vld [vmem:[%s5 + $0xdb0] sm:$0xff]
        %v2152 = vld [vmem:[%s5 + $0xdb8] sm:$0xff]
        %v2153 = vld [vmem:[%s5 + $0xdc0] sm:$0xff]
        %v2154 = vld [vmem:[%s5 + $0xdc8] sm:$0xff]
        %v2155 = vld [vmem:[%s5 + $0xdd0] sm:$0xff]
        %v2156 = vld [vmem:[%s5 + $0xdd8] sm:$0xff]
        %v2157 = vld [vmem:[%s5 + $0xde0] sm:$0xff]
        %v2158 = vld [vmem:[%s5 + $0xde8] sm:$0xff]
        %v2159 = vld [vmem:[%s5 + $0xdf0] sm:$0xff]
        %v2160 = vld [vmem:[%s5 + $0xdf8] sm:$0xff]
        %v2161 = vld [vmem:[%s5 + $0xe00] sm:$0xff]
        %v2162 = vld [vmem:[%s5 + $0xe08] sm:$0xff]
        %v2163 = vld [vmem:[%s5 + $0xe10] sm:$0xff]
        %v2164 = vld [vmem:[%s5 + $0xe18] sm:$0xff]
        %v2165 = vld [vmem:[%s5 + $0xe20] sm:$0xff]
        %v2166 = vld [vmem:[%s5 + $0xe28] sm:$0xff]
        %v2167 = vld [vmem:[%s5 + $0xe30] sm:$0xff]
        %v2168 = vld [vmem:[%s5 + $0xe38] sm:$0xff]
        %v2169 = vld [vmem:[%s5 + $0xe40] sm:$0xff]
        %v2170 = vld [vmem:[%s5 + $0xe48] sm:$0xff]
        %v2171 = vld [vmem:[%s5 + $0xe50] sm:$0xff]
        %v2172 = vld [vmem:[%s5 + $0xe58] sm:$0xff]
        %v2173 = vld [vmem:[%s5 + $0xe60] sm:$0xff]
        %v2174 = vld [vmem:[%s5 + $0xe68] sm:$0xff]
        %v2175 = vld [vmem:[%s5 + $0xe70] sm:$0xff]
        %v2176 = vld [vmem:[%s5 + $0xe78] sm:$0xff]
        %v2177 = vld [vmem:[%s5 + $0xe80] sm:$0xff]
        %v2178 = vld [vmem:[%s5 + $0xe88] sm:$0xff]
        %v2179 = vld [vmem:[%s5 + $0xe90] sm:$0xff]
        %v2180 = vld [vmem:[%s5 + $0xe98] sm:$0xff]
        %v2181 = vld [vmem:[%s5 + $0xea0] sm:$0xff]
        %v2182 = vld [vmem:[%s5 + $0xea8] sm:$0xff]
        %v2183 = vld [vmem:[%s5 + $0xeb0] sm:$0xff]
        %v2184 = vld [vmem:[%s5 + $0xeb8] sm:$0xff]
        %v2185 = vld [vmem:[%s5 + $0xec0] sm:$0xff]
        %v2186 = vld [vmem:[%s5 + $0xec8] sm:$0xff]
        %v2187 = vld [vmem:[%s5 + $0xed0] sm:$0xff]
        %v2188 = vld [vmem:[%s5 + $0xed8] sm:$0xff]
        %v2189 = vld [vmem:[%s5 + $0xee0] sm:$0xff]
        %v2190 = vld [vmem:[%s5 + $0xee8] sm:$0xff]
        %v2191 = vld [vmem:[%s5 + $0xef0] sm:$0xff]
        %v2192 = vld [vmem:[%s5 + $0xef8] sm:$0xff]
        %v2193 = vld [vmem:[%s5 + $0xf00] sm:$0xff]
        %v2194 = vld [vmem:[%s5 + $0xf08] sm:$0xff]
        %v2195 = vld [vmem:[%s5 + $0xf10] sm:$0xff]
        %v2196 = vld [vmem:[%s5 + $0xf18] sm:$0xff]
        %v2197 = vld [vmem:[%s5 + $0xf20] sm:$0xff]
        %v2198 = vld [vmem:[%s5 + $0xf28] sm:$0xff]
        %v2199 = vld [vmem:[%s5 + $0xf30] sm:$0xff]
        %v2200 = vld [vmem:[%s5 + $0xf38] sm:$0xff]
        %v2201 = vld [vmem:[%s5 + $0xf40] sm:$0xff]
        %v2202 = vld [vmem:[%s5 + $0xf48] sm:$0xff]
        %v2203 = vld [vmem:[%s5 + $0xf50] sm:$0xff]
        %v2204 = vld [vmem:[%s5 + $0xf58] sm:$0xff]
        %v2205 = vld [vmem:[%s5 + $0xf60] sm:$0xff]
        %v2206 = vld [vmem:[%s5 + $0xf68] sm:$0xff]
        %v2207 = vld [vmem:[%s5 + $0xf70] sm:$0xff]
        %v2208 = vld [vmem:[%s5 + $0xf78] sm:$0xff]
        %v2209 = vld [vmem:[%s5 + $0xf80] sm:$0xff]
        %v2210 = vld [vmem:[%s5 + $0xf88] sm:$0xff]
        %v2211 = vld [vmem:[%s5 + $0xf90] sm:$0xff]
        %v2212 = vld [vmem:[%s5 + $0xf98] sm:$0xff]
        %v2213 = vld [vmem:[%s5 + $0xfa0] sm:$0xff]
        %v2214 = vld [vmem:[%s5 + $0xfa8] sm:$0xff]
        %v2215 = vld [vmem:[%s5 + $0xfb0] sm:$0xff]
        %v2216 = vld [vmem:[%s5 + $0xfb8] sm:$0xff]
        %v2217 = vld [vmem:[%s5 + $0xfc0] sm:$0xff]
        %v2218 = vld [vmem:[%s5 + $0xfc8] sm:$0xff]
        %v2219 = vld [vmem:[%s5 + $0xfd0] sm:$0xff]
        %v2220 = vld [vmem:[%s5 + $0xfd8] sm:$0xff]
        %v2221 = vld [vmem:[%s5 + $0xfe0] sm:$0xff]
        %v2222 = vld [vmem:[%s5 + $0xfe8] sm:$0xff]
        %v2223 = vld [vmem:[%s5 + $0xff0] sm:$0xff]
        %v2224 = vld [vmem:[%s5 + $0xff8] sm:$0xff]
        %v2225 = vld [vmem:[%s6] sm:$0xf]
        %v2228 = vcombine.high %v1711, %v1711
        %v2230 = vunpack.c.l.s4 1966171168
        %v2231 = vunpack.c.0.s8 %v2230
        %v2232 = vlaneseq
        %v2233 = vshrl.u32 %v2232, 7
        %v2234 = vsub.s32 %v2231, %v2233
        %v2235 = vrot.slane %v1711, %v2234
        %v2237 = vunpack.c.l.s4 1966171168
        %v2238 = vunpack.c.0.s8 %v2237
        %v2239 = vlaneseq
        %v2240 = vshrl.u32 %v2239, 7
        %v2241 = vsub.s32 %v2238, %v2240
        %v2242 = vrot.slane %v2228, %v2241
        %v2243 = vcombine.high %v2235, %v2235
        %v2244 = vcombine.high %v2242, %v2242
        %v2246 = vunpack.c.l.s4 1966171168
        %v2247 = vunpack.c.0.s8 %v2246
        %v2248 = vlaneseq
        %v2249 = vshrl.u32 %v2248, 7
        %v2250 = vsub.s32 %v2247, %v2249
        %v2251 = vrot.slane %v2235, %v2250
        %v2253 = vunpack.c.l.s4 1966171168
        %v2254 = vunpack.c.0.s8 %v2253
        %v2255 = vlaneseq
        %v2256 = vshrl.u32 %v2255, 7
        %v2257 = vsub.s32 %v2254, %v2256
        %v2258 = vrot.slane %v2242, %v2257
        %v2260 = vunpack.c.l.s4 1966171168
        %v2261 = vunpack.c.0.s8 %v2260
        %v2262 = vlaneseq
        %v2263 = vshrl.u32 %v2262, 7
        %v2264 = vsub.s32 %v2261, %v2263
        %v2265 = vrot.slane %v2243, %v2264
        %v2267 = vunpack.c.l.s4 1966171168
        %v2268 = vunpack.c.0.s8 %v2267
        %v2269 = vlaneseq
        %v2270 = vshrl.u32 %v2269, 7
        %v2271 = vsub.s32 %v2268, %v2270
        %v2272 = vrot.slane %v2244, %v2271
        %v2273 = vcombine.high %v2251, %v2251
        %v2274 = vcombine.high %v2258, %v2258
        %v2275 = vcombine.high %v2265, %v2265
        %v2276 = vcombine.high %v2272, %v2272
        %v2277 = vcombine.high %v1712, %v1712
        %v2279 = vunpack.c.l.s4 1966171168
        %v2280 = vunpack.c.0.s8 %v2279
        %v2281 = vlaneseq
        %v2282 = vshrl.u32 %v2281, 7
        %v2283 = vsub.s32 %v2280, %v2282
        %v2284 = vrot.slane %v1712, %v2283
        %v2286 = vunpack.c.l.s4 1966171168
        %v2287 = vunpack.c.0.s8 %v2286
        %v2288 = vlaneseq
        %v2289 = vshrl.u32 %v2288, 7
        %v2290 = vsub.s32 %v2287, %v2289
        %v2291 = vrot.slane %v2277, %v2290
        %v2292 = vcombine.high %v2284, %v2284
        %v2293 = vcombine.high %v2291, %v2291
        %v2295 = vunpack.c.l.s4 1966171168
        %v2296 = vunpack.c.0.s8 %v2295
        %v2297 = vlaneseq
        %v2298 = vshrl.u32 %v2297, 7
        %v2299 = vsub.s32 %v2296, %v2298
        %v2300 = vrot.slane %v2284, %v2299
        %v2302 = vunpack.c.l.s4 1966171168
        %v2303 = vunpack.c.0.s8 %v2302
        %v2304 = vlaneseq
        %v2305 = vshrl.u32 %v2304, 7
        %v2306 = vsub.s32 %v2303, %v2305
        %v2307 = vrot.slane %v2291, %v2306
        %v2309 = vunpack.c.l.s4 1966171168
        %v2310 = vunpack.c.0.s8 %v2309
        %v2311 = vlaneseq
        %v2312 = vshrl.u32 %v2311, 7
        %v2313 = vsub.s32 %v2310, %v2312
        %v2314 = vrot.slane %v2292, %v2313
        %v2316 = vunpack.c.l.s4 1966171168
        %v2317 = vunpack.c.0.s8 %v2316
        %v2318 = vlaneseq
        %v2319 = vshrl.u32 %v2318, 7
        %v2320 = vsub.s32 %v2317, %v2319
        %v2321 = vrot.slane %v2293, %v2320
        %v2322 = vcombine.high %v2300, %v2300
        %v2323 = vcombine.high %v2307, %v2307
        %v2324 = vcombine.high %v2314, %v2314
        %v2325 = vcombine.high %v2321, %v2321
        %v2854 = vunpack.c.l.b16 %v1713
        %v2855 = vunpack.c.h.b16 %v1713
        %v2856 = vunpack.c.l.b16 %v1714
        %v2857 = vunpack.c.h.b16 %v1714
        %v2858 = vunpack.c.l.b16 %v1715
        %v2859 = vunpack.c.h.b16 %v1715
        %v2860 = vunpack.c.l.b16 %v1716
        %v2861 = vunpack.c.h.b16 %v1716
        %v2862 = vunpack.c.l.b16 %v1717
        %v2863 = vunpack.c.h.b16 %v1717
        %v2864 = vunpack.c.l.b16 %v1718
        %v2865 = vunpack.c.h.b16 %v1718
        %v2866 = vunpack.c.l.b16 %v1719
        %v2867 = vunpack.c.h.b16 %v1719
        %v2868 = vunpack.c.l.b16 %v1720
        %v2869 = vunpack.c.h.b16 %v1720
        %v2870 = vunpack.c.l.b16 %v1721
        %v2871 = vunpack.c.h.b16 %v1721
        %v2872 = vunpack.c.l.b16 %v1722
        %v2873 = vunpack.c.h.b16 %v1722
        %v2874 = vunpack.c.l.b16 %v1723
        %v2875 = vunpack.c.h.b16 %v1723
        %v2876 = vunpack.c.l.b16 %v1724
        %v2877 = vunpack.c.h.b16 %v1724
        %v2878 = vunpack.c.l.b16 %v1725
        %v2879 = vunpack.c.h.b16 %v1725
        %v2880 = vunpack.c.l.b16 %v1726
        %v2881 = vunpack.c.h.b16 %v1726
        %v2882 = vunpack.c.l.b16 %v1727
        %v2883 = vunpack.c.h.b16 %v1727
        %v2884 = vunpack.c.l.b16 %v1728
        %v2885 = vunpack.c.h.b16 %v1728
        %v2886 = vunpack.c.l.b16 %v1729
        %v2887 = vunpack.c.h.b16 %v1729
        %v2888 = vunpack.c.l.b16 %v1730
        %v2889 = vunpack.c.h.b16 %v1730
        %v2890 = vunpack.c.l.b16 %v1731
        %v2891 = vunpack.c.h.b16 %v1731
        %v2892 = vunpack.c.l.b16 %v1732
        %v2893 = vunpack.c.h.b16 %v1732
        %v2894 = vunpack.c.l.b16 %v1733
        %v2895 = vunpack.c.h.b16 %v1733
        %v2896 = vunpack.c.l.b16 %v1734
        %v2897 = vunpack.c.h.b16 %v1734
        %v2898 = vunpack.c.l.b16 %v1735
        %v2899 = vunpack.c.h.b16 %v1735
        %v2900 = vunpack.c.l.b16 %v1736
        %v2901 = vunpack.c.h.b16 %v1736
        %v2902 = vunpack.c.l.b16 %v1737
        %v2903 = vunpack.c.h.b16 %v1737
        %v2904 = vunpack.c.l.b16 %v1738
        %v2905 = vunpack.c.h.b16 %v1738
        %v2906 = vunpack.c.l.b16 %v1739
        %v2907 = vunpack.c.h.b16 %v1739
        %v2908 = vunpack.c.l.b16 %v1740
        %v2909 = vunpack.c.h.b16 %v1740
        %v2910 = vunpack.c.l.b16 %v1741
        %v2911 = vunpack.c.h.b16 %v1741
        %v2912 = vunpack.c.l.b16 %v1742
        %v2913 = vunpack.c.h.b16 %v1742
        %v2914 = vunpack.c.l.b16 %v1743
        %v2915 = vunpack.c.h.b16 %v1743
        %v2916 = vunpack.c.l.b16 %v1744
        %v2917 = vunpack.c.h.b16 %v1744
        %v2918 = vunpack.c.l.b16 %v1745
        %v2919 = vunpack.c.h.b16 %v1745
        %v2920 = vunpack.c.l.b16 %v1746
        %v2921 = vunpack.c.h.b16 %v1746
        %v2922 = vunpack.c.l.b16 %v1747
        %v2923 = vunpack.c.h.b16 %v1747
        %v2924 = vunpack.c.l.b16 %v1748
        %v2925 = vunpack.c.h.b16 %v1748
        %v2926 = vunpack.c.l.b16 %v1749
        %v2927 = vunpack.c.h.b16 %v1749
        %v2928 = vunpack.c.l.b16 %v1750
        %v2929 = vunpack.c.h.b16 %v1750
        %v2930 = vunpack.c.l.b16 %v1751
        %v2931 = vunpack.c.h.b16 %v1751
        %v2932 = vunpack.c.l.b16 %v1752
        %v2933 = vunpack.c.h.b16 %v1752
        %v2934 = vunpack.c.l.b16 %v1753
        %v2935 = vunpack.c.h.b16 %v1753
        %v2936 = vunpack.c.l.b16 %v1754
        %v2937 = vunpack.c.h.b16 %v1754
        %v2938 = vunpack.c.l.b16 %v1755
        %v2939 = vunpack.c.h.b16 %v1755
        %v2940 = vunpack.c.l.b16 %v1756
        %v2941 = vunpack.c.h.b16 %v1756
        %v2942 = vunpack.c.l.b16 %v1757
        %v2943 = vunpack.c.h.b16 %v1757
        %v2944 = vunpack.c.l.b16 %v1758
        %v2945 = vunpack.c.h.b16 %v1758
        %v2946 = vunpack.c.l.b16 %v1759
        %v2947 = vunpack.c.h.b16 %v1759
        %v2948 = vunpack.c.l.b16 %v1760
        %v2949 = vunpack.c.h.b16 %v1760
        %v2950 = vunpack.c.l.b16 %v1761
        %v2951 = vunpack.c.h.b16 %v1761
        %v2952 = vunpack.c.l.b16 %v1762
        %v2953 = vunpack.c.h.b16 %v1762
        %v2954 = vunpack.c.l.b16 %v1763
        %v2955 = vunpack.c.h.b16 %v1763
        %v2956 = vunpack.c.l.b16 %v1764
        %v2957 = vunpack.c.h.b16 %v1764
        %v2958 = vunpack.c.l.b16 %v1765
        %v2959 = vunpack.c.h.b16 %v1765
        %v2960 = vunpack.c.l.b16 %v1766
        %v2961 = vunpack.c.h.b16 %v1766
        %v2962 = vunpack.c.l.b16 %v1767
        %v2963 = vunpack.c.h.b16 %v1767
        %v2964 = vunpack.c.l.b16 %v1768
        %v2965 = vunpack.c.h.b16 %v1768
        %v2966 = vunpack.c.l.b16 %v1769
        %v2967 = vunpack.c.h.b16 %v1769
        %v2968 = vunpack.c.l.b16 %v1770
        %v2969 = vunpack.c.h.b16 %v1770
        %v2970 = vunpack.c.l.b16 %v1771
        %v2971 = vunpack.c.h.b16 %v1771
        %v2972 = vunpack.c.l.b16 %v1772
        %v2973 = vunpack.c.h.b16 %v1772
        %v2974 = vunpack.c.l.b16 %v1773
        %v2975 = vunpack.c.h.b16 %v1773
        %v2976 = vunpack.c.l.b16 %v1774
        %v2977 = vunpack.c.h.b16 %v1774
        %v2978 = vunpack.c.l.b16 %v1775
        %v2979 = vunpack.c.h.b16 %v1775
        %v2980 = vunpack.c.l.b16 %v1776
        %v2981 = vunpack.c.h.b16 %v1776
        %v2982 = vunpack.c.l.b16 %v1777
        %v2983 = vunpack.c.h.b16 %v1777
        %v2984 = vunpack.c.l.b16 %v1778
        %v2985 = vunpack.c.h.b16 %v1778
        %v2986 = vunpack.c.l.b16 %v1779
        %v2987 = vunpack.c.h.b16 %v1779
        %v2988 = vunpack.c.l.b16 %v1780
        %v2989 = vunpack.c.h.b16 %v1780
        %v2990 = vunpack.c.l.b16 %v1781
        %v2991 = vunpack.c.h.b16 %v1781
        %v2992 = vunpack.c.l.b16 %v1782
        %v2993 = vunpack.c.h.b16 %v1782
        %v2994 = vunpack.c.l.b16 %v1783
        %v2995 = vunpack.c.h.b16 %v1783
        %v2996 = vunpack.c.l.b16 %v1784
        %v2997 = vunpack.c.h.b16 %v1784
        %v2998 = vunpack.c.l.b16 %v1785
        %v2999 = vunpack.c.h.b16 %v1785
        %v3000 = vunpack.c.l.b16 %v1786
        %v3001 = vunpack.c.h.b16 %v1786
        %v3002 = vunpack.c.l.b16 %v1787
        %v3003 = vunpack.c.h.b16 %v1787
        %v3004 = vunpack.c.l.b16 %v1788
        %v3005 = vunpack.c.h.b16 %v1788
        %v3006 = vunpack.c.l.b16 %v1789
        %v3007 = vunpack.c.h.b16 %v1789
        %v3008 = vunpack.c.l.b16 %v1790
        %v3009 = vunpack.c.h.b16 %v1790
        %v3010 = vunpack.c.l.b16 %v1791
        %v3011 = vunpack.c.h.b16 %v1791
        %v3012 = vunpack.c.l.b16 %v1792
        %v3013 = vunpack.c.h.b16 %v1792
        %v3014 = vunpack.c.l.b16 %v1793
        %v3015 = vunpack.c.h.b16 %v1793
        %v3016 = vunpack.c.l.b16 %v1794
        %v3017 = vunpack.c.h.b16 %v1794
        %v3018 = vunpack.c.l.b16 %v1795
        %v3019 = vunpack.c.h.b16 %v1795
        %v3020 = vunpack.c.l.b16 %v1796
        %v3021 = vunpack.c.h.b16 %v1796
        %v3022 = vunpack.c.l.b16 %v1797
        %v3023 = vunpack.c.h.b16 %v1797
        %v3024 = vunpack.c.l.b16 %v1798
        %v3025 = vunpack.c.h.b16 %v1798
        %v3026 = vunpack.c.l.b16 %v1799
        %v3027 = vunpack.c.h.b16 %v1799
        %v3028 = vunpack.c.l.b16 %v1800
        %v3029 = vunpack.c.h.b16 %v1800
        %v3030 = vunpack.c.l.b16 %v1801
        %v3031 = vunpack.c.h.b16 %v1801
        %v3032 = vunpack.c.l.b16 %v1802
        %v3033 = vunpack.c.h.b16 %v1802
        %v3034 = vunpack.c.l.b16 %v1803
        %v3035 = vunpack.c.h.b16 %v1803
        %v3036 = vunpack.c.l.b16 %v1804
        %v3037 = vunpack.c.h.b16 %v1804
        %v3038 = vunpack.c.l.b16 %v1805
        %v3039 = vunpack.c.h.b16 %v1805
        %v3040 = vunpack.c.l.b16 %v1806
        %v3041 = vunpack.c.h.b16 %v1806
        %v3042 = vunpack.c.l.b16 %v1807
        %v3043 = vunpack.c.h.b16 %v1807
        %v3044 = vunpack.c.l.b16 %v1808
        %v3045 = vunpack.c.h.b16 %v1808
        %v3046 = vunpack.c.l.b16 %v1809
        %v3047 = vunpack.c.h.b16 %v1809
        %v3048 = vunpack.c.l.b16 %v1810
        %v3049 = vunpack.c.h.b16 %v1810
        %v3050 = vunpack.c.l.b16 %v1811
        %v3051 = vunpack.c.h.b16 %v1811
        %v3052 = vunpack.c.l.b16 %v1812
        %v3053 = vunpack.c.h.b16 %v1812
        %v3054 = vunpack.c.l.b16 %v1813
        %v3055 = vunpack.c.h.b16 %v1813
        %v3056 = vunpack.c.l.b16 %v1814
        %v3057 = vunpack.c.h.b16 %v1814
        %v3058 = vunpack.c.l.b16 %v1815
        %v3059 = vunpack.c.h.b16 %v1815
        %v3060 = vunpack.c.l.b16 %v1816
        %v3061 = vunpack.c.h.b16 %v1816
        %v3062 = vunpack.c.l.b16 %v1817
        %v3063 = vunpack.c.h.b16 %v1817
        %v3064 = vunpack.c.l.b16 %v1818
        %v3065 = vunpack.c.h.b16 %v1818
        %v3066 = vunpack.c.l.b16 %v1819
        %v3067 = vunpack.c.h.b16 %v1819
        %v3068 = vunpack.c.l.b16 %v1820
        %v3069 = vunpack.c.h.b16 %v1820
        %v3070 = vunpack.c.l.b16 %v1821
        %v3071 = vunpack.c.h.b16 %v1821
        %v3072 = vunpack.c.l.b16 %v1822
        %v3073 = vunpack.c.h.b16 %v1822
        %v3074 = vunpack.c.l.b16 %v1823
        %v3075 = vunpack.c.h.b16 %v1823
        %v3076 = vunpack.c.l.b16 %v1824
        %v3077 = vunpack.c.h.b16 %v1824
        %v3078 = vunpack.c.l.b16 %v1825
        %v3079 = vunpack.c.h.b16 %v1825
        %v3080 = vunpack.c.l.b16 %v1826
        %v3081 = vunpack.c.h.b16 %v1826
        %v3082 = vunpack.c.l.b16 %v1827
        %v3083 = vunpack.c.h.b16 %v1827
        %v3084 = vunpack.c.l.b16 %v1828
        %v3085 = vunpack.c.h.b16 %v1828
        %v3086 = vunpack.c.l.b16 %v1829
        %v3087 = vunpack.c.h.b16 %v1829
        %v3088 = vunpack.c.l.b16 %v1830
        %v3089 = vunpack.c.h.b16 %v1830
        %v3090 = vunpack.c.l.b16 %v1831
        %v3091 = vunpack.c.h.b16 %v1831
        %v3092 = vunpack.c.l.b16 %v1832
        %v3093 = vunpack.c.h.b16 %v1832
        %v3094 = vunpack.c.l.b16 %v1833
        %v3095 = vunpack.c.h.b16 %v1833
        %v3096 = vunpack.c.l.b16 %v1834
        %v3097 = vunpack.c.h.b16 %v1834
        %v3098 = vunpack.c.l.b16 %v1835
        %v3099 = vunpack.c.h.b16 %v1835
        %v3100 = vunpack.c.l.b16 %v1836
        %v3101 = vunpack.c.h.b16 %v1836
        %v3102 = vunpack.c.l.b16 %v1837
        %v3103 = vunpack.c.h.b16 %v1837
        %v3104 = vunpack.c.l.b16 %v1838
        %v3105 = vunpack.c.h.b16 %v1838
        %v3106 = vunpack.c.l.b16 %v1839
        %v3107 = vunpack.c.h.b16 %v1839
        %v3108 = vunpack.c.l.b16 %v1840
        %v3109 = vunpack.c.h.b16 %v1840
        %v3110 = vunpack.c.l.b16 %v1841
        %v3111 = vunpack.c.h.b16 %v1841
        %v3112 = vunpack.c.l.b16 %v1842
        %v3113 = vunpack.c.h.b16 %v1842
        %v3114 = vunpack.c.l.b16 %v1843
        %v3115 = vunpack.c.h.b16 %v1843
        %v3116 = vunpack.c.l.b16 %v1844
        %v3117 = vunpack.c.h.b16 %v1844
        %v3118 = vunpack.c.l.b16 %v1845
        %v3119 = vunpack.c.h.b16 %v1845
        %v3120 = vunpack.c.l.b16 %v1846
        %v3121 = vunpack.c.h.b16 %v1846
        %v3122 = vunpack.c.l.b16 %v1847
        %v3123 = vunpack.c.h.b16 %v1847
        %v3124 = vunpack.c.l.b16 %v1848
        %v3125 = vunpack.c.h.b16 %v1848
        %v3126 = vunpack.c.l.b16 %v1849
        %v3127 = vunpack.c.h.b16 %v1849
        %v3128 = vunpack.c.l.b16 %v1850
        %v3129 = vunpack.c.h.b16 %v1850
        %v3130 = vunpack.c.l.b16 %v1851
        %v3131 = vunpack.c.h.b16 %v1851
        %v3132 = vunpack.c.l.b16 %v1852
        %v3133 = vunpack.c.h.b16 %v1852
        %v3134 = vunpack.c.l.b16 %v1853
        %v3135 = vunpack.c.h.b16 %v1853
        %v3136 = vunpack.c.l.b16 %v1854
        %v3137 = vunpack.c.h.b16 %v1854
        %v3138 = vunpack.c.l.b16 %v1855
        %v3139 = vunpack.c.h.b16 %v1855
        %v3140 = vunpack.c.l.b16 %v1856
        %v3141 = vunpack.c.h.b16 %v1856
        %v3142 = vunpack.c.l.b16 %v1857
        %v3143 = vunpack.c.h.b16 %v1857
        %v3144 = vunpack.c.l.b16 %v1858
        %v3145 = vunpack.c.h.b16 %v1858
        %v3146 = vunpack.c.l.b16 %v1859
        %v3147 = vunpack.c.h.b16 %v1859
        %v3148 = vunpack.c.l.b16 %v1860
        %v3149 = vunpack.c.h.b16 %v1860
        %v3150 = vunpack.c.l.b16 %v1861
        %v3151 = vunpack.c.h.b16 %v1861
        %v3152 = vunpack.c.l.b16 %v1862
        %v3153 = vunpack.c.h.b16 %v1862
        %v3154 = vunpack.c.l.b16 %v1863
        %v3155 = vunpack.c.h.b16 %v1863
        %v3156 = vunpack.c.l.b16 %v1864
        %v3157 = vunpack.c.h.b16 %v1864
        %v3158 = vunpack.c.l.b16 %v1865
        %v3159 = vunpack.c.h.b16 %v1865
        %v3160 = vunpack.c.l.b16 %v1866
        %v3161 = vunpack.c.h.b16 %v1866
        %v3162 = vunpack.c.l.b16 %v1867
        %v3163 = vunpack.c.h.b16 %v1867
        %v3164 = vunpack.c.l.b16 %v1868
        %v3165 = vunpack.c.h.b16 %v1868
        %v3166 = vunpack.c.l.b16 %v1869
        %v3167 = vunpack.c.h.b16 %v1869
        %v3168 = vunpack.c.l.b16 %v1870
        %v3169 = vunpack.c.h.b16 %v1870
        %v3170 = vunpack.c.l.b16 %v1871
        %v3171 = vunpack.c.h.b16 %v1871
        %v3172 = vunpack.c.l.b16 %v1872
        %v3173 = vunpack.c.h.b16 %v1872
        %v3174 = vunpack.c.l.b16 %v1873
        %v3175 = vunpack.c.h.b16 %v1873
        %v3176 = vunpack.c.l.b16 %v1874
        %v3177 = vunpack.c.h.b16 %v1874
        %v3178 = vunpack.c.l.b16 %v1875
        %v3179 = vunpack.c.h.b16 %v1875
        %v3180 = vunpack.c.l.b16 %v1876
        %v3181 = vunpack.c.h.b16 %v1876
        %v3182 = vunpack.c.l.b16 %v1877
        %v3183 = vunpack.c.h.b16 %v1877
        %v3184 = vunpack.c.l.b16 %v1878
        %v3185 = vunpack.c.h.b16 %v1878
        %v3186 = vunpack.c.l.b16 %v1879
        %v3187 = vunpack.c.h.b16 %v1879
        %v3188 = vunpack.c.l.b16 %v1880
        %v3189 = vunpack.c.h.b16 %v1880
        %v3190 = vunpack.c.l.b16 %v1881
        %v3191 = vunpack.c.h.b16 %v1881
        %v3192 = vunpack.c.l.b16 %v1882
        %v3193 = vunpack.c.h.b16 %v1882
        %v3194 = vunpack.c.l.b16 %v1883
        %v3195 = vunpack.c.h.b16 %v1883
        %v3196 = vunpack.c.l.b16 %v1884
        %v3197 = vunpack.c.h.b16 %v1884
        %v3198 = vunpack.c.l.b16 %v1885
        %v3199 = vunpack.c.h.b16 %v1885
        %v3200 = vunpack.c.l.b16 %v1886
        %v3201 = vunpack.c.h.b16 %v1886
        %v3202 = vunpack.c.l.b16 %v1887
        %v3203 = vunpack.c.h.b16 %v1887
        %v3204 = vunpack.c.l.b16 %v1888
        %v3205 = vunpack.c.h.b16 %v1888
        %v3206 = vunpack.c.l.b16 %v1889
        %v3207 = vunpack.c.h.b16 %v1889
        %v3208 = vunpack.c.l.b16 %v1890
        %v3209 = vunpack.c.h.b16 %v1890
        %v3210 = vunpack.c.l.b16 %v1891
        %v3211 = vunpack.c.h.b16 %v1891
        %v3212 = vunpack.c.l.b16 %v1892
        %v3213 = vunpack.c.h.b16 %v1892
        %v3214 = vunpack.c.l.b16 %v1893
        %v3215 = vunpack.c.h.b16 %v1893
        %v3216 = vunpack.c.l.b16 %v1894
        %v3217 = vunpack.c.h.b16 %v1894
        %v3218 = vunpack.c.l.b16 %v1895
        %v3219 = vunpack.c.h.b16 %v1895
        %v3220 = vunpack.c.l.b16 %v1896
        %v3221 = vunpack.c.h.b16 %v1896
        %v3222 = vunpack.c.l.b16 %v1897
        %v3223 = vunpack.c.h.b16 %v1897
        %v3224 = vunpack.c.l.b16 %v1898
        %v3225 = vunpack.c.h.b16 %v1898
        %v3226 = vunpack.c.l.b16 %v1899
        %v3227 = vunpack.c.h.b16 %v1899
        %v3228 = vunpack.c.l.b16 %v1900
        %v3229 = vunpack.c.h.b16 %v1900
        %v3230 = vunpack.c.l.b16 %v1901
        %v3231 = vunpack.c.h.b16 %v1901
        %v3232 = vunpack.c.l.b16 %v1902
        %v3233 = vunpack.c.h.b16 %v1902
        %v3234 = vunpack.c.l.b16 %v1903
        %v3235 = vunpack.c.h.b16 %v1903
        %v3236 = vunpack.c.l.b16 %v1904
        %v3237 = vunpack.c.h.b16 %v1904
        %v3238 = vunpack.c.l.b16 %v1905
        %v3239 = vunpack.c.h.b16 %v1905
        %v3240 = vunpack.c.l.b16 %v1906
        %v3241 = vunpack.c.h.b16 %v1906
        %v3242 = vunpack.c.l.b16 %v1907
        %v3243 = vunpack.c.h.b16 %v1907
        %v3244 = vunpack.c.l.b16 %v1908
        %v3245 = vunpack.c.h.b16 %v1908
        %v3246 = vunpack.c.l.b16 %v1909
        %v3247 = vunpack.c.h.b16 %v1909
        %v3248 = vunpack.c.l.b16 %v1910
        %v3249 = vunpack.c.h.b16 %v1910
        %v3250 = vunpack.c.l.b16 %v1911
        %v3251 = vunpack.c.h.b16 %v1911
        %v3252 = vunpack.c.l.b16 %v1912
        %v3253 = vunpack.c.h.b16 %v1912
        %v3254 = vunpack.c.l.b16 %v1913
        %v3255 = vunpack.c.h.b16 %v1913
        %v3256 = vunpack.c.l.b16 %v1914
        %v3257 = vunpack.c.h.b16 %v1914
        %v3258 = vunpack.c.l.b16 %v1915
        %v3259 = vunpack.c.h.b16 %v1915
        %v3260 = vunpack.c.l.b16 %v1916
        %v3261 = vunpack.c.h.b16 %v1916
        %v3262 = vunpack.c.l.b16 %v1917
        %v3263 = vunpack.c.h.b16 %v1917
        %v3264 = vunpack.c.l.b16 %v1918
        %v3265 = vunpack.c.h.b16 %v1918
        %v3266 = vunpack.c.l.b16 %v1919
        %v3267 = vunpack.c.h.b16 %v1919
        %v3268 = vunpack.c.l.b16 %v1920
        %v3269 = vunpack.c.h.b16 %v1920
        %v3270 = vunpack.c.l.b16 %v1921
        %v3271 = vunpack.c.h.b16 %v1921
        %v3272 = vunpack.c.l.b16 %v1922
        %v3273 = vunpack.c.h.b16 %v1922
        %v3274 = vunpack.c.l.b16 %v1923
        %v3275 = vunpack.c.h.b16 %v1923
        %v3276 = vunpack.c.l.b16 %v1924
        %v3277 = vunpack.c.h.b16 %v1924
        %v3278 = vunpack.c.l.b16 %v1925
        %v3279 = vunpack.c.h.b16 %v1925
        %v3280 = vunpack.c.l.b16 %v1926
        %v3281 = vunpack.c.h.b16 %v1926
        %v3282 = vunpack.c.l.b16 %v1927
        %v3283 = vunpack.c.h.b16 %v1927
        %v3284 = vunpack.c.l.b16 %v1928
        %v3285 = vunpack.c.h.b16 %v1928
        %v3286 = vunpack.c.l.b16 %v1929
        %v3287 = vunpack.c.h.b16 %v1929
        %v3288 = vunpack.c.l.b16 %v1930
        %v3289 = vunpack.c.h.b16 %v1930
        %v3290 = vunpack.c.l.b16 %v1931
        %v3291 = vunpack.c.h.b16 %v1931
        %v3292 = vunpack.c.l.b16 %v1932
        %v3293 = vunpack.c.h.b16 %v1932
        %v3294 = vunpack.c.l.b16 %v1933
        %v3295 = vunpack.c.h.b16 %v1933
        %v3296 = vunpack.c.l.b16 %v1934
        %v3297 = vunpack.c.h.b16 %v1934
        %v3298 = vunpack.c.l.b16 %v1935
        %v3299 = vunpack.c.h.b16 %v1935
        %v3300 = vunpack.c.l.b16 %v1936
        %v3301 = vunpack.c.h.b16 %v1936
        %v3302 = vunpack.c.l.b16 %v1937
        %v3303 = vunpack.c.h.b16 %v1937
        %v3304 = vunpack.c.l.b16 %v1938
        %v3305 = vunpack.c.h.b16 %v1938
        %v3306 = vunpack.c.l.b16 %v1939
        %v3307 = vunpack.c.h.b16 %v1939
        %v3308 = vunpack.c.l.b16 %v1940
        %v3309 = vunpack.c.h.b16 %v1940
        %v3310 = vunpack.c.l.b16 %v1941
        %v3311 = vunpack.c.h.b16 %v1941
        %v3312 = vunpack.c.l.b16 %v1942
        %v3313 = vunpack.c.h.b16 %v1942
        %v3314 = vunpack.c.l.b16 %v1943
        %v3315 = vunpack.c.h.b16 %v1943
        %v3316 = vunpack.c.l.b16 %v1944
        %v3317 = vunpack.c.h.b16 %v1944
        %v3318 = vunpack.c.l.b16 %v1945
        %v3319 = vunpack.c.h.b16 %v1945
        %v3320 = vunpack.c.l.b16 %v1946
        %v3321 = vunpack.c.h.b16 %v1946
        %v3322 = vunpack.c.l.b16 %v1947
        %v3323 = vunpack.c.h.b16 %v1947
        %v3324 = vunpack.c.l.b16 %v1948
        %v3325 = vunpack.c.h.b16 %v1948
        %v3326 = vunpack.c.l.b16 %v1949
        %v3327 = vunpack.c.h.b16 %v1949
        %v3328 = vunpack.c.l.b16 %v1950
        %v3329 = vunpack.c.h.b16 %v1950
        %v3330 = vunpack.c.l.b16 %v1951
        %v3331 = vunpack.c.h.b16 %v1951
        %v3332 = vunpack.c.l.b16 %v1952
        %v3333 = vunpack.c.h.b16 %v1952
        %v3334 = vunpack.c.l.b16 %v1953
        %v3335 = vunpack.c.h.b16 %v1953
        %v3336 = vunpack.c.l.b16 %v1954
        %v3337 = vunpack.c.h.b16 %v1954
        %v3338 = vunpack.c.l.b16 %v1955
        %v3339 = vunpack.c.h.b16 %v1955
        %v3340 = vunpack.c.l.b16 %v1956
        %v3341 = vunpack.c.h.b16 %v1956
        %v3342 = vunpack.c.l.b16 %v1957
        %v3343 = vunpack.c.h.b16 %v1957
        %v3344 = vunpack.c.l.b16 %v1958
        %v3345 = vunpack.c.h.b16 %v1958
        %v3346 = vunpack.c.l.b16 %v1959
        %v3347 = vunpack.c.h.b16 %v1959
        %v3348 = vunpack.c.l.b16 %v1960
        %v3349 = vunpack.c.h.b16 %v1960
        %v3350 = vunpack.c.l.b16 %v1961
        %v3351 = vunpack.c.h.b16 %v1961
        %v3352 = vunpack.c.l.b16 %v1962
        %v3353 = vunpack.c.h.b16 %v1962
        %v3354 = vunpack.c.l.b16 %v1963
        %v3355 = vunpack.c.h.b16 %v1963
        %v3356 = vunpack.c.l.b16 %v1964
        %v3357 = vunpack.c.h.b16 %v1964
        %v3358 = vunpack.c.l.b16 %v1965
        %v3359 = vunpack.c.h.b16 %v1965
        %v3360 = vunpack.c.l.b16 %v1966
        %v3361 = vunpack.c.h.b16 %v1966
        %v3362 = vunpack.c.l.b16 %v1967
        %v3363 = vunpack.c.h.b16 %v1967
        %v3364 = vunpack.c.l.b16 %v1968
        %v3365 = vunpack.c.h.b16 %v1968
        %v3366 = vunpack.c.l.b16 %v1969
        %v3367 = vunpack.c.h.b16 %v1969
        %v3368 = vunpack.c.l.b16 %v1970
        %v3369 = vunpack.c.h.b16 %v1970
        %v3370 = vunpack.c.l.b16 %v1971
        %v3371 = vunpack.c.h.b16 %v1971
        %v3372 = vunpack.c.l.b16 %v1972
        %v3373 = vunpack.c.h.b16 %v1972
        %v3374 = vunpack.c.l.b16 %v1973
        %v3375 = vunpack.c.h.b16 %v1973
        %v3376 = vunpack.c.l.b16 %v1974
        %v3377 = vunpack.c.h.b16 %v1974
        %v3378 = vunpack.c.l.b16 %v1975
        %v3379 = vunpack.c.h.b16 %v1975
        %v3380 = vunpack.c.l.b16 %v1976
        %v3381 = vunpack.c.h.b16 %v1976
        %v3382 = vunpack.c.l.b16 %v1977
        %v3383 = vunpack.c.h.b16 %v1977
        %v3384 = vunpack.c.l.b16 %v1978
        %v3385 = vunpack.c.h.b16 %v1978
        %v3386 = vunpack.c.l.b16 %v1979
        %v3387 = vunpack.c.h.b16 %v1979
        %v3388 = vunpack.c.l.b16 %v1980
        %v3389 = vunpack.c.h.b16 %v1980
        %v3390 = vunpack.c.l.b16 %v1981
        %v3391 = vunpack.c.h.b16 %v1981
        %v3392 = vunpack.c.l.b16 %v1982
        %v3393 = vunpack.c.h.b16 %v1982
        %v3394 = vunpack.c.l.b16 %v1983
        %v3395 = vunpack.c.h.b16 %v1983
        %v3396 = vunpack.c.l.b16 %v1984
        %v3397 = vunpack.c.h.b16 %v1984
        %v3398 = vunpack.c.l.b16 %v1985
        %v3399 = vunpack.c.h.b16 %v1985
        %v3400 = vunpack.c.l.b16 %v1986
        %v3401 = vunpack.c.h.b16 %v1986
        %v3402 = vunpack.c.l.b16 %v1987
        %v3403 = vunpack.c.h.b16 %v1987
        %v3404 = vunpack.c.l.b16 %v1988
        %v3405 = vunpack.c.h.b16 %v1988
        %v3406 = vunpack.c.l.b16 %v1989
        %v3407 = vunpack.c.h.b16 %v1989
        %v3408 = vunpack.c.l.b16 %v1990
        %v3409 = vunpack.c.h.b16 %v1990
        %v3410 = vunpack.c.l.b16 %v1991
        %v3411 = vunpack.c.h.b16 %v1991
        %v3412 = vunpack.c.l.b16 %v1992
        %v3413 = vunpack.c.h.b16 %v1992
        %v3414 = vunpack.c.l.b16 %v1993
        %v3415 = vunpack.c.h.b16 %v1993
        %v3416 = vunpack.c.l.b16 %v1994
        %v3417 = vunpack.c.h.b16 %v1994
        %v3418 = vunpack.c.l.b16 %v1995
        %v3419 = vunpack.c.h.b16 %v1995
        %v3420 = vunpack.c.l.b16 %v1996
        %v3421 = vunpack.c.h.b16 %v1996
        %v3422 = vunpack.c.l.b16 %v1997
        %v3423 = vunpack.c.h.b16 %v1997
        %v3424 = vunpack.c.l.b16 %v1998
        %v3425 = vunpack.c.h.b16 %v1998
        %v3426 = vunpack.c.l.b16 %v1999
        %v3427 = vunpack.c.h.b16 %v1999
        %v3428 = vunpack.c.l.b16 %v2000
        %v3429 = vunpack.c.h.b16 %v2000
        %v3430 = vunpack.c.l.b16 %v2001
        %v3431 = vunpack.c.h.b16 %v2001
        %v3432 = vunpack.c.l.b16 %v2002
        %v3433 = vunpack.c.h.b16 %v2002
        %v3434 = vunpack.c.l.b16 %v2003
        %v3435 = vunpack.c.h.b16 %v2003
        %v3436 = vunpack.c.l.b16 %v2004
        %v3437 = vunpack.c.h.b16 %v2004
        %v3438 = vunpack.c.l.b16 %v2005
        %v3439 = vunpack.c.h.b16 %v2005
        %v3440 = vunpack.c.l.b16 %v2006
        %v3441 = vunpack.c.h.b16 %v2006
        %v3442 = vunpack.c.l.b16 %v2007
        %v3443 = vunpack.c.h.b16 %v2007
        %v3444 = vunpack.c.l.b16 %v2008
        %v3445 = vunpack.c.h.b16 %v2008
        %v3446 = vunpack.c.l.b16 %v2009
        %v3447 = vunpack.c.h.b16 %v2009
        %v3448 = vunpack.c.l.b16 %v2010
        %v3449 = vunpack.c.h.b16 %v2010
        %v3450 = vunpack.c.l.b16 %v2011
        %v3451 = vunpack.c.h.b16 %v2011
        %v3452 = vunpack.c.l.b16 %v2012
        %v3453 = vunpack.c.h.b16 %v2012
        %v3454 = vunpack.c.l.b16 %v2013
        %v3455 = vunpack.c.h.b16 %v2013
        %v3456 = vunpack.c.l.b16 %v2014
        %v3457 = vunpack.c.h.b16 %v2014
        %v3458 = vunpack.c.l.b16 %v2015
        %v3459 = vunpack.c.h.b16 %v2015
        %v3460 = vunpack.c.l.b16 %v2016
        %v3461 = vunpack.c.h.b16 %v2016
        %v3462 = vunpack.c.l.b16 %v2017
        %v3463 = vunpack.c.h.b16 %v2017
        %v3464 = vunpack.c.l.b16 %v2018
        %v3465 = vunpack.c.h.b16 %v2018
        %v3466 = vunpack.c.l.b16 %v2019
        %v3467 = vunpack.c.h.b16 %v2019
        %v3468 = vunpack.c.l.b16 %v2020
        %v3469 = vunpack.c.h.b16 %v2020
        %v3470 = vunpack.c.l.b16 %v2021
        %v3471 = vunpack.c.h.b16 %v2021
        %v3472 = vunpack.c.l.b16 %v2022
        %v3473 = vunpack.c.h.b16 %v2022
        %v3474 = vunpack.c.l.b16 %v2023
        %v3475 = vunpack.c.h.b16 %v2023
        %v3476 = vunpack.c.l.b16 %v2024
        %v3477 = vunpack.c.h.b16 %v2024
        %v3478 = vunpack.c.l.b16 %v2025
        %v3479 = vunpack.c.h.b16 %v2025
        %v3480 = vunpack.c.l.b16 %v2026
        %v3481 = vunpack.c.h.b16 %v2026
        %v3482 = vunpack.c.l.b16 %v2027
        %v3483 = vunpack.c.h.b16 %v2027
        %v3484 = vunpack.c.l.b16 %v2028
        %v3485 = vunpack.c.h.b16 %v2028
        %v3486 = vunpack.c.l.b16 %v2029
        %v3487 = vunpack.c.h.b16 %v2029
        %v3488 = vunpack.c.l.b16 %v2030
        %v3489 = vunpack.c.h.b16 %v2030
        %v3490 = vunpack.c.l.b16 %v2031
        %v3491 = vunpack.c.h.b16 %v2031
        %v3492 = vunpack.c.l.b16 %v2032
        %v3493 = vunpack.c.h.b16 %v2032
        %v3494 = vunpack.c.l.b16 %v2033
        %v3495 = vunpack.c.h.b16 %v2033
        %v3496 = vunpack.c.l.b16 %v2034
        %v3497 = vunpack.c.h.b16 %v2034
        %v3498 = vunpack.c.l.b16 %v2035
        %v3499 = vunpack.c.h.b16 %v2035
        %v3500 = vunpack.c.l.b16 %v2036
        %v3501 = vunpack.c.h.b16 %v2036
        %v3502 = vunpack.c.l.b16 %v2037
        %v3503 = vunpack.c.h.b16 %v2037
        %v3504 = vunpack.c.l.b16 %v2038
        %v3505 = vunpack.c.h.b16 %v2038
        %v3506 = vunpack.c.l.b16 %v2039
        %v3507 = vunpack.c.h.b16 %v2039
        %v3508 = vunpack.c.l.b16 %v2040
        %v3509 = vunpack.c.h.b16 %v2040
        %v3510 = vunpack.c.l.b16 %v2041
        %v3511 = vunpack.c.h.b16 %v2041
        %v3512 = vunpack.c.l.b16 %v2042
        %v3513 = vunpack.c.h.b16 %v2042
        %v3514 = vunpack.c.l.b16 %v2043
        %v3515 = vunpack.c.h.b16 %v2043
        %v3516 = vunpack.c.l.b16 %v2044
        %v3517 = vunpack.c.h.b16 %v2044
        %v3518 = vunpack.c.l.b16 %v2045
        %v3519 = vunpack.c.h.b16 %v2045
        %v3520 = vunpack.c.l.b16 %v2046
        %v3521 = vunpack.c.h.b16 %v2046
        %v3522 = vunpack.c.l.b16 %v2047
        %v3523 = vunpack.c.h.b16 %v2047
        %v3524 = vunpack.c.l.b16 %v2048
        %v3525 = vunpack.c.h.b16 %v2048
        %v3526 = vunpack.c.l.b16 %v2049
        %v3527 = vunpack.c.h.b16 %v2049
        %v3528 = vunpack.c.l.b16 %v2050
        %v3529 = vunpack.c.h.b16 %v2050
        %v3530 = vunpack.c.l.b16 %v2051
        %v3531 = vunpack.c.h.b16 %v2051
        %v3532 = vunpack.c.l.b16 %v2052
        %v3533 = vunpack.c.h.b16 %v2052
        %v3534 = vunpack.c.l.b16 %v2053
        %v3535 = vunpack.c.h.b16 %v2053
        %v3536 = vunpack.c.l.b16 %v2054
        %v3537 = vunpack.c.h.b16 %v2054
        %v3538 = vunpack.c.l.b16 %v2055
        %v3539 = vunpack.c.h.b16 %v2055
        %v3540 = vunpack.c.l.b16 %v2056
        %v3541 = vunpack.c.h.b16 %v2056
        %v3542 = vunpack.c.l.b16 %v2057
        %v3543 = vunpack.c.h.b16 %v2057
        %v3544 = vunpack.c.l.b16 %v2058
        %v3545 = vunpack.c.h.b16 %v2058
        %v3546 = vunpack.c.l.b16 %v2059
        %v3547 = vunpack.c.h.b16 %v2059
        %v3548 = vunpack.c.l.b16 %v2060
        %v3549 = vunpack.c.h.b16 %v2060
        %v3550 = vunpack.c.l.b16 %v2061
        %v3551 = vunpack.c.h.b16 %v2061
        %v3552 = vunpack.c.l.b16 %v2062
        %v3553 = vunpack.c.h.b16 %v2062
        %v3554 = vunpack.c.l.b16 %v2063
        %v3555 = vunpack.c.h.b16 %v2063
        %v3556 = vunpack.c.l.b16 %v2064
        %v3557 = vunpack.c.h.b16 %v2064
        %v3558 = vunpack.c.l.b16 %v2065
        %v3559 = vunpack.c.h.b16 %v2065
        %v3560 = vunpack.c.l.b16 %v2066
        %v3561 = vunpack.c.h.b16 %v2066
        %v3562 = vunpack.c.l.b16 %v2067
        %v3563 = vunpack.c.h.b16 %v2067
        %v3564 = vunpack.c.l.b16 %v2068
        %v3565 = vunpack.c.h.b16 %v2068
        %v3566 = vunpack.c.l.b16 %v2069
        %v3567 = vunpack.c.h.b16 %v2069
        %v3568 = vunpack.c.l.b16 %v2070
        %v3569 = vunpack.c.h.b16 %v2070
        %v3570 = vunpack.c.l.b16 %v2071
        %v3571 = vunpack.c.h.b16 %v2071
        %v3572 = vunpack.c.l.b16 %v2072
        %v3573 = vunpack.c.h.b16 %v2072
        %v3574 = vunpack.c.l.b16 %v2073
        %v3575 = vunpack.c.h.b16 %v2073
        %v3576 = vunpack.c.l.b16 %v2074
        %v3577 = vunpack.c.h.b16 %v2074
        %v3578 = vunpack.c.l.b16 %v2075
        %v3579 = vunpack.c.h.b16 %v2075
        %v3580 = vunpack.c.l.b16 %v2076
        %v3581 = vunpack.c.h.b16 %v2076
        %v3582 = vunpack.c.l.b16 %v2077
        %v3583 = vunpack.c.h.b16 %v2077
        %v3584 = vunpack.c.l.b16 %v2078
        %v3585 = vunpack.c.h.b16 %v2078
        %v3586 = vunpack.c.l.b16 %v2079
        %v3587 = vunpack.c.h.b16 %v2079
        %v3588 = vunpack.c.l.b16 %v2080
        %v3589 = vunpack.c.h.b16 %v2080
        %v3590 = vunpack.c.l.b16 %v2081
        %v3591 = vunpack.c.h.b16 %v2081
        %v3592 = vunpack.c.l.b16 %v2082
        %v3593 = vunpack.c.h.b16 %v2082
        %v3594 = vunpack.c.l.b16 %v2083
        %v3595 = vunpack.c.h.b16 %v2083
        %v3596 = vunpack.c.l.b16 %v2084
        %v3597 = vunpack.c.h.b16 %v2084
        %v3598 = vunpack.c.l.b16 %v2085
        %v3599 = vunpack.c.h.b16 %v2085
        %v3600 = vunpack.c.l.b16 %v2086
        %v3601 = vunpack.c.h.b16 %v2086
        %v3602 = vunpack.c.l.b16 %v2087
        %v3603 = vunpack.c.h.b16 %v2087
        %v3604 = vunpack.c.l.b16 %v2088
        %v3605 = vunpack.c.h.b16 %v2088
        %v3606 = vunpack.c.l.b16 %v2089
        %v3607 = vunpack.c.h.b16 %v2089
        %v3608 = vunpack.c.l.b16 %v2090
        %v3609 = vunpack.c.h.b16 %v2090
        %v3610 = vunpack.c.l.b16 %v2091
        %v3611 = vunpack.c.h.b16 %v2091
        %v3612 = vunpack.c.l.b16 %v2092
        %v3613 = vunpack.c.h.b16 %v2092
        %v3614 = vunpack.c.l.b16 %v2093
        %v3615 = vunpack.c.h.b16 %v2093
        %v3616 = vunpack.c.l.b16 %v2094
        %v3617 = vunpack.c.h.b16 %v2094
        %v3618 = vunpack.c.l.b16 %v2095
        %v3619 = vunpack.c.h.b16 %v2095
        %v3620 = vunpack.c.l.b16 %v2096
        %v3621 = vunpack.c.h.b16 %v2096
        %v3622 = vunpack.c.l.b16 %v2097
        %v3623 = vunpack.c.h.b16 %v2097
        %v3624 = vunpack.c.l.b16 %v2098
        %v3625 = vunpack.c.h.b16 %v2098
        %v3626 = vunpack.c.l.b16 %v2099
        %v3627 = vunpack.c.h.b16 %v2099
        %v3628 = vunpack.c.l.b16 %v2100
        %v3629 = vunpack.c.h.b16 %v2100
        %v3630 = vunpack.c.l.b16 %v2101
        %v3631 = vunpack.c.h.b16 %v2101
        %v3632 = vunpack.c.l.b16 %v2102
        %v3633 = vunpack.c.h.b16 %v2102
        %v3634 = vunpack.c.l.b16 %v2103
        %v3635 = vunpack.c.h.b16 %v2103
        %v3636 = vunpack.c.l.b16 %v2104
        %v3637 = vunpack.c.h.b16 %v2104
        %v3638 = vunpack.c.l.b16 %v2105
        %v3639 = vunpack.c.h.b16 %v2105
        %v3640 = vunpack.c.l.b16 %v2106
        %v3641 = vunpack.c.h.b16 %v2106
        %v3642 = vunpack.c.l.b16 %v2107
        %v3643 = vunpack.c.h.b16 %v2107
        %v3644 = vunpack.c.l.b16 %v2108
        %v3645 = vunpack.c.h.b16 %v2108
        %v3646 = vunpack.c.l.b16 %v2109
        %v3647 = vunpack.c.h.b16 %v2109
        %v3648 = vunpack.c.l.b16 %v2110
        %v3649 = vunpack.c.h.b16 %v2110
        %v3650 = vunpack.c.l.b16 %v2111
        %v3651 = vunpack.c.h.b16 %v2111
        %v3652 = vunpack.c.l.b16 %v2112
        %v3653 = vunpack.c.h.b16 %v2112
        %v3654 = vunpack.c.l.b16 %v2113
        %v3655 = vunpack.c.h.b16 %v2113
        %v3656 = vunpack.c.l.b16 %v2114
        %v3657 = vunpack.c.h.b16 %v2114
        %v3658 = vunpack.c.l.b16 %v2115
        %v3659 = vunpack.c.h.b16 %v2115
        %v3660 = vunpack.c.l.b16 %v2116
        %v3661 = vunpack.c.h.b16 %v2116
        %v3662 = vunpack.c.l.b16 %v2117
        %v3663 = vunpack.c.h.b16 %v2117
        %v3664 = vunpack.c.l.b16 %v2118
        %v3665 = vunpack.c.h.b16 %v2118
        %v3666 = vunpack.c.l.b16 %v2119
        %v3667 = vunpack.c.h.b16 %v2119
        %v3668 = vunpack.c.l.b16 %v2120
        %v3669 = vunpack.c.h.b16 %v2120
        %v3670 = vunpack.c.l.b16 %v2121
        %v3671 = vunpack.c.h.b16 %v2121
        %v3672 = vunpack.c.l.b16 %v2122
        %v3673 = vunpack.c.h.b16 %v2122
        %v3674 = vunpack.c.l.b16 %v2123
        %v3675 = vunpack.c.h.b16 %v2123
        %v3676 = vunpack.c.l.b16 %v2124
        %v3677 = vunpack.c.h.b16 %v2124
        %v3678 = vunpack.c.l.b16 %v2125
        %v3679 = vunpack.c.h.b16 %v2125
        %v3680 = vunpack.c.l.b16 %v2126
        %v3681 = vunpack.c.h.b16 %v2126
        %v3682 = vunpack.c.l.b16 %v2127
        %v3683 = vunpack.c.h.b16 %v2127
        %v3684 = vunpack.c.l.b16 %v2128
        %v3685 = vunpack.c.h.b16 %v2128
        %v3686 = vunpack.c.l.b16 %v2129
        %v3687 = vunpack.c.h.b16 %v2129
        %v3688 = vunpack.c.l.b16 %v2130
        %v3689 = vunpack.c.h.b16 %v2130
        %v3690 = vunpack.c.l.b16 %v2131
        %v3691 = vunpack.c.h.b16 %v2131
        %v3692 = vunpack.c.l.b16 %v2132
        %v3693 = vunpack.c.h.b16 %v2132
        %v3694 = vunpack.c.l.b16 %v2133
        %v3695 = vunpack.c.h.b16 %v2133
        %v3696 = vunpack.c.l.b16 %v2134
        %v3697 = vunpack.c.h.b16 %v2134
        %v3698 = vunpack.c.l.b16 %v2135
        %v3699 = vunpack.c.h.b16 %v2135
        %v3700 = vunpack.c.l.b16 %v2136
        %v3701 = vunpack.c.h.b16 %v2136
        %v3702 = vunpack.c.l.b16 %v2137
        %v3703 = vunpack.c.h.b16 %v2137
        %v3704 = vunpack.c.l.b16 %v2138
        %v3705 = vunpack.c.h.b16 %v2138
        %v3706 = vunpack.c.l.b16 %v2139
        %v3707 = vunpack.c.h.b16 %v2139
        %v3708 = vunpack.c.l.b16 %v2140
        %v3709 = vunpack.c.h.b16 %v2140
        %v3710 = vunpack.c.l.b16 %v2141
        %v3711 = vunpack.c.h.b16 %v2141
        %v3712 = vunpack.c.l.b16 %v2142
        %v3713 = vunpack.c.h.b16 %v2142
        %v3714 = vunpack.c.l.b16 %v2143
        %v3715 = vunpack.c.h.b16 %v2143
        %v3716 = vunpack.c.l.b16 %v2144
        %v3717 = vunpack.c.h.b16 %v2144
        %v3718 = vunpack.c.l.b16 %v2145
        %v3719 = vunpack.c.h.b16 %v2145
        %v3720 = vunpack.c.l.b16 %v2146
        %v3721 = vunpack.c.h.b16 %v2146
        %v3722 = vunpack.c.l.b16 %v2147
        %v3723 = vunpack.c.h.b16 %v2147
        %v3724 = vunpack.c.l.b16 %v2148
        %v3725 = vunpack.c.h.b16 %v2148
        %v3726 = vunpack.c.l.b16 %v2149
        %v3727 = vunpack.c.h.b16 %v2149
        %v3728 = vunpack.c.l.b16 %v2150
        %v3729 = vunpack.c.h.b16 %v2150
        %v3730 = vunpack.c.l.b16 %v2151
        %v3731 = vunpack.c.h.b16 %v2151
        %v3732 = vunpack.c.l.b16 %v2152
        %v3733 = vunpack.c.h.b16 %v2152
        %v3734 = vunpack.c.l.b16 %v2153
        %v3735 = vunpack.c.h.b16 %v2153
        %v3736 = vunpack.c.l.b16 %v2154
        %v3737 = vunpack.c.h.b16 %v2154
        %v3738 = vunpack.c.l.b16 %v2155
        %v3739 = vunpack.c.h.b16 %v2155
        %v3740 = vunpack.c.l.b16 %v2156
        %v3741 = vunpack.c.h.b16 %v2156
        %v3742 = vunpack.c.l.b16 %v2157
        %v3743 = vunpack.c.h.b16 %v2157
        %v3744 = vunpack.c.l.b16 %v2158
        %v3745 = vunpack.c.h.b16 %v2158
        %v3746 = vunpack.c.l.b16 %v2159
        %v3747 = vunpack.c.h.b16 %v2159
        %v3748 = vunpack.c.l.b16 %v2160
        %v3749 = vunpack.c.h.b16 %v2160
        %v3750 = vunpack.c.l.b16 %v2161
        %v3751 = vunpack.c.h.b16 %v2161
        %v3752 = vunpack.c.l.b16 %v2162
        %v3753 = vunpack.c.h.b16 %v2162
        %v3754 = vunpack.c.l.b16 %v2163
        %v3755 = vunpack.c.h.b16 %v2163
        %v3756 = vunpack.c.l.b16 %v2164
        %v3757 = vunpack.c.h.b16 %v2164
        %v3758 = vunpack.c.l.b16 %v2165
        %v3759 = vunpack.c.h.b16 %v2165
        %v3760 = vunpack.c.l.b16 %v2166
        %v3761 = vunpack.c.h.b16 %v2166
        %v3762 = vunpack.c.l.b16 %v2167
        %v3763 = vunpack.c.h.b16 %v2167
        %v3764 = vunpack.c.l.b16 %v2168
        %v3765 = vunpack.c.h.b16 %v2168
        %v3766 = vunpack.c.l.b16 %v2169
        %v3767 = vunpack.c.h.b16 %v2169
        %v3768 = vunpack.c.l.b16 %v2170
        %v3769 = vunpack.c.h.b16 %v2170
        %v3770 = vunpack.c.l.b16 %v2171
        %v3771 = vunpack.c.h.b16 %v2171
        %v3772 = vunpack.c.l.b16 %v2172
        %v3773 = vunpack.c.h.b16 %v2172
        %v3774 = vunpack.c.l.b16 %v2173
        %v3775 = vunpack.c.h.b16 %v2173
        %v3776 = vunpack.c.l.b16 %v2174
        %v3777 = vunpack.c.h.b16 %v2174
        %v3778 = vunpack.c.l.b16 %v2175
        %v3779 = vunpack.c.h.b16 %v2175
        %v3780 = vunpack.c.l.b16 %v2176
        %v3781 = vunpack.c.h.b16 %v2176
        %v3782 = vunpack.c.l.b16 %v2177
        %v3783 = vunpack.c.h.b16 %v2177
        %v3784 = vunpack.c.l.b16 %v2178
        %v3785 = vunpack.c.h.b16 %v2178
        %v3786 = vunpack.c.l.b16 %v2179
        %v3787 = vunpack.c.h.b16 %v2179
        %v3788 = vunpack.c.l.b16 %v2180
        %v3789 = vunpack.c.h.b16 %v2180
        %v3790 = vunpack.c.l.b16 %v2181
        %v3791 = vunpack.c.h.b16 %v2181
        %v3792 = vunpack.c.l.b16 %v2182
        %v3793 = vunpack.c.h.b16 %v2182
        %v3794 = vunpack.c.l.b16 %v2183
        %v3795 = vunpack.c.h.b16 %v2183
        %v3796 = vunpack.c.l.b16 %v2184
        %v3797 = vunpack.c.h.b16 %v2184
        %v3798 = vunpack.c.l.b16 %v2185
        %v3799 = vunpack.c.h.b16 %v2185
        %v3800 = vunpack.c.l.b16 %v2186
        %v3801 = vunpack.c.h.b16 %v2186
        %v3802 = vunpack.c.l.b16 %v2187
        %v3803 = vunpack.c.h.b16 %v2187
        %v3804 = vunpack.c.l.b16 %v2188
        %v3805 = vunpack.c.h.b16 %v2188
        %v3806 = vunpack.c.l.b16 %v2189
        %v3807 = vunpack.c.h.b16 %v2189
        %v3808 = vunpack.c.l.b16 %v2190
        %v3809 = vunpack.c.h.b16 %v2190
        %v3810 = vunpack.c.l.b16 %v2191
        %v3811 = vunpack.c.h.b16 %v2191
        %v3812 = vunpack.c.l.b16 %v2192
        %v3813 = vunpack.c.h.b16 %v2192
        %v3814 = vunpack.c.l.b16 %v2193
        %v3815 = vunpack.c.h.b16 %v2193
        %v3816 = vunpack.c.l.b16 %v2194
        %v3817 = vunpack.c.h.b16 %v2194
        %v3818 = vunpack.c.l.b16 %v2195
        %v3819 = vunpack.c.h.b16 %v2195
        %v3820 = vunpack.c.l.b16 %v2196
        %v3821 = vunpack.c.h.b16 %v2196
        %v3822 = vunpack.c.l.b16 %v2197
        %v3823 = vunpack.c.h.b16 %v2197
        %v3824 = vunpack.c.l.b16 %v2198
        %v3825 = vunpack.c.h.b16 %v2198
        %v3826 = vunpack.c.l.b16 %v2199
        %v3827 = vunpack.c.h.b16 %v2199
        %v3828 = vunpack.c.l.b16 %v2200
        %v3829 = vunpack.c.h.b16 %v2200
        %v3830 = vunpack.c.l.b16 %v2201
        %v3831 = vunpack.c.h.b16 %v2201
        %v3832 = vunpack.c.l.b16 %v2202
        %v3833 = vunpack.c.h.b16 %v2202
        %v3834 = vunpack.c.l.b16 %v2203
        %v3835 = vunpack.c.h.b16 %v2203
        %v3836 = vunpack.c.l.b16 %v2204
        %v3837 = vunpack.c.h.b16 %v2204
        %v3838 = vunpack.c.l.b16 %v2205
        %v3839 = vunpack.c.h.b16 %v2205
        %v3840 = vunpack.c.l.b16 %v2206
        %v3841 = vunpack.c.h.b16 %v2206
        %v3842 = vunpack.c.l.b16 %v2207
        %v3843 = vunpack.c.h.b16 %v2207
        %v3844 = vunpack.c.l.b16 %v2208
        %v3845 = vunpack.c.h.b16 %v2208
        %v3846 = vunpack.c.l.b16 %v2209
        %v3847 = vunpack.c.h.b16 %v2209
        %v3848 = vunpack.c.l.b16 %v2210
        %v3849 = vunpack.c.h.b16 %v2210
        %v3850 = vunpack.c.l.b16 %v2211
        %v3851 = vunpack.c.h.b16 %v2211
        %v3852 = vunpack.c.l.b16 %v2212
        %v3853 = vunpack.c.h.b16 %v2212
        %v3854 = vunpack.c.l.b16 %v2213
        %v3855 = vunpack.c.h.b16 %v2213
        %v3856 = vunpack.c.l.b16 %v2214
        %v3857 = vunpack.c.h.b16 %v2214
        %v3858 = vunpack.c.l.b16 %v2215
        %v3859 = vunpack.c.h.b16 %v2215
        %v3860 = vunpack.c.l.b16 %v2216
        %v3861 = vunpack.c.h.b16 %v2216
        %v3862 = vunpack.c.l.b16 %v2217
        %v3863 = vunpack.c.h.b16 %v2217
        %v3864 = vunpack.c.l.b16 %v2218
        %v3865 = vunpack.c.h.b16 %v2218
        %v3866 = vunpack.c.l.b16 %v2219
        %v3867 = vunpack.c.h.b16 %v2219
        %v3868 = vunpack.c.l.b16 %v2220
        %v3869 = vunpack.c.h.b16 %v2220
        %v3870 = vunpack.c.l.b16 %v2221
        %v3871 = vunpack.c.h.b16 %v2221
        %v3872 = vunpack.c.l.b16 %v2222
        %v3873 = vunpack.c.h.b16 %v2222
        %v3874 = vunpack.c.l.b16 %v2223
        %v3875 = vunpack.c.h.b16 %v2223
        %v3876 = vunpack.c.l.b16 %v2224
        %v3877 = vunpack.c.h.b16 %v2224
        %v3878 = vpack.c.b16 %v2858, %v2854
        %v3879 = vpack.c.b16 %v2859, %v2855
        %v3880 = vpack.c.b16 %v2860, %v2856
        %v3881 = vpack.c.b16 %v2861, %v2857
        %v3882 = vpack.c.b16 %v2866, %v2862
        %v3883 = vpack.c.b16 %v2867, %v2863
        %v3884 = vpack.c.b16 %v2868, %v2864
        %v3885 = vpack.c.b16 %v2869, %v2865
        %v3886 = vpack.c.b16 %v2874, %v2870
        %v3887 = vpack.c.b16 %v2875, %v2871
        %v3888 = vpack.c.b16 %v2876, %v2872
        %v3889 = vpack.c.b16 %v2877, %v2873
        %v3890 = vpack.c.b16 %v2882, %v2878
        %v3891 = vpack.c.b16 %v2883, %v2879
        %v3892 = vpack.c.b16 %v2884, %v2880
        %v3893 = vpack.c.b16 %v2885, %v2881
        %v3894 = vpack.c.b16 %v2890, %v2886
        %v3895 = vpack.c.b16 %v2891, %v2887
        %v3896 = vpack.c.b16 %v2892, %v2888
        %v3897 = vpack.c.b16 %v2893, %v2889
        %v3898 = vpack.c.b16 %v2898, %v2894
        %v3899 = vpack.c.b16 %v2899, %v2895
        %v3900 = vpack.c.b16 %v2900, %v2896
        %v3901 = vpack.c.b16 %v2901, %v2897
        %v3902 = vpack.c.b16 %v2906, %v2902
        %v3903 = vpack.c.b16 %v2907, %v2903
        %v3904 = vpack.c.b16 %v2908, %v2904
        %v3905 = vpack.c.b16 %v2909, %v2905
        %v3906 = vpack.c.b16 %v2914, %v2910
        %v3907 = vpack.c.b16 %v2915, %v2911
        %v3908 = vpack.c.b16 %v2916, %v2912
        %v3909 = vpack.c.b16 %v2917, %v2913
        %v3910 = vpack.c.b16 %v2922, %v2918
        %v3911 = vpack.c.b16 %v2923, %v2919
        %v3912 = vpack.c.b16 %v2924, %v2920
        %v3913 = vpack.c.b16 %v2925, %v2921
        %v3914 = vpack.c.b16 %v2930, %v2926
        %v3915 = vpack.c.b16 %v2931, %v2927
        %v3916 = vpack.c.b16 %v2932, %v2928
        %v3917 = vpack.c.b16 %v2933, %v2929
        %v3918 = vpack.c.b16 %v2938, %v2934
        %v3919 = vpack.c.b16 %v2939, %v2935
        %v3920 = vpack.c.b16 %v2940, %v2936
        %v3921 = vpack.c.b16 %v2941, %v2937
        %v3922 = vpack.c.b16 %v2946, %v2942
        %v3923 = vpack.c.b16 %v2947, %v2943
        %v3924 = vpack.c.b16 %v2948, %v2944
        %v3925 = vpack.c.b16 %v2949, %v2945
        %v3926 = vpack.c.b16 %v2954, %v2950
        %v3927 = vpack.c.b16 %v2955, %v2951
        %v3928 = vpack.c.b16 %v2956, %v2952
        %v3929 = vpack.c.b16 %v2957, %v2953
        %v3930 = vpack.c.b16 %v2962, %v2958
        %v3931 = vpack.c.b16 %v2963, %v2959
        %v3932 = vpack.c.b16 %v2964, %v2960
        %v3933 = vpack.c.b16 %v2965, %v2961
        %v3934 = vpack.c.b16 %v2970, %v2966
        %v3935 = vpack.c.b16 %v2971, %v2967
        %v3936 = vpack.c.b16 %v2972, %v2968
        %v3937 = vpack.c.b16 %v2973, %v2969
        %v3938 = vpack.c.b16 %v2978, %v2974
        %v3939 = vpack.c.b16 %v2979, %v2975
        %v3940 = vpack.c.b16 %v2980, %v2976
        %v3941 = vpack.c.b16 %v2981, %v2977
        %v3942 = vpack.c.b16 %v2986, %v2982
        %v3943 = vpack.c.b16 %v2987, %v2983
        %v3944 = vpack.c.b16 %v2988, %v2984
        %v3945 = vpack.c.b16 %v2989, %v2985
        %v3946 = vpack.c.b16 %v2994, %v2990
        %v3947 = vpack.c.b16 %v2995, %v2991
        %v3948 = vpack.c.b16 %v2996, %v2992
        %v3949 = vpack.c.b16 %v2997, %v2993
        %v3950 = vpack.c.b16 %v3002, %v2998
        %v3951 = vpack.c.b16 %v3003, %v2999
        %v3952 = vpack.c.b16 %v3004, %v3000
        %v3953 = vpack.c.b16 %v3005, %v3001
        %v3954 = vpack.c.b16 %v3010, %v3006
        %v3955 = vpack.c.b16 %v3011, %v3007
        %v3956 = vpack.c.b16 %v3012, %v3008
        %v3957 = vpack.c.b16 %v3013, %v3009
        %v3958 = vpack.c.b16 %v3018, %v3014
        %v3959 = vpack.c.b16 %v3019, %v3015
        %v3960 = vpack.c.b16 %v3020, %v3016
        %v3961 = vpack.c.b16 %v3021, %v3017
        %v3962 = vpack.c.b16 %v3026, %v3022
        %v3963 = vpack.c.b16 %v3027, %v3023
        %v3964 = vpack.c.b16 %v3028, %v3024
        %v3965 = vpack.c.b16 %v3029, %v3025
        %v3966 = vpack.c.b16 %v3034, %v3030
        %v3967 = vpack.c.b16 %v3035, %v3031
        %v3968 = vpack.c.b16 %v3036, %v3032
        %v3969 = vpack.c.b16 %v3037, %v3033
        %v3970 = vpack.c.b16 %v3042, %v3038
        %v3971 = vpack.c.b16 %v3043, %v3039
        %v3972 = vpack.c.b16 %v3044, %v3040
        %v3973 = vpack.c.b16 %v3045, %v3041
        %v3974 = vpack.c.b16 %v3050, %v3046
        %v3975 = vpack.c.b16 %v3051, %v3047
        %v3976 = vpack.c.b16 %v3052, %v3048
        %v3977 = vpack.c.b16 %v3053, %v3049
        %v3978 = vpack.c.b16 %v3058, %v3054
        %v3979 = vpack.c.b16 %v3059, %v3055
        %v3980 = vpack.c.b16 %v3060, %v3056
        %v3981 = vpack.c.b16 %v3061, %v3057
        %v3982 = vpack.c.b16 %v3066, %v3062
        %v3983 = vpack.c.b16 %v3067, %v3063
        %v3984 = vpack.c.b16 %v3068, %v3064
        %v3985 = vpack.c.b16 %v3069, %v3065
        %v3986 = vpack.c.b16 %v3074, %v3070
        %v3987 = vpack.c.b16 %v3075, %v3071
        %v3988 = vpack.c.b16 %v3076, %v3072
        %v3989 = vpack.c.b16 %v3077, %v3073
        %v3990 = vpack.c.b16 %v3082, %v3078
        %v3991 = vpack.c.b16 %v3083, %v3079
        %v3992 = vpack.c.b16 %v3084, %v3080
        %v3993 = vpack.c.b16 %v3085, %v3081
        %v3994 = vpack.c.b16 %v3090, %v3086
        %v3995 = vpack.c.b16 %v3091, %v3087
        %v3996 = vpack.c.b16 %v3092, %v3088
        %v3997 = vpack.c.b16 %v3093, %v3089
        %v3998 = vpack.c.b16 %v3098, %v3094
        %v3999 = vpack.c.b16 %v3099, %v3095
        %v4000 = vpack.c.b16 %v3100, %v3096
        %v4001 = vpack.c.b16 %v3101, %v3097
        %v4002 = vpack.c.b16 %v3106, %v3102
        %v4003 = vpack.c.b16 %v3107, %v3103
        %v4004 = vpack.c.b16 %v3108, %v3104
        %v4005 = vpack.c.b16 %v3109, %v3105
        %v4006 = vpack.c.b16 %v3114, %v3110
        %v4007 = vpack.c.b16 %v3115, %v3111
        %v4008 = vpack.c.b16 %v3116, %v3112
        %v4009 = vpack.c.b16 %v3117, %v3113
        %v4010 = vpack.c.b16 %v3122, %v3118
        %v4011 = vpack.c.b16 %v3123, %v3119
        %v4012 = vpack.c.b16 %v3124, %v3120
        %v4013 = vpack.c.b16 %v3125, %v3121
        %v4014 = vpack.c.b16 %v3130, %v3126
        %v4015 = vpack.c.b16 %v3131, %v3127
        %v4016 = vpack.c.b16 %v3132, %v3128
        %v4017 = vpack.c.b16 %v3133, %v3129
        %v4018 = vpack.c.b16 %v3138, %v3134
        %v4019 = vpack.c.b16 %v3139, %v3135
        %v4020 = vpack.c.b16 %v3140, %v3136
        %v4021 = vpack.c.b16 %v3141, %v3137
        %v4022 = vpack.c.b16 %v3146, %v3142
        %v4023 = vpack.c.b16 %v3147, %v3143
        %v4024 = vpack.c.b16 %v3148, %v3144
        %v4025 = vpack.c.b16 %v3149, %v3145
        %v4026 = vpack.c.b16 %v3154, %v3150
        %v4027 = vpack.c.b16 %v3155, %v3151
        %v4028 = vpack.c.b16 %v3156, %v3152
        %v4029 = vpack.c.b16 %v3157, %v3153
        %v4030 = vpack.c.b16 %v3162, %v3158
        %v4031 = vpack.c.b16 %v3163, %v3159
        %v4032 = vpack.c.b16 %v3164, %v3160
        %v4033 = vpack.c.b16 %v3165, %v3161
        %v4034 = vpack.c.b16 %v3170, %v3166
        %v4035 = vpack.c.b16 %v3171, %v3167
        %v4036 = vpack.c.b16 %v3172, %v3168
        %v4037 = vpack.c.b16 %v3173, %v3169
        %v4038 = vpack.c.b16 %v3178, %v3174
        %v4039 = vpack.c.b16 %v3179, %v3175
        %v4040 = vpack.c.b16 %v3180, %v3176
        %v4041 = vpack.c.b16 %v3181, %v3177
        %v4042 = vpack.c.b16 %v3186, %v3182
        %v4043 = vpack.c.b16 %v3187, %v3183
        %v4044 = vpack.c.b16 %v3188, %v3184
        %v4045 = vpack.c.b16 %v3189, %v3185
        %v4046 = vpack.c.b16 %v3194, %v3190
        %v4047 = vpack.c.b16 %v3195, %v3191
        %v4048 = vpack.c.b16 %v3196, %v3192
        %v4049 = vpack.c.b16 %v3197, %v3193
        %v4050 = vpack.c.b16 %v3202, %v3198
        %v4051 = vpack.c.b16 %v3203, %v3199
        %v4052 = vpack.c.b16 %v3204, %v3200
        %v4053 = vpack.c.b16 %v3205, %v3201
        %v4054 = vpack.c.b16 %v3210, %v3206
        %v4055 = vpack.c.b16 %v3211, %v3207
        %v4056 = vpack.c.b16 %v3212, %v3208
        %v4057 = vpack.c.b16 %v3213, %v3209
        %v4058 = vpack.c.b16 %v3218, %v3214
        %v4059 = vpack.c.b16 %v3219, %v3215
        %v4060 = vpack.c.b16 %v3220, %v3216
        %v4061 = vpack.c.b16 %v3221, %v3217
        %v4062 = vpack.c.b16 %v3226, %v3222
        %v4063 = vpack.c.b16 %v3227, %v3223
        %v4064 = vpack.c.b16 %v3228, %v3224
        %v4065 = vpack.c.b16 %v3229, %v3225
        %v4066 = vpack.c.b16 %v3234, %v3230
        %v4067 = vpack.c.b16 %v3235, %v3231
        %v4068 = vpack.c.b16 %v3236, %v3232
        %v4069 = vpack.c.b16 %v3237, %v3233
        %v4070 = vpack.c.b16 %v3242, %v3238
        %v4071 = vpack.c.b16 %v3243, %v3239
        %v4072 = vpack.c.b16 %v3244, %v3240
        %v4073 = vpack.c.b16 %v3245, %v3241
        %v4074 = vpack.c.b16 %v3250, %v3246
        %v4075 = vpack.c.b16 %v3251, %v3247
        %v4076 = vpack.c.b16 %v3252, %v3248
        %v4077 = vpack.c.b16 %v3253, %v3249
        %v4078 = vpack.c.b16 %v3258, %v3254
        %v4079 = vpack.c.b16 %v3259, %v3255
        %v4080 = vpack.c.b16 %v3260, %v3256
        %v4081 = vpack.c.b16 %v3261, %v3257
        %v4082 = vpack.c.b16 %v3266, %v3262
        %v4083 = vpack.c.b16 %v3267, %v3263
        %v4084 = vpack.c.b16 %v3268, %v3264
        %v4085 = vpack.c.b16 %v3269, %v3265
        %v4086 = vpack.c.b16 %v3274, %v3270
        %v4087 = vpack.c.b16 %v3275, %v3271
        %v4088 = vpack.c.b16 %v3276, %v3272
        %v4089 = vpack.c.b16 %v3277, %v3273
        %v4090 = vpack.c.b16 %v3282, %v3278
        %v4091 = vpack.c.b16 %v3283, %v3279
        %v4092 = vpack.c.b16 %v3284, %v3280
        %v4093 = vpack.c.b16 %v3285, %v3281
        %v4094 = vpack.c.b16 %v3290, %v3286
        %v4095 = vpack.c.b16 %v3291, %v3287
        %v4096 = vpack.c.b16 %v3292, %v3288
        %v4097 = vpack.c.b16 %v3293, %v3289
        %v4098 = vpack.c.b16 %v3298, %v3294
        %v4099 = vpack.c.b16 %v3299, %v3295
        %v4100 = vpack.c.b16 %v3300, %v3296
        %v4101 = vpack.c.b16 %v3301, %v3297
        %v4102 = vpack.c.b16 %v3306, %v3302
        %v4103 = vpack.c.b16 %v3307, %v3303
        %v4104 = vpack.c.b16 %v3308, %v3304
        %v4105 = vpack.c.b16 %v3309, %v3305
        %v4106 = vpack.c.b16 %v3314, %v3310
        %v4107 = vpack.c.b16 %v3315, %v3311
        %v4108 = vpack.c.b16 %v3316, %v3312
        %v4109 = vpack.c.b16 %v3317, %v3313
        %v4110 = vpack.c.b16 %v3322, %v3318
        %v4111 = vpack.c.b16 %v3323, %v3319
        %v4112 = vpack.c.b16 %v3324, %v3320
        %v4113 = vpack.c.b16 %v3325, %v3321
        %v4114 = vpack.c.b16 %v3330, %v3326
        %v4115 = vpack.c.b16 %v3331, %v3327
        %v4116 = vpack.c.b16 %v3332, %v3328
        %v4117 = vpack.c.b16 %v3333, %v3329
        %v4118 = vpack.c.b16 %v3338, %v3334
        %v4119 = vpack.c.b16 %v3339, %v3335
        %v4120 = vpack.c.b16 %v3340, %v3336
        %v4121 = vpack.c.b16 %v3341, %v3337
        %v4122 = vpack.c.b16 %v3346, %v3342
        %v4123 = vpack.c.b16 %v3347, %v3343
        %v4124 = vpack.c.b16 %v3348, %v3344
        %v4125 = vpack.c.b16 %v3349, %v3345
        %v4126 = vpack.c.b16 %v3354, %v3350
        %v4127 = vpack.c.b16 %v3355, %v3351
        %v4128 = vpack.c.b16 %v3356, %v3352
        %v4129 = vpack.c.b16 %v3357, %v3353
        %v4130 = vpack.c.b16 %v3362, %v3358
        %v4131 = vpack.c.b16 %v3363, %v3359
        %v4132 = vpack.c.b16 %v3364, %v3360
        %v4133 = vpack.c.b16 %v3365, %v3361
        %v4134 = vpack.c.b16 %v3370, %v3366
        %v4135 = vpack.c.b16 %v3371, %v3367
        %v4136 = vpack.c.b16 %v3372, %v3368
        %v4137 = vpack.c.b16 %v3373, %v3369
        %v4138 = vpack.c.b16 %v3378, %v3374
        %v4139 = vpack.c.b16 %v3379, %v3375
        %v4140 = vpack.c.b16 %v3380, %v3376
        %v4141 = vpack.c.b16 %v3381, %v3377
        %v4142 = vpack.c.b16 %v3386, %v3382
        %v4143 = vpack.c.b16 %v3387, %v3383
        %v4144 = vpack.c.b16 %v3388, %v3384
        %v4145 = vpack.c.b16 %v3389, %v3385
        %v4146 = vpack.c.b16 %v3394, %v3390
        %v4147 = vpack.c.b16 %v3395, %v3391
        %v4148 = vpack.c.b16 %v3396, %v3392
        %v4149 = vpack.c.b16 %v3397, %v3393
        %v4150 = vpack.c.b16 %v3402, %v3398
        %v4151 = vpack.c.b16 %v3403, %v3399
        %v4152 = vpack.c.b16 %v3404, %v3400
        %v4153 = vpack.c.b16 %v3405, %v3401
        %v4154 = vpack.c.b16 %v3410, %v3406
        %v4155 = vpack.c.b16 %v3411, %v3407
        %v4156 = vpack.c.b16 %v3412, %v3408
        %v4157 = vpack.c.b16 %v3413, %v3409
        %v4158 = vpack.c.b16 %v3418, %v3414
        %v4159 = vpack.c.b16 %v3419, %v3415
        %v4160 = vpack.c.b16 %v3420, %v3416
        %v4161 = vpack.c.b16 %v3421, %v3417
        %v4162 = vpack.c.b16 %v3426, %v3422
        %v4163 = vpack.c.b16 %v3427, %v3423
        %v4164 = vpack.c.b16 %v3428, %v3424
        %v4165 = vpack.c.b16 %v3429, %v3425
        %v4166 = vpack.c.b16 %v3434, %v3430
        %v4167 = vpack.c.b16 %v3435, %v3431
        %v4168 = vpack.c.b16 %v3436, %v3432
        %v4169 = vpack.c.b16 %v3437, %v3433
        %v4170 = vpack.c.b16 %v3442, %v3438
        %v4171 = vpack.c.b16 %v3443, %v3439
        %v4172 = vpack.c.b16 %v3444, %v3440
        %v4173 = vpack.c.b16 %v3445, %v3441
        %v4174 = vpack.c.b16 %v3450, %v3446
        %v4175 = vpack.c.b16 %v3451, %v3447
        %v4176 = vpack.c.b16 %v3452, %v3448
        %v4177 = vpack.c.b16 %v3453, %v3449
        %v4178 = vpack.c.b16 %v3458, %v3454
        %v4179 = vpack.c.b16 %v3459, %v3455
        %v4180 = vpack.c.b16 %v3460, %v3456
        %v4181 = vpack.c.b16 %v3461, %v3457
        %v4182 = vpack.c.b16 %v3466, %v3462
        %v4183 = vpack.c.b16 %v3467, %v3463
        %v4184 = vpack.c.b16 %v3468, %v3464
        %v4185 = vpack.c.b16 %v3469, %v3465
        %v4186 = vpack.c.b16 %v3474, %v3470
        %v4187 = vpack.c.b16 %v3475, %v3471
        %v4188 = vpack.c.b16 %v3476, %v3472
        %v4189 = vpack.c.b16 %v3477, %v3473
        %v4190 = vpack.c.b16 %v3482, %v3478
        %v4191 = vpack.c.b16 %v3483, %v3479
        %v4192 = vpack.c.b16 %v3484, %v3480
        %v4193 = vpack.c.b16 %v3485, %v3481
        %v4194 = vpack.c.b16 %v3490, %v3486
        %v4195 = vpack.c.b16 %v3491, %v3487
        %v4196 = vpack.c.b16 %v3492, %v3488
        %v4197 = vpack.c.b16 %v3493, %v3489
        %v4198 = vpack.c.b16 %v3498, %v3494
        %v4199 = vpack.c.b16 %v3499, %v3495
        %v4200 = vpack.c.b16 %v3500, %v3496
        %v4201 = vpack.c.b16 %v3501, %v3497
        %v4202 = vpack.c.b16 %v3506, %v3502
        %v4203 = vpack.c.b16 %v3507, %v3503
        %v4204 = vpack.c.b16 %v3508, %v3504
        %v4205 = vpack.c.b16 %v3509, %v3505
        %v4206 = vpack.c.b16 %v3514, %v3510
        %v4207 = vpack.c.b16 %v3515, %v3511
        %v4208 = vpack.c.b16 %v3516, %v3512
        %v4209 = vpack.c.b16 %v3517, %v3513
        %v4210 = vpack.c.b16 %v3522, %v3518
        %v4211 = vpack.c.b16 %v3523, %v3519
        %v4212 = vpack.c.b16 %v3524, %v3520
        %v4213 = vpack.c.b16 %v3525, %v3521
        %v4214 = vpack.c.b16 %v3530, %v3526
        %v4215 = vpack.c.b16 %v3531, %v3527
        %v4216 = vpack.c.b16 %v3532, %v3528
        %v4217 = vpack.c.b16 %v3533, %v3529
        %v4218 = vpack.c.b16 %v3538, %v3534
        %v4219 = vpack.c.b16 %v3539, %v3535
        %v4220 = vpack.c.b16 %v3540, %v3536
        %v4221 = vpack.c.b16 %v3541, %v3537
        %v4222 = vpack.c.b16 %v3546, %v3542
        %v4223 = vpack.c.b16 %v3547, %v3543
        %v4224 = vpack.c.b16 %v3548, %v3544
        %v4225 = vpack.c.b16 %v3549, %v3545
        %v4226 = vpack.c.b16 %v3554, %v3550
        %v4227 = vpack.c.b16 %v3555, %v3551
        %v4228 = vpack.c.b16 %v3556, %v3552
        %v4229 = vpack.c.b16 %v3557, %v3553
        %v4230 = vpack.c.b16 %v3562, %v3558
        %v4231 = vpack.c.b16 %v3563, %v3559
        %v4232 = vpack.c.b16 %v3564, %v3560
        %v4233 = vpack.c.b16 %v3565, %v3561
        %v4234 = vpack.c.b16 %v3570, %v3566
        %v4235 = vpack.c.b16 %v3571, %v3567
        %v4236 = vpack.c.b16 %v3572, %v3568
        %v4237 = vpack.c.b16 %v3573, %v3569
        %v4238 = vpack.c.b16 %v3578, %v3574
        %v4239 = vpack.c.b16 %v3579, %v3575
        %v4240 = vpack.c.b16 %v3580, %v3576
        %v4241 = vpack.c.b16 %v3581, %v3577
        %v4242 = vpack.c.b16 %v3586, %v3582
        %v4243 = vpack.c.b16 %v3587, %v3583
        %v4244 = vpack.c.b16 %v3588, %v3584
        %v4245 = vpack.c.b16 %v3589, %v3585
        %v4246 = vpack.c.b16 %v3594, %v3590
        %v4247 = vpack.c.b16 %v3595, %v3591
        %v4248 = vpack.c.b16 %v3596, %v3592
        %v4249 = vpack.c.b16 %v3597, %v3593
        %v4250 = vpack.c.b16 %v3602, %v3598
        %v4251 = vpack.c.b16 %v3603, %v3599
        %v4252 = vpack.c.b16 %v3604, %v3600
        %v4253 = vpack.c.b16 %v3605, %v3601
        %v4254 = vpack.c.b16 %v3610, %v3606
        %v4255 = vpack.c.b16 %v3611, %v3607
        %v4256 = vpack.c.b16 %v3612, %v3608
        %v4257 = vpack.c.b16 %v3613, %v3609
        %v4258 = vpack.c.b16 %v3618, %v3614
        %v4259 = vpack.c.b16 %v3619, %v3615
        %v4260 = vpack.c.b16 %v3620, %v3616
        %v4261 = vpack.c.b16 %v3621, %v3617
        %v4262 = vpack.c.b16 %v3626, %v3622
        %v4263 = vpack.c.b16 %v3627, %v3623
        %v4264 = vpack.c.b16 %v3628, %v3624
        %v4265 = vpack.c.b16 %v3629, %v3625
        %v4266 = vpack.c.b16 %v3634, %v3630
        %v4267 = vpack.c.b16 %v3635, %v3631
        %v4268 = vpack.c.b16 %v3636, %v3632
        %v4269 = vpack.c.b16 %v3637, %v3633
        %v4270 = vpack.c.b16 %v3642, %v3638
        %v4271 = vpack.c.b16 %v3643, %v3639
        %v4272 = vpack.c.b16 %v3644, %v3640
        %v4273 = vpack.c.b16 %v3645, %v3641
        %v4274 = vpack.c.b16 %v3650, %v3646
        %v4275 = vpack.c.b16 %v3651, %v3647
        %v4276 = vpack.c.b16 %v3652, %v3648
        %v4277 = vpack.c.b16 %v3653, %v3649
        %v4278 = vpack.c.b16 %v3658, %v3654
        %v4279 = vpack.c.b16 %v3659, %v3655
        %v4280 = vpack.c.b16 %v3660, %v3656
        %v4281 = vpack.c.b16 %v3661, %v3657
        %v4282 = vpack.c.b16 %v3666, %v3662
        %v4283 = vpack.c.b16 %v3667, %v3663
        %v4284 = vpack.c.b16 %v3668, %v3664
        %v4285 = vpack.c.b16 %v3669, %v3665
        %v4286 = vpack.c.b16 %v3674, %v3670
        %v4287 = vpack.c.b16 %v3675, %v3671
        %v4288 = vpack.c.b16 %v3676, %v3672
        %v4289 = vpack.c.b16 %v3677, %v3673
        %v4290 = vpack.c.b16 %v3682, %v3678
        %v4291 = vpack.c.b16 %v3683, %v3679
        %v4292 = vpack.c.b16 %v3684, %v3680
        %v4293 = vpack.c.b16 %v3685, %v3681
        %v4294 = vpack.c.b16 %v3690, %v3686
        %v4295 = vpack.c.b16 %v3691, %v3687
        %v4296 = vpack.c.b16 %v3692, %v3688
        %v4297 = vpack.c.b16 %v3693, %v3689
        %v4298 = vpack.c.b16 %v3698, %v3694
        %v4299 = vpack.c.b16 %v3699, %v3695
        %v4300 = vpack.c.b16 %v3700, %v3696
        %v4301 = vpack.c.b16 %v3701, %v3697
        %v4302 = vpack.c.b16 %v3706, %v3702
        %v4303 = vpack.c.b16 %v3707, %v3703
        %v4304 = vpack.c.b16 %v3708, %v3704
        %v4305 = vpack.c.b16 %v3709, %v3705
        %v4306 = vpack.c.b16 %v3714, %v3710
        %v4307 = vpack.c.b16 %v3715, %v3711
        %v4308 = vpack.c.b16 %v3716, %v3712
        %v4309 = vpack.c.b16 %v3717, %v3713
        %v4310 = vpack.c.b16 %v3722, %v3718
        %v4311 = vpack.c.b16 %v3723, %v3719
        %v4312 = vpack.c.b16 %v3724, %v3720
        %v4313 = vpack.c.b16 %v3725, %v3721
        %v4314 = vpack.c.b16 %v3730, %v3726
        %v4315 = vpack.c.b16 %v3731, %v3727
        %v4316 = vpack.c.b16 %v3732, %v3728
        %v4317 = vpack.c.b16 %v3733, %v3729
        %v4318 = vpack.c.b16 %v3738, %v3734
        %v4319 = vpack.c.b16 %v3739, %v3735
        %v4320 = vpack.c.b16 %v3740, %v3736
        %v4321 = vpack.c.b16 %v3741, %v3737
        %v4322 = vpack.c.b16 %v3746, %v3742
        %v4323 = vpack.c.b16 %v3747, %v3743
        %v4324 = vpack.c.b16 %v3748, %v3744
        %v4325 = vpack.c.b16 %v3749, %v3745
        %v4326 = vpack.c.b16 %v3754, %v3750
        %v4327 = vpack.c.b16 %v3755, %v3751
        %v4328 = vpack.c.b16 %v3756, %v3752
        %v4329 = vpack.c.b16 %v3757, %v3753
        %v4330 = vpack.c.b16 %v3762, %v3758
        %v4331 = vpack.c.b16 %v3763, %v3759
        %v4332 = vpack.c.b16 %v3764, %v3760
        %v4333 = vpack.c.b16 %v3765, %v3761
        %v4334 = vpack.c.b16 %v3770, %v3766
        %v4335 = vpack.c.b16 %v3771, %v3767
        %v4336 = vpack.c.b16 %v3772, %v3768
        %v4337 = vpack.c.b16 %v3773, %v3769
        %v4338 = vpack.c.b16 %v3778, %v3774
        %v4339 = vpack.c.b16 %v3779, %v3775
        %v4340 = vpack.c.b16 %v3780, %v3776
        %v4341 = vpack.c.b16 %v3781, %v3777
        %v4342 = vpack.c.b16 %v3786, %v3782
        %v4343 = vpack.c.b16 %v3787, %v3783
        %v4344 = vpack.c.b16 %v3788, %v3784
        %v4345 = vpack.c.b16 %v3789, %v3785
        %v4346 = vpack.c.b16 %v3794, %v3790
        %v4347 = vpack.c.b16 %v3795, %v3791
        %v4348 = vpack.c.b16 %v3796, %v3792
        %v4349 = vpack.c.b16 %v3797, %v3793
        %v4350 = vpack.c.b16 %v3802, %v3798
        %v4351 = vpack.c.b16 %v3803, %v3799
        %v4352 = vpack.c.b16 %v3804, %v3800
        %v4353 = vpack.c.b16 %v3805, %v3801
        %v4354 = vpack.c.b16 %v3810, %v3806
        %v4355 = vpack.c.b16 %v3811, %v3807
        %v4356 = vpack.c.b16 %v3812, %v3808
        %v4357 = vpack.c.b16 %v3813, %v3809
        %v4358 = vpack.c.b16 %v3818, %v3814
        %v4359 = vpack.c.b16 %v3819, %v3815
        %v4360 = vpack.c.b16 %v3820, %v3816
        %v4361 = vpack.c.b16 %v3821, %v3817
        %v4362 = vpack.c.b16 %v3826, %v3822
        %v4363 = vpack.c.b16 %v3827, %v3823
        %v4364 = vpack.c.b16 %v3828, %v3824
        %v4365 = vpack.c.b16 %v3829, %v3825
        %v4366 = vpack.c.b16 %v3834, %v3830
        %v4367 = vpack.c.b16 %v3835, %v3831
        %v4368 = vpack.c.b16 %v3836, %v3832
        %v4369 = vpack.c.b16 %v3837, %v3833
        %v4370 = vpack.c.b16 %v3842, %v3838
        %v4371 = vpack.c.b16 %v3843, %v3839
        %v4372 = vpack.c.b16 %v3844, %v3840
        %v4373 = vpack.c.b16 %v3845, %v3841
        %v4374 = vpack.c.b16 %v3850, %v3846
        %v4375 = vpack.c.b16 %v3851, %v3847
        %v4376 = vpack.c.b16 %v3852, %v3848
        %v4377 = vpack.c.b16 %v3853, %v3849
        %v4378 = vpack.c.b16 %v3858, %v3854
        %v4379 = vpack.c.b16 %v3859, %v3855
        %v4380 = vpack.c.b16 %v3860, %v3856
        %v4381 = vpack.c.b16 %v3861, %v3857
        %v4382 = vpack.c.b16 %v3866, %v3862
        %v4383 = vpack.c.b16 %v3867, %v3863
        %v4384 = vpack.c.b16 %v3868, %v3864
        %v4385 = vpack.c.b16 %v3869, %v3865
        %v4386 = vpack.c.b16 %v3874, %v3870
        %v4387 = vpack.c.b16 %v3875, %v3871
        %v4388 = vpack.c.b16 %v3876, %v3872
        %v4389 = vpack.c.b16 %v3877, %v3873
        %v4903 = vlaneseq
        %v4904 = vshrl.u32 %v4903, 7
        %v4905 = vsub.s32 0, %v4904
        %v4906 = vrot.slane %v2225, %v4905
        %v4907 = vlaneseq
        %v4908 = vshrl.u32 %v4907, 7
        %v4909 = vsub.s32 1, %v4908
        %v4910 = vrot.slane %v2225, %v4909
        %v4911 = vlaneseq
        %v4912 = vshrl.u32 %v4911, 7
        %v4913 = vsub.s32 2, %v4912
        %v4914 = vrot.slane %v2225, %v4913
        %v4915 = vlaneseq
        %v4916 = vshrl.u32 %v4915, 7
        %v4917 = vsub.s32 3, %v4916
        %v4918 = vrot.slane %v2225, %v4917
        %4923 = vmatprep.subr.bf16.mxu0 %v3907
        %4924 = vmatpush1.bf16.msra.mxu0 %v3906
        %4925 = vmatprep.subr.bf16.mxu0 %v3903
        %4926 = vmatpush1.bf16.msra.mxu0 %v3902
        %4927 = vmatprep.subr.bf16.mxu0 %v3899
        %4928 = vmatpush1.bf16.msra.mxu0 %v3898
        %4929 = vmatprep.subr.bf16.mxu0 %v3895
        %4930 = vmatpush1.bf16.msra.mxu0 %v3894
        %4931 = vmatprep.subr.bf16.mxu0 %v3891
        %4932 = vmatpush1.bf16.msra.mxu0 %v3890
        %4933 = vmatprep.subr.bf16.mxu0 %v3887
        %4934 = vmatpush1.bf16.msra.mxu0 %v3886
        %4935 = vmatprep.subr.bf16.mxu0 %v3883
        %4936 = vmatpush1.bf16.msra.mxu0 %v3882
        %4937 = vmatprep.subr.bf16.mxu0 %v3879
        %4938 = vmatpush1.bf16.msra.mxu0 %v3878
        %4939 = vmatprep.subr.bf16.mxu0 %v3939
        %4940 = vmatpush2.bf16.msra.mxu0 %v3938
        %4941 = vmatprep.subr.bf16.mxu0 %v3935
        %4942 = vmatpush2.bf16.msra.mxu0 %v3934
        %4943 = vmatprep.subr.bf16.mxu0 %v3931
        %4944 = vmatpush2.bf16.msra.mxu0 %v3930
        %4945 = vmatprep.subr.bf16.mxu0 %v3927
        %4946 = vmatpush2.bf16.msra.mxu0 %v3926
        %4947 = vmatprep.subr.bf16.mxu0 %v3923
        %4948 = vmatpush2.bf16.msra.mxu0 %v3922
        %4949 = vmatprep.subr.bf16.mxu0 %v3919
        %4950 = vmatpush2.bf16.msra.mxu0 %v3918
        %4951 = vmatprep.subr.bf16.mxu0 %v3915
        %4952 = vmatpush2.bf16.msra.mxu0 %v3914
        %4953 = vmatprep.subr.bf16.mxu0 %v3911
        %4954 = vmatpush2.bf16.msra.mxu0 %v3910
        %4955 = vmatprep.mubr.bf16.mxu0 %v2265
        %4956 = vmatmul.mubr.bf16.gmra.mxu0 %v2251
        %v4957 = vpop.f32.mrf.mxu0
        %v4958 = vadd.f32 %v4906, %v4957
        %v4959 = vpop.f32.mrf.mxu0
        %v4960 = vadd.f32 %v4910, %v4959
        %v4961 = vpop.f32.mrf.mxu0
        %v4962 = vpop.f32.mrf.mxu0
        %4963 = vdwg.mxu0
        %4964 = vmatprep.subr.bf16.mxu0 %v3971
        %4965 = vmatpush1.bf16.msra.mxu0 %v3970
        %4966 = vmatprep.subr.bf16.mxu0 %v3967
        %4967 = vmatpush1.bf16.msra.mxu0 %v3966
        %4968 = vmatprep.subr.bf16.mxu0 %v3963
        %4969 = vmatpush1.bf16.msra.mxu0 %v3962
        %4970 = vmatprep.subr.bf16.mxu0 %v3959
        %4971 = vmatpush1.bf16.msra.mxu0 %v3958
        %4972 = vmatprep.subr.bf16.mxu0 %v3955
        %4973 = vmatpush1.bf16.msra.mxu0 %v3954
        %4974 = vmatprep.subr.bf16.mxu0 %v3951
        %4975 = vmatpush1.bf16.msra.mxu0 %v3950
        %4976 = vmatprep.subr.bf16.mxu0 %v3947
        %4977 = vmatpush1.bf16.msra.mxu0 %v3946
        %4978 = vmatprep.subr.bf16.mxu0 %v3943
        %4979 = vmatpush1.bf16.msra.mxu0 %v3942
        %4980 = vmatprep.subr.bf16.mxu0 %v4003
        %4981 = vmatpush2.bf16.msra.mxu0 %v4002
        %4982 = vmatprep.subr.bf16.mxu0 %v3999
        %4983 = vmatpush2.bf16.msra.mxu0 %v3998
        %4984 = vmatprep.subr.bf16.mxu0 %v3995
        %4985 = vmatpush2.bf16.msra.mxu0 %v3994
        %4986 = vmatprep.subr.bf16.mxu0 %v3991
        %4987 = vmatpush2.bf16.msra.mxu0 %v3990
        %4988 = vmatprep.subr.bf16.mxu0 %v3987
        %4989 = vmatpush2.bf16.msra.mxu0 %v3986
        %4990 = vmatprep.subr.bf16.mxu0 %v3983
        %4991 = vmatpush2.bf16.msra.mxu0 %v3982
        %4992 = vmatprep.subr.bf16.mxu0 %v3979
        %4993 = vmatpush2.bf16.msra.mxu0 %v3978
        %4994 = vmatprep.subr.bf16.mxu0 %v3975
        %4995 = vmatpush2.bf16.msra.mxu0 %v3974
        %4996 = vmatprep.mubr.bf16.mxu0 %v2275
        %4997 = vmatmul.mubr.bf16.gmra.mxu0 %v2273
        %v4998 = vpop.f32.mrf.mxu0
        %v4999 = vadd.f32 %v4958, %v4998
        %v5000 = vpop.f32.mrf.mxu0
        %v5001 = vadd.f32 %v4960, %v5000
        %v5002 = vpop.f32.mrf.mxu0
        %v5003 = vpop.f32.mrf.mxu0
        %5004 = vdwg.mxu0
        %5005 = vmatprep.subr.bf16.mxu0 %v4035
        %5006 = vmatpush1.bf16.msra.mxu0 %v4034
        %5007 = vmatprep.subr.bf16.mxu0 %v4031
        %5008 = vmatpush1.bf16.msra.mxu0 %v4030
        %5009 = vmatprep.subr.bf16.mxu0 %v4027
        %5010 = vmatpush1.bf16.msra.mxu0 %v4026
        %5011 = vmatprep.subr.bf16.mxu0 %v4023
        %5012 = vmatpush1.bf16.msra.mxu0 %v4022
        %5013 = vmatprep.subr.bf16.mxu0 %v4019
        %5014 = vmatpush1.bf16.msra.mxu0 %v4018
        %5015 = vmatprep.subr.bf16.mxu0 %v4015
        %5016 = vmatpush1.bf16.msra.mxu0 %v4014
        %5017 = vmatprep.subr.bf16.mxu0 %v4011
        %5018 = vmatpush1.bf16.msra.mxu0 %v4010
        %5019 = vmatprep.subr.bf16.mxu0 %v4007
        %5020 = vmatpush1.bf16.msra.mxu0 %v4006
        %5021 = vmatprep.subr.bf16.mxu0 %v4067
        %5022 = vmatpush2.bf16.msra.mxu0 %v4066
        %5023 = vmatprep.subr.bf16.mxu0 %v4063
        %5024 = vmatpush2.bf16.msra.mxu0 %v4062
        %5025 = vmatprep.subr.bf16.mxu0 %v4059
        %5026 = vmatpush2.bf16.msra.mxu0 %v4058
        %5027 = vmatprep.subr.bf16.mxu0 %v4055
        %5028 = vmatpush2.bf16.msra.mxu0 %v4054
        %5029 = vmatprep.subr.bf16.mxu0 %v4051
        %5030 = vmatpush2.bf16.msra.mxu0 %v4050
        %5031 = vmatprep.subr.bf16.mxu0 %v4047
        %5032 = vmatpush2.bf16.msra.mxu0 %v4046
        %5033 = vmatprep.subr.bf16.mxu0 %v4043
        %5034 = vmatpush2.bf16.msra.mxu0 %v4042
        %5035 = vmatprep.subr.bf16.mxu0 %v4039
        %5036 = vmatpush2.bf16.msra.mxu0 %v4038
        %5037 = vmatprep.mubr.bf16.mxu0 %v2272
        %5038 = vmatmul.mubr.bf16.gmra.mxu0 %v2258
        %v5039 = vpop.f32.mrf.mxu0
        %v5040 = vadd.f32 %v4999, %v5039
        %v5041 = vpop.f32.mrf.mxu0
        %v5042 = vadd.f32 %v5001, %v5041
        %v5043 = vpop.f32.mrf.mxu0
        %v5044 = vpop.f32.mrf.mxu0
        %5045 = vdwg.mxu0
        %5046 = vmatprep.subr.bf16.mxu0 %v4099
        %5047 = vmatpush1.bf16.msra.mxu0 %v4098
        %5048 = vmatprep.subr.bf16.mxu0 %v4095
        %5049 = vmatpush1.bf16.msra.mxu0 %v4094
        %5050 = vmatprep.subr.bf16.mxu0 %v4091
        %5051 = vmatpush1.bf16.msra.mxu0 %v4090
        %5052 = vmatprep.subr.bf16.mxu0 %v4087
        %5053 = vmatpush1.bf16.msra.mxu0 %v4086
        %5054 = vmatprep.subr.bf16.mxu0 %v4083
        %5055 = vmatpush1.bf16.msra.mxu0 %v4082
        %5056 = vmatprep.subr.bf16.mxu0 %v4079
        %5057 = vmatpush1.bf16.msra.mxu0 %v4078
        %5058 = vmatprep.subr.bf16.mxu0 %v4075
        %5059 = vmatpush1.bf16.msra.mxu0 %v4074
        %5060 = vmatprep.subr.bf16.mxu0 %v4071
        %5061 = vmatpush1.bf16.msra.mxu0 %v4070
        %5062 = vmatprep.subr.bf16.mxu0 %v4131
        %5063 = vmatpush2.bf16.msra.mxu0 %v4130
        %5064 = vmatprep.subr.bf16.mxu0 %v4127
        %5065 = vmatpush2.bf16.msra.mxu0 %v4126
        %5066 = vmatprep.subr.bf16.mxu0 %v4123
        %5067 = vmatpush2.bf16.msra.mxu0 %v4122
        %5068 = vmatprep.subr.bf16.mxu0 %v4119
        %5069 = vmatpush2.bf16.msra.mxu0 %v4118
        %5070 = vmatprep.subr.bf16.mxu0 %v4115
        %5071 = vmatpush2.bf16.msra.mxu0 %v4114
        %5072 = vmatprep.subr.bf16.mxu0 %v4111
        %5073 = vmatpush2.bf16.msra.mxu0 %v4110
        %5074 = vmatprep.subr.bf16.mxu0 %v4107
        %5075 = vmatpush2.bf16.msra.mxu0 %v4106
        %5076 = vmatprep.subr.bf16.mxu0 %v4103
        %5077 = vmatpush2.bf16.msra.mxu0 %v4102
        %5078 = vmatprep.mubr.bf16.mxu0 %v2276
        %5079 = vmatmul.mubr.bf16.gmra.mxu0 %v2274
        %v5080 = vpop.f32.mrf.mxu0
        %v5081 = vadd.f32 %v5040, %v5080
        %v5082 = vpop.f32.mrf.mxu0
        %v5083 = vadd.f32 %v5042, %v5082
        %v5084 = vpop.f32.mrf.mxu0
        %v5085 = vpop.f32.mrf.mxu0
        %5086 = vdwg.mxu0
        %5087 = vmatprep.subr.bf16.mxu0 %v4163
        %5088 = vmatpush1.bf16.msra.mxu0 %v4162
        %5089 = vmatprep.subr.bf16.mxu0 %v4159
        %5090 = vmatpush1.bf16.msra.mxu0 %v4158
        %5091 = vmatprep.subr.bf16.mxu0 %v4155
        %5092 = vmatpush1.bf16.msra.mxu0 %v4154
        %5093 = vmatprep.subr.bf16.mxu0 %v4151
        %5094 = vmatpush1.bf16.msra.mxu0 %v4150
        %5095 = vmatprep.subr.bf16.mxu0 %v4147
        %5096 = vmatpush1.bf16.msra.mxu0 %v4146
        %5097 = vmatprep.subr.bf16.mxu0 %v4143
        %5098 = vmatpush1.bf16.msra.mxu0 %v4142
        %5099 = vmatprep.subr.bf16.mxu0 %v4139
        %5100 = vmatpush1.bf16.msra.mxu0 %v4138
        %5101 = vmatprep.subr.bf16.mxu0 %v4135
        %5102 = vmatpush1.bf16.msra.mxu0 %v4134
        %5103 = vmatprep.subr.bf16.mxu0 %v4195
        %5104 = vmatpush2.bf16.msra.mxu0 %v4194
        %5105 = vmatprep.subr.bf16.mxu0 %v4191
        %5106 = vmatpush2.bf16.msra.mxu0 %v4190
        %5107 = vmatprep.subr.bf16.mxu0 %v4187
        %5108 = vmatpush2.bf16.msra.mxu0 %v4186
        %5109 = vmatprep.subr.bf16.mxu0 %v4183
        %5110 = vmatpush2.bf16.msra.mxu0 %v4182
        %5111 = vmatprep.subr.bf16.mxu0 %v4179
        %5112 = vmatpush2.bf16.msra.mxu0 %v4178
        %5113 = vmatprep.subr.bf16.mxu0 %v4175
        %5114 = vmatpush2.bf16.msra.mxu0 %v4174
        %5115 = vmatprep.subr.bf16.mxu0 %v4171
        %5116 = vmatpush2.bf16.msra.mxu0 %v4170
        %5117 = vmatprep.subr.bf16.mxu0 %v4167
        %5118 = vmatpush2.bf16.msra.mxu0 %v4166
        %5119 = vmatprep.mubr.bf16.mxu0 %v2314
        %5120 = vmatmul.mubr.bf16.gmra.mxu0 %v2300
        %v5121 = vpop.f32.mrf.mxu0
        %v5122 = vadd.f32 %v5081, %v5121
        %v5123 = vpop.f32.mrf.mxu0
        %v5124 = vadd.f32 %v5083, %v5123
        %v5125 = vpop.f32.mrf.mxu0
        %v5126 = vpop.f32.mrf.mxu0
        %5127 = vdwg.mxu0
        %5128 = vmatprep.subr.bf16.mxu0 %v4227
        %5129 = vmatpush1.bf16.msra.mxu0 %v4226
        %5130 = vmatprep.subr.bf16.mxu0 %v4223
        %5131 = vmatpush1.bf16.msra.mxu0 %v4222
        %5132 = vmatprep.subr.bf16.mxu0 %v4219
        %5133 = vmatpush1.bf16.msra.mxu0 %v4218
        %5134 = vmatprep.subr.bf16.mxu0 %v4215
        %5135 = vmatpush1.bf16.msra.mxu0 %v4214
        %5136 = vmatprep.subr.bf16.mxu0 %v4211
        %5137 = vmatpush1.bf16.msra.mxu0 %v4210
        %5138 = vmatprep.subr.bf16.mxu0 %v4207
        %5139 = vmatpush1.bf16.msra.mxu0 %v4206
        %5140 = vmatprep.subr.bf16.mxu0 %v4203
        %5141 = vmatpush1.bf16.msra.mxu0 %v4202
        %5142 = vmatprep.subr.bf16.mxu0 %v4199
        %5143 = vmatpush1.bf16.msra.mxu0 %v4198
        %5144 = vmatprep.subr.bf16.mxu0 %v4259
        %5145 = vmatpush2.bf16.msra.mxu0 %v4258
        %5146 = vmatprep.subr.bf16.mxu0 %v4255
        %5147 = vmatpush2.bf16.msra.mxu0 %v4254
        %5148 = vmatprep.subr.bf16.mxu0 %v4251
        %5149 = vmatpush2.bf16.msra.mxu0 %v4250
        %5150 = vmatprep.subr.bf16.mxu0 %v4247
        %5151 = vmatpush2.bf16.msra.mxu0 %v4246
        %5152 = vmatprep.subr.bf16.mxu0 %v4243
        %5153 = vmatpush2.bf16.msra.mxu0 %v4242
        %5154 = vmatprep.subr.bf16.mxu0 %v4239
        %5155 = vmatpush2.bf16.msra.mxu0 %v4238
        %5156 = vmatprep.subr.bf16.mxu0 %v4235
        %5157 = vmatpush2.bf16.msra.mxu0 %v4234
        %5158 = vmatprep.subr.bf16.mxu0 %v4231
        %5159 = vmatpush2.bf16.msra.mxu0 %v4230
        %5160 = vmatprep.mubr.bf16.mxu0 %v2324
        %5161 = vmatmul.mubr.bf16.gmra.mxu0 %v2322
        %v5162 = vpop.f32.mrf.mxu0
        %v5163 = vadd.f32 %v5122, %v5162
        %v5164 = vpop.f32.mrf.mxu0
        %v5165 = vadd.f32 %v5124, %v5164
        %v5166 = vpop.f32.mrf.mxu0
        %v5167 = vpop.f32.mrf.mxu0
        %5168 = vdwg.mxu0
        %5169 = vmatprep.subr.bf16.mxu0 %v4291
        %5170 = vmatpush1.bf16.msra.mxu0 %v4290
        %5171 = vmatprep.subr.bf16.mxu0 %v4287
        %5172 = vmatpush1.bf16.msra.mxu0 %v4286
        %5173 = vmatprep.subr.bf16.mxu0 %v4283
        %5174 = vmatpush1.bf16.msra.mxu0 %v4282
        %5175 = vmatprep.subr.bf16.mxu0 %v4279
        %5176 = vmatpush1.bf16.msra.mxu0 %v4278
        %5177 = vmatprep.subr.bf16.mxu0 %v4275
        %5178 = vmatpush1.bf16.msra.mxu0 %v4274
        %5179 = vmatprep.subr.bf16.mxu0 %v4271
        %5180 = vmatpush1.bf16.msra.mxu0 %v4270
        %5181 = vmatprep.subr.bf16.mxu0 %v4267
        %5182 = vmatpush1.bf16.msra.mxu0 %v4266
        %5183 = vmatprep.subr.bf16.mxu0 %v4263
        %5184 = vmatpush1.bf16.msra.mxu0 %v4262
        %5185 = vmatprep.subr.bf16.mxu0 %v4323
        %5186 = vmatpush2.bf16.msra.mxu0 %v4322
        %5187 = vmatprep.subr.bf16.mxu0 %v4319
        %5188 = vmatpush2.bf16.msra.mxu0 %v4318
        %5189 = vmatprep.subr.bf16.mxu0 %v4315
        %5190 = vmatpush2.bf16.msra.mxu0 %v4314
        %5191 = vmatprep.subr.bf16.mxu0 %v4311
        %5192 = vmatpush2.bf16.msra.mxu0 %v4310
        %5193 = vmatprep.subr.bf16.mxu0 %v4307
        %5194 = vmatpush2.bf16.msra.mxu0 %v4306
        %5195 = vmatprep.subr.bf16.mxu0 %v4303
        %5196 = vmatpush2.bf16.msra.mxu0 %v4302
        %5197 = vmatprep.subr.bf16.mxu0 %v4299
        %5198 = vmatpush2.bf16.msra.mxu0 %v4298
        %5199 = vmatprep.subr.bf16.mxu0 %v4295
        %5200 = vmatpush2.bf16.msra.mxu0 %v4294
        %5201 = vmatprep.mubr.bf16.mxu0 %v2321
        %5202 = vmatmul.mubr.bf16.gmra.mxu0 %v2307
        %v5203 = vpop.f32.mrf.mxu0
        %v5204 = vadd.f32 %v5163, %v5203
        %v5205 = vpop.f32.mrf.mxu0
        %v5206 = vadd.f32 %v5165, %v5205
        %v5207 = vpop.f32.mrf.mxu0
        %v5208 = vpop.f32.mrf.mxu0
        %5209 = vdwg.mxu0
        %5210 = vmatprep.subr.bf16.mxu0 %v4355
        %5211 = vmatpush1.bf16.msra.mxu0 %v4354
        %5212 = vmatprep.subr.bf16.mxu0 %v4351
        %5213 = vmatpush1.bf16.msra.mxu0 %v4350
        %5214 = vmatprep.subr.bf16.mxu0 %v4347
        %5215 = vmatpush1.bf16.msra.mxu0 %v4346
        %5216 = vmatprep.subr.bf16.mxu0 %v4343
        %5217 = vmatpush1.bf16.msra.mxu0 %v4342
        %5218 = vmatprep.subr.bf16.mxu0 %v4339
        %5219 = vmatpush1.bf16.msra.mxu0 %v4338
        %5220 = vmatprep.subr.bf16.mxu0 %v4335
        %5221 = vmatpush1.bf16.msra.mxu0 %v4334
        %5222 = vmatprep.subr.bf16.mxu0 %v4331
        %5223 = vmatpush1.bf16.msra.mxu0 %v4330
        %5224 = vmatprep.subr.bf16.mxu0 %v4327
        %5225 = vmatpush1.bf16.msra.mxu0 %v4326
        %5226 = vmatprep.subr.bf16.mxu0 %v4387
        %5227 = vmatpush2.bf16.msra.mxu0 %v4386
        %5228 = vmatprep.subr.bf16.mxu0 %v4383
        %5229 = vmatpush2.bf16.msra.mxu0 %v4382
        %5230 = vmatprep.subr.bf16.mxu0 %v4379
        %5231 = vmatpush2.bf16.msra.mxu0 %v4378
        %5232 = vmatprep.subr.bf16.mxu0 %v4375
        %5233 = vmatpush2.bf16.msra.mxu0 %v4374
        %5234 = vmatprep.subr.bf16.mxu0 %v4371
        %5235 = vmatpush2.bf16.msra.mxu0 %v4370
        %5236 = vmatprep.subr.bf16.mxu0 %v4367
        %5237 = vmatpush2.bf16.msra.mxu0 %v4366
        %5238 = vmatprep.subr.bf16.mxu0 %v4363
        %5239 = vmatpush2.bf16.msra.mxu0 %v4362
        %5240 = vmatprep.subr.bf16.mxu0 %v4359
        %5241 = vmatpush2.bf16.msra.mxu0 %v4358
        %5242 = vmatprep.mubr.bf16.mxu0 %v2325
        %5243 = vmatmul.mubr.bf16.gmra.mxu0 %v2323
        %v5244 = vpop.f32.mrf.mxu0
        %v5245 = vadd.f32 %v5204, %v5244
        %v5246 = vpop.f32.mrf.mxu0
        %v5247 = vadd.f32 %v5206, %v5246
        %v5248 = vpop.f32.mrf.mxu0
        %v5249 = vpop.f32.mrf.mxu0
        %5250 = vdwg.mxu0
        %5251 = vmatprep.subr.bf16.mxu0 %v3909
        %5252 = vmatpush1.bf16.msra.mxu0 %v3908
        %5253 = vmatprep.subr.bf16.mxu0 %v3905
        %5254 = vmatpush1.bf16.msra.mxu0 %v3904
        %5255 = vmatprep.subr.bf16.mxu0 %v3901
        %5256 = vmatpush1.bf16.msra.mxu0 %v3900
        %5257 = vmatprep.subr.bf16.mxu0 %v3897
        %5258 = vmatpush1.bf16.msra.mxu0 %v3896
        %5259 = vmatprep.subr.bf16.mxu0 %v3893
        %5260 = vmatpush1.bf16.msra.mxu0 %v3892
        %5261 = vmatprep.subr.bf16.mxu0 %v3889
        %5262 = vmatpush1.bf16.msra.mxu0 %v3888
        %5263 = vmatprep.subr.bf16.mxu0 %v3885
        %5264 = vmatpush1.bf16.msra.mxu0 %v3884
        %5265 = vmatprep.subr.bf16.mxu0 %v3881
        %5266 = vmatpush1.bf16.msra.mxu0 %v3880
        %5267 = vmatprep.subr.bf16.mxu0 %v3941
        %5268 = vmatpush2.bf16.msra.mxu0 %v3940
        %5269 = vmatprep.subr.bf16.mxu0 %v3937
        %5270 = vmatpush2.bf16.msra.mxu0 %v3936
        %5271 = vmatprep.subr.bf16.mxu0 %v3933
        %5272 = vmatpush2.bf16.msra.mxu0 %v3932
        %5273 = vmatprep.subr.bf16.mxu0 %v3929
        %5274 = vmatpush2.bf16.msra.mxu0 %v3928
        %5275 = vmatprep.subr.bf16.mxu0 %v3925
        %5276 = vmatpush2.bf16.msra.mxu0 %v3924
        %5277 = vmatprep.subr.bf16.mxu0 %v3921
        %5278 = vmatpush2.bf16.msra.mxu0 %v3920
        %5279 = vmatprep.subr.bf16.mxu0 %v3917
        %5280 = vmatpush2.bf16.msra.mxu0 %v3916
        %5281 = vmatprep.subr.bf16.mxu0 %v3913
        %5282 = vmatpush2.bf16.msra.mxu0 %v3912
        %5283 = vmatprep.mubr.bf16.mxu0 %v2265
        %5284 = vmatmul.mubr.bf16.gmra.mxu0 %v2251
        %v5285 = vpop.f32.mrf.mxu0
        %v5286 = vadd.f32 %v4914, %v5285
        %v5287 = vpop.f32.mrf.mxu0
        %v5288 = vadd.f32 %v4918, %v5287
        %v5289 = vpop.f32.mrf.mxu0
        %v5290 = vpop.f32.mrf.mxu0
        %5291 = vdwg.mxu0
        %5292 = vmatprep.subr.bf16.mxu0 %v3973
        %5293 = vmatpush1.bf16.msra.mxu0 %v3972
        %5294 = vmatprep.subr.bf16.mxu0 %v3969
        %5295 = vmatpush1.bf16.msra.mxu0 %v3968
        %5296 = vmatprep.subr.bf16.mxu0 %v3965
        %5297 = vmatpush1.bf16.msra.mxu0 %v3964
        %5298 = vmatprep.subr.bf16.mxu0 %v3961
        %5299 = vmatpush1.bf16.msra.mxu0 %v3960
        %5300 = vmatprep.subr.bf16.mxu0 %v3957
        %5301 = vmatpush1.bf16.msra.mxu0 %v3956
        %5302 = vmatprep.subr.bf16.mxu0 %v3953
        %5303 = vmatpush1.bf16.msra.mxu0 %v3952
        %5304 = vmatprep.subr.bf16.mxu0 %v3949
        %5305 = vmatpush1.bf16.msra.mxu0 %v3948
        %5306 = vmatprep.subr.bf16.mxu0 %v3945
        %5307 = vmatpush1.bf16.msra.mxu0 %v3944
        %5308 = vmatprep.subr.bf16.mxu0 %v4005
        %5309 = vmatpush2.bf16.msra.mxu0 %v4004
        %5310 = vmatprep.subr.bf16.mxu0 %v4001
        %5311 = vmatpush2.bf16.msra.mxu0 %v4000
        %5312 = vmatprep.subr.bf16.mxu0 %v3997
        %5313 = vmatpush2.bf16.msra.mxu0 %v3996
        %5314 = vmatprep.subr.bf16.mxu0 %v3993
        %5315 = vmatpush2.bf16.msra.mxu0 %v3992
        %5316 = vmatprep.subr.bf16.mxu0 %v3989
        %5317 = vmatpush2.bf16.msra.mxu0 %v3988
        %5318 = vmatprep.subr.bf16.mxu0 %v3985
        %5319 = vmatpush2.bf16.msra.mxu0 %v3984
        %5320 = vmatprep.subr.bf16.mxu0 %v3981
        %5321 = vmatpush2.bf16.msra.mxu0 %v3980
        %5322 = vmatprep.subr.bf16.mxu0 %v3977
        %5323 = vmatpush2.bf16.msra.mxu0 %v3976
        %5324 = vmatprep.mubr.bf16.mxu0 %v2275
        %5325 = vmatmul.mubr.bf16.gmra.mxu0 %v2273
        %v5326 = vpop.f32.mrf.mxu0
        %v5327 = vadd.f32 %v5286, %v5326
        %v5328 = vpop.f32.mrf.mxu0
        %v5329 = vadd.f32 %v5288, %v5328
        %v5330 = vpop.f32.mrf.mxu0
        %v5331 = vpop.f32.mrf.mxu0
        %5332 = vdwg.mxu0
        %5333 = vmatprep.subr.bf16.mxu0 %v4037
        %5334 = vmatpush1.bf16.msra.mxu0 %v4036
        %5335 = vmatprep.subr.bf16.mxu0 %v4033
        %5336 = vmatpush1.bf16.msra.mxu0 %v4032
        %5337 = vmatprep.subr.bf16.mxu0 %v4029
        %5338 = vmatpush1.bf16.msra.mxu0 %v4028
        %5339 = vmatprep.subr.bf16.mxu0 %v4025
        %5340 = vmatpush1.bf16.msra.mxu0 %v4024
        %5341 = vmatprep.subr.bf16.mxu0 %v4021
        %5342 = vmatpush1.bf16.msra.mxu0 %v4020
        %5343 = vmatprep.subr.bf16.mxu0 %v4017
        %5344 = vmatpush1.bf16.msra.mxu0 %v4016
        %5345 = vmatprep.subr.bf16.mxu0 %v4013
        %5346 = vmatpush1.bf16.msra.mxu0 %v4012
        %5347 = vmatprep.subr.bf16.mxu0 %v4009
        %5348 = vmatpush1.bf16.msra.mxu0 %v4008
        %5349 = vmatprep.subr.bf16.mxu0 %v4069
        %5350 = vmatpush2.bf16.msra.mxu0 %v4068
        %5351 = vmatprep.subr.bf16.mxu0 %v4065
        %5352 = vmatpush2.bf16.msra.mxu0 %v4064
        %5353 = vmatprep.subr.bf16.mxu0 %v4061
        %5354 = vmatpush2.bf16.msra.mxu0 %v4060
        %5355 = vmatprep.subr.bf16.mxu0 %v4057
        %5356 = vmatpush2.bf16.msra.mxu0 %v4056
        %5357 = vmatprep.subr.bf16.mxu0 %v4053
        %5358 = vmatpush2.bf16.msra.mxu0 %v4052
        %5359 = vmatprep.subr.bf16.mxu0 %v4049
        %5360 = vmatpush2.bf16.msra.mxu0 %v4048
        %5361 = vmatprep.subr.bf16.mxu0 %v4045
        %5362 = vmatpush2.bf16.msra.mxu0 %v4044
        %5363 = vmatprep.subr.bf16.mxu0 %v4041
        %5364 = vmatpush2.bf16.msra.mxu0 %v4040
        %5365 = vmatprep.mubr.bf16.mxu0 %v2272
        %5366 = vmatmul.mubr.bf16.gmra.mxu0 %v2258
        %v5367 = vpop.f32.mrf.mxu0
        %v5368 = vadd.f32 %v5327, %v5367
        %v5369 = vpop.f32.mrf.mxu0
        %v5370 = vadd.f32 %v5329, %v5369
        %v5371 = vpop.f32.mrf.mxu0
        %v5372 = vpop.f32.mrf.mxu0
        %5373 = vdwg.mxu0
        %5374 = vmatprep.subr.bf16.mxu0 %v4101
        %5375 = vmatpush1.bf16.msra.mxu0 %v4100
        %5376 = vmatprep.subr.bf16.mxu0 %v4097
        %5377 = vmatpush1.bf16.msra.mxu0 %v4096
        %5378 = vmatprep.subr.bf16.mxu0 %v4093
        %5379 = vmatpush1.bf16.msra.mxu0 %v4092
        %5380 = vmatprep.subr.bf16.mxu0 %v4089
        %5381 = vmatpush1.bf16.msra.mxu0 %v4088
        %5382 = vmatprep.subr.bf16.mxu0 %v4085
        %5383 = vmatpush1.bf16.msra.mxu0 %v4084
        %5384 = vmatprep.subr.bf16.mxu0 %v4081
        %5385 = vmatpush1.bf16.msra.mxu0 %v4080
        %5386 = vmatprep.subr.bf16.mxu0 %v4077
        %5387 = vmatpush1.bf16.msra.mxu0 %v4076
        %5388 = vmatprep.subr.bf16.mxu0 %v4073
        %5389 = vmatpush1.bf16.msra.mxu0 %v4072
        %5390 = vmatprep.subr.bf16.mxu0 %v4133
        %5391 = vmatpush2.bf16.msra.mxu0 %v4132
        %5392 = vmatprep.subr.bf16.mxu0 %v4129
        %5393 = vmatpush2.bf16.msra.mxu0 %v4128
        %5394 = vmatprep.subr.bf16.mxu0 %v4125
        %5395 = vmatpush2.bf16.msra.mxu0 %v4124
        %5396 = vmatprep.subr.bf16.mxu0 %v4121
        %5397 = vmatpush2.bf16.msra.mxu0 %v4120
        %5398 = vmatprep.subr.bf16.mxu0 %v4117
        %5399 = vmatpush2.bf16.msra.mxu0 %v4116
        %5400 = vmatprep.subr.bf16.mxu0 %v4113
        %5401 = vmatpush2.bf16.msra.mxu0 %v4112
        %5402 = vmatprep.subr.bf16.mxu0 %v4109
        %5403 = vmatpush2.bf16.msra.mxu0 %v4108
        %5404 = vmatprep.subr.bf16.mxu0 %v4105
        %5405 = vmatpush2.bf16.msra.mxu0 %v4104
        %5406 = vmatprep.mubr.bf16.mxu0 %v2276
        %5407 = vmatmul.mubr.bf16.gmra.mxu0 %v2274
        %v5408 = vpop.f32.mrf.mxu0
        %v5409 = vadd.f32 %v5368, %v5408
        %v5410 = vpop.f32.mrf.mxu0
        %v5411 = vadd.f32 %v5370, %v5410
        %v5412 = vpop.f32.mrf.mxu0
        %v5413 = vpop.f32.mrf.mxu0
        %5414 = vdwg.mxu0
        %5415 = vmatprep.subr.bf16.mxu0 %v4165
        %5416 = vmatpush1.bf16.msra.mxu0 %v4164
        %5417 = vmatprep.subr.bf16.mxu0 %v4161
        %5418 = vmatpush1.bf16.msra.mxu0 %v4160
        %5419 = vmatprep.subr.bf16.mxu0 %v4157
        %5420 = vmatpush1.bf16.msra.mxu0 %v4156
        %5421 = vmatprep.subr.bf16.mxu0 %v4153
        %5422 = vmatpush1.bf16.msra.mxu0 %v4152
        %5423 = vmatprep.subr.bf16.mxu0 %v4149
        %5424 = vmatpush1.bf16.msra.mxu0 %v4148
        %5425 = vmatprep.subr.bf16.mxu0 %v4145
        %5426 = vmatpush1.bf16.msra.mxu0 %v4144
        %5427 = vmatprep.subr.bf16.mxu0 %v4141
        %5428 = vmatpush1.bf16.msra.mxu0 %v4140
        %5429 = vmatprep.subr.bf16.mxu0 %v4137
        %5430 = vmatpush1.bf16.msra.mxu0 %v4136
        %5431 = vmatprep.subr.bf16.mxu0 %v4197
        %5432 = vmatpush2.bf16.msra.mxu0 %v4196
        %5433 = vmatprep.subr.bf16.mxu0 %v4193
        %5434 = vmatpush2.bf16.msra.mxu0 %v4192
        %5435 = vmatprep.subr.bf16.mxu0 %v4189
        %5436 = vmatpush2.bf16.msra.mxu0 %v4188
        %5437 = vmatprep.subr.bf16.mxu0 %v4185
        %5438 = vmatpush2.bf16.msra.mxu0 %v4184
        %5439 = vmatprep.subr.bf16.mxu0 %v4181
        %5440 = vmatpush2.bf16.msra.mxu0 %v4180
        %5441 = vmatprep.subr.bf16.mxu0 %v4177
        %5442 = vmatpush2.bf16.msra.mxu0 %v4176
        %5443 = vmatprep.subr.bf16.mxu0 %v4173
        %5444 = vmatpush2.bf16.msra.mxu0 %v4172
        %5445 = vmatprep.subr.bf16.mxu0 %v4169
        %5446 = vmatpush2.bf16.msra.mxu0 %v4168
        %5447 = vmatprep.mubr.bf16.mxu0 %v2314
        %5448 = vmatmul.mubr.bf16.gmra.mxu0 %v2300
        %v5449 = vpop.f32.mrf.mxu0
        %v5450 = vadd.f32 %v5409, %v5449
        %v5451 = vpop.f32.mrf.mxu0
        %v5452 = vadd.f32 %v5411, %v5451
        %v5453 = vpop.f32.mrf.mxu0
        %v5454 = vpop.f32.mrf.mxu0
        %5455 = vdwg.mxu0
        %5456 = vmatprep.subr.bf16.mxu0 %v4229
        %5457 = vmatpush1.bf16.msra.mxu0 %v4228
        %5458 = vmatprep.subr.bf16.mxu0 %v4225
        %5459 = vmatpush1.bf16.msra.mxu0 %v4224
        %5460 = vmatprep.subr.bf16.mxu0 %v4221
        %5461 = vmatpush1.bf16.msra.mxu0 %v4220
        %5462 = vmatprep.subr.bf16.mxu0 %v4217
        %5463 = vmatpush1.bf16.msra.mxu0 %v4216
        %5464 = vmatprep.subr.bf16.mxu0 %v4213
        %5465 = vmatpush1.bf16.msra.mxu0 %v4212
        %5466 = vmatprep.subr.bf16.mxu0 %v4209
        %5467 = vmatpush1.bf16.msra.mxu0 %v4208
        %5468 = vmatprep.subr.bf16.mxu0 %v4205
        %5469 = vmatpush1.bf16.msra.mxu0 %v4204
        %5470 = vmatprep.subr.bf16.mxu0 %v4201
        %5471 = vmatpush1.bf16.msra.mxu0 %v4200
        %5472 = vmatprep.subr.bf16.mxu0 %v4261
        %5473 = vmatpush2.bf16.msra.mxu0 %v4260
        %5474 = vmatprep.subr.bf16.mxu0 %v4257
        %5475 = vmatpush2.bf16.msra.mxu0 %v4256
        %5476 = vmatprep.subr.bf16.mxu0 %v4253
        %5477 = vmatpush2.bf16.msra.mxu0 %v4252
        %5478 = vmatprep.subr.bf16.mxu0 %v4249
        %5479 = vmatpush2.bf16.msra.mxu0 %v4248
        %5480 = vmatprep.subr.bf16.mxu0 %v4245
        %5481 = vmatpush2.bf16.msra.mxu0 %v4244
        %5482 = vmatprep.subr.bf16.mxu0 %v4241
        %5483 = vmatpush2.bf16.msra.mxu0 %v4240
        %5484 = vmatprep.subr.bf16.mxu0 %v4237
        %5485 = vmatpush2.bf16.msra.mxu0 %v4236
        %5486 = vmatprep.subr.bf16.mxu0 %v4233
        %5487 = vmatpush2.bf16.msra.mxu0 %v4232
        %5488 = vmatprep.mubr.bf16.mxu0 %v2324
        %5489 = vmatmul.mubr.bf16.gmra.mxu0 %v2322
        %v5490 = vpop.f32.mrf.mxu0
        %v5491 = vadd.f32 %v5450, %v5490
        %v5492 = vpop.f32.mrf.mxu0
        %v5493 = vadd.f32 %v5452, %v5492
        %v5494 = vpop.f32.mrf.mxu0
        %v5495 = vpop.f32.mrf.mxu0
        %5496 = vdwg.mxu0
        %5497 = vmatprep.subr.bf16.mxu0 %v4293
        %5498 = vmatpush1.bf16.msra.mxu0 %v4292
        %5499 = vmatprep.subr.bf16.mxu0 %v4289
        %5500 = vmatpush1.bf16.msra.mxu0 %v4288
        %5501 = vmatprep.subr.bf16.mxu0 %v4285
        %5502 = vmatpush1.bf16.msra.mxu0 %v4284
        %5503 = vmatprep.subr.bf16.mxu0 %v4281
        %5504 = vmatpush1.bf16.msra.mxu0 %v4280
        %5505 = vmatprep.subr.bf16.mxu0 %v4277
        %5506 = vmatpush1.bf16.msra.mxu0 %v4276
        %5507 = vmatprep.subr.bf16.mxu0 %v4273
        %5508 = vmatpush1.bf16.msra.mxu0 %v4272
        %5509 = vmatprep.subr.bf16.mxu0 %v4269
        %5510 = vmatpush1.bf16.msra.mxu0 %v4268
        %5511 = vmatprep.subr.bf16.mxu0 %v4265
        %5512 = vmatpush1.bf16.msra.mxu0 %v4264
        %5513 = vmatprep.subr.bf16.mxu0 %v4325
        %5514 = vmatpush2.bf16.msra.mxu0 %v4324
        %5515 = vmatprep.subr.bf16.mxu0 %v4321
        %5516 = vmatpush2.bf16.msra.mxu0 %v4320
        %5517 = vmatprep.subr.bf16.mxu0 %v4317
        %5518 = vmatpush2.bf16.msra.mxu0 %v4316
        %5519 = vmatprep.subr.bf16.mxu0 %v4313
        %5520 = vmatpush2.bf16.msra.mxu0 %v4312
        %5521 = vmatprep.subr.bf16.mxu0 %v4309
        %5522 = vmatpush2.bf16.msra.mxu0 %v4308
        %5523 = vmatprep.subr.bf16.mxu0 %v4305
        %5524 = vmatpush2.bf16.msra.mxu0 %v4304
        %5525 = vmatprep.subr.bf16.mxu0 %v4301
        %5526 = vmatpush2.bf16.msra.mxu0 %v4300
        %5527 = vmatprep.subr.bf16.mxu0 %v4297
        %5528 = vmatpush2.bf16.msra.mxu0 %v4296
        %5529 = vmatprep.mubr.bf16.mxu0 %v2321
        %5530 = vmatmul.mubr.bf16.gmra.mxu0 %v2307
        %v5531 = vpop.f32.mrf.mxu0
        %v5532 = vadd.f32 %v5491, %v5531
        %v5533 = vpop.f32.mrf.mxu0
        %v5534 = vadd.f32 %v5493, %v5533
        %v5535 = vpop.f32.mrf.mxu0
        %v5536 = vpop.f32.mrf.mxu0
        %5537 = vdwg.mxu0
        %5538 = vmatprep.subr.bf16.mxu0 %v4357
        %5539 = vmatpush1.bf16.msra.mxu0 %v4356
        %5540 = vmatprep.subr.bf16.mxu0 %v4353
        %5541 = vmatpush1.bf16.msra.mxu0 %v4352
        %5542 = vmatprep.subr.bf16.mxu0 %v4349
        %5543 = vmatpush1.bf16.msra.mxu0 %v4348
        %5544 = vmatprep.subr.bf16.mxu0 %v4345
        %5545 = vmatpush1.bf16.msra.mxu0 %v4344
        %5546 = vmatprep.subr.bf16.mxu0 %v4341
        %5547 = vmatpush1.bf16.msra.mxu0 %v4340
        %5548 = vmatprep.subr.bf16.mxu0 %v4337
        %5549 = vmatpush1.bf16.msra.mxu0 %v4336
        %5550 = vmatprep.subr.bf16.mxu0 %v4333
        %5551 = vmatpush1.bf16.msra.mxu0 %v4332
        %5552 = vmatprep.subr.bf16.mxu0 %v4329
        %5553 = vmatpush1.bf16.msra.mxu0 %v4328
        %5554 = vmatprep.subr.bf16.mxu0 %v4389
        %5555 = vmatpush2.bf16.msra.mxu0 %v4388
        %5556 = vmatprep.subr.bf16.mxu0 %v4385
        %5557 = vmatpush2.bf16.msra.mxu0 %v4384
        %5558 = vmatprep.subr.bf16.mxu0 %v4381
        %5559 = vmatpush2.bf16.msra.mxu0 %v4380
        %5560 = vmatprep.subr.bf16.mxu0 %v4377
        %5561 = vmatpush2.bf16.msra.mxu0 %v4376
        %5562 = vmatprep.subr.bf16.mxu0 %v4373
        %5563 = vmatpush2.bf16.msra.mxu0 %v4372
        %5564 = vmatprep.subr.bf16.mxu0 %v4369
        %5565 = vmatpush2.bf16.msra.mxu0 %v4368
        %5566 = vmatprep.subr.bf16.mxu0 %v4365
        %5567 = vmatpush2.bf16.msra.mxu0 %v4364
        %5568 = vmatprep.subr.bf16.mxu0 %v4361
        %5569 = vmatpush2.bf16.msra.mxu0 %v4360
        %5570 = vmatprep.mubr.bf16.mxu0 %v2325
        %5571 = vmatmul.mubr.bf16.gmra.mxu0 %v2323
        %v5572 = vpop.f32.mrf.mxu0
        %v5573 = vadd.f32 %v5532, %v5572
        %v5574 = vpop.f32.mrf.mxu0
        %v5575 = vadd.f32 %v5534, %v5574
        %v5576 = vpop.f32.mrf.mxu0
        %v5577 = vpop.f32.mrf.mxu0
        %5578 = vdwg.mxu0
        %v5579 = vmax.f32 %v5245, 0.0
        %v5580 = vmax.f32 %v5247, 0.0
        %v5581 = vmax.f32 %v5573, 0.0
        %v5582 = vmax.f32 %v5575, 0.0
        %v5583 = vld [vmem:[%s7] sm:$0xff]
        %v5584 = vld [vmem:[%s7 + $0x8] sm:$0xff]
        %v5585 = vld [vmem:[%s7 + $0x10] sm:$0xff]
        %v5586 = vld [vmem:[%s7 + $0x18] sm:$0xff]
        %v5587 = vld [vmem:[%s7 + $0x20] sm:$0xff]
        %v5588 = vld [vmem:[%s7 + $0x28] sm:$0xff]
        %v5589 = vld [vmem:[%s7 + $0x30] sm:$0xff]
        %v5590 = vld [vmem:[%s7 + $0x38] sm:$0xff]
        %v5591 = vld [vmem:[%s7 + $0x40] sm:$0xff]
        %v5592 = vld [vmem:[%s7 + $0x48] sm:$0xff]
        %v5593 = vld [vmem:[%s7 + $0x50] sm:$0xff]
        %v5594 = vld [vmem:[%s7 + $0x58] sm:$0xff]
        %v5595 = vld [vmem:[%s7 + $0x60] sm:$0xff]
        %v5596 = vld [vmem:[%s7 + $0x68] sm:$0xff]
        %v5597 = vld [vmem:[%s7 + $0x70] sm:$0xff]
        %v5598 = vld [vmem:[%s7 + $0x78] sm:$0xff]
        %v5599 = vld [vmem:[%s7 + $0x80] sm:$0xff]
        %v5600 = vld [vmem:[%s7 + $0x88] sm:$0xff]
        %v5601 = vld [vmem:[%s7 + $0x90] sm:$0xff]
        %v5602 = vld [vmem:[%s7 + $0x98] sm:$0xff]
        %v5603 = vld [vmem:[%s7 + $0xa0] sm:$0xff]
        %v5604 = vld [vmem:[%s7 + $0xa8] sm:$0xff]
        %v5605 = vld [vmem:[%s7 + $0xb0] sm:$0xff]
        %v5606 = vld [vmem:[%s7 + $0xb8] sm:$0xff]
        %v5607 = vld [vmem:[%s7 + $0xc0] sm:$0xff]
        %v5608 = vld [vmem:[%s7 + $0xc8] sm:$0xff]
        %v5609 = vld [vmem:[%s7 + $0xd0] sm:$0xff]
        %v5610 = vld [vmem:[%s7 + $0xd8] sm:$0xff]
        %v5611 = vld [vmem:[%s7 + $0xe0] sm:$0xff]
        %v5612 = vld [vmem:[%s7 + $0xe8] sm:$0xff]
        %v5613 = vld [vmem:[%s7 + $0xf0] sm:$0xff]
        %v5614 = vld [vmem:[%s7 + $0xf8] sm:$0xff]
        %v5615 = vld [vmem:[%s7 + $0x100] sm:$0xff]
        %v5616 = vld [vmem:[%s7 + $0x108] sm:$0xff]
        %v5617 = vld [vmem:[%s7 + $0x110] sm:$0xff]
        %v5618 = vld [vmem:[%s7 + $0x118] sm:$0xff]
        %v5619 = vld [vmem:[%s7 + $0x120] sm:$0xff]
        %v5620 = vld [vmem:[%s7 + $0x128] sm:$0xff]
        %v5621 = vld [vmem:[%s7 + $0x130] sm:$0xff]
        %v5622 = vld [vmem:[%s7 + $0x138] sm:$0xff]
        %v5623 = vld [vmem:[%s7 + $0x140] sm:$0xff]
        %v5624 = vld [vmem:[%s7 + $0x148] sm:$0xff]
        %v5625 = vld [vmem:[%s7 + $0x150] sm:$0xff]
        %v5626 = vld [vmem:[%s7 + $0x158] sm:$0xff]
        %v5627 = vld [vmem:[%s7 + $0x160] sm:$0xff]
        %v5628 = vld [vmem:[%s7 + $0x168] sm:$0xff]
        %v5629 = vld [vmem:[%s7 + $0x170] sm:$0xff]
        %v5630 = vld [vmem:[%s7 + $0x178] sm:$0xff]
        %v5631 = vld [vmem:[%s7 + $0x180] sm:$0xff]
        %v5632 = vld [vmem:[%s7 + $0x188] sm:$0xff]
        %v5633 = vld [vmem:[%s7 + $0x190] sm:$0xff]
        %v5634 = vld [vmem:[%s7 + $0x198] sm:$0xff]
        %v5635 = vld [vmem:[%s7 + $0x1a0] sm:$0xff]
        %v5636 = vld [vmem:[%s7 + $0x1a8] sm:$0xff]
        %v5637 = vld [vmem:[%s7 + $0x1b0] sm:$0xff]
        %v5638 = vld [vmem:[%s7 + $0x1b8] sm:$0xff]
        %v5639 = vld [vmem:[%s7 + $0x1c0] sm:$0xff]
        %v5640 = vld [vmem:[%s7 + $0x1c8] sm:$0xff]
        %v5641 = vld [vmem:[%s7 + $0x1d0] sm:$0xff]
        %v5642 = vld [vmem:[%s7 + $0x1d8] sm:$0xff]
        %v5643 = vld [vmem:[%s7 + $0x1e0] sm:$0xff]
        %v5644 = vld [vmem:[%s7 + $0x1e8] sm:$0xff]
        %v5645 = vld [vmem:[%s7 + $0x1f0] sm:$0xf]
        %v5646 = vld [vmem:[%s8] sm:$0x1]
        %vm5647 = vcmask 949248
        %v5649 = vsel %vm5647, %v5582, 0
        %vm5651 = vcmask 1043456
        %v5653 = vsel %vm5651, %v5645, 0
        %5655 = vmatprep.subr.mxu0 0.0
        %5656 = vmatpush1.msra.mxu0 %v5598
        %5657 = vmatprep.subr.mxu0 0.0
        %5658 = vmatpush1.msra.mxu0 %v5597
        %5659 = vmatprep.subr.mxu0 0.0
        %5660 = vmatpush1.msra.mxu0 %v5596
        %5661 = vmatprep.subr.mxu0 0.0
        %5662 = vmatpush1.msra.mxu0 %v5595
        %5663 = vmatprep.subr.mxu0 0.0
        %5664 = vmatpush1.msra.mxu0 %v5594
        %5665 = vmatprep.subr.mxu0 0.0
        %5666 = vmatpush1.msra.mxu0 %v5593
        %5667 = vmatprep.subr.mxu0 0.0
        %5668 = vmatpush1.msra.mxu0 %v5592
        %5669 = vmatprep.subr.mxu0 0.0
        %5670 = vmatpush1.msra.mxu0 %v5591
        %5671 = vmatprep.subr.mxu0 0.0
        %5672 = vmatpush1.msra.mxu0 %v5590
        %5673 = vmatprep.subr.mxu0 0.0
        %5674 = vmatpush1.msra.mxu0 %v5589
        %5675 = vmatprep.subr.mxu0 0.0
        %5676 = vmatpush1.msra.mxu0 %v5588
        %5677 = vmatprep.subr.mxu0 0.0
        %5678 = vmatpush1.msra.mxu0 %v5587
        %5679 = vmatprep.subr.mxu0 0.0
        %5680 = vmatpush1.msra.mxu0 %v5586
        %5681 = vmatprep.subr.mxu0 0.0
        %5682 = vmatpush1.msra.mxu0 %v5585
        %5683 = vmatprep.subr.mxu0 0.0
        %5684 = vmatpush1.msra.mxu0 %v5584
        %5685 = vmatprep.subr.mxu0 0.0
        %5686 = vmatpush1.msra.mxu0 %v5583
        %5687 = vmatprep.subr.mxu0 0.0
        %5688 = vmatpush2.msra.mxu0 %v5614
        %5689 = vmatprep.subr.mxu0 0.0
        %5690 = vmatpush2.msra.mxu0 %v5613
        %5691 = vmatprep.subr.mxu0 0.0
        %5692 = vmatpush2.msra.mxu0 %v5612
        %5693 = vmatprep.subr.mxu0 0.0
        %5694 = vmatpush2.msra.mxu0 %v5611
        %5695 = vmatprep.subr.mxu0 0.0
        %5696 = vmatpush2.msra.mxu0 %v5610
        %5697 = vmatprep.subr.mxu0 0.0
        %5698 = vmatpush2.msra.mxu0 %v5609
        %5699 = vmatprep.subr.mxu0 0.0
        %5700 = vmatpush2.msra.mxu0 %v5608
        %5701 = vmatprep.subr.mxu0 0.0
        %5702 = vmatpush2.msra.mxu0 %v5607
        %5703 = vmatprep.subr.mxu0 0.0
        %5704 = vmatpush2.msra.mxu0 %v5606
        %5705 = vmatprep.subr.mxu0 0.0
        %5706 = vmatpush2.msra.mxu0 %v5605
        %5707 = vmatprep.subr.mxu0 0.0
        %5708 = vmatpush2.msra.mxu0 %v5604
        %5709 = vmatprep.subr.mxu0 0.0
        %5710 = vmatpush2.msra.mxu0 %v5603
        %5711 = vmatprep.subr.mxu0 0.0
        %5712 = vmatpush2.msra.mxu0 %v5602
        %5713 = vmatprep.subr.mxu0 0.0
        %5714 = vmatpush2.msra.mxu0 %v5601
        %5715 = vmatprep.subr.mxu0 0.0
        %5716 = vmatpush2.msra.mxu0 %v5600
        %5717 = vmatprep.subr.mxu0 0.0
        %5718 = vmatpush2.msra.mxu0 %v5599
        %5719 = vmatprep.mubr.f32.mxu0 %v5580
        %5720 = vmatmul.mubr.f32.gmra.mxu0 %v5579
        %v5721 = vpop.f32.mrf.mxu0
        %v5722 = vadd.f32 %v5646, %v5721
        %v5723 = vpop.f32.mrf.mxu0
        %5724 = vdwg.mxu0
        %5725 = vmatprep.subr.mxu0 0.0
        %5726 = vmatpush1.msra.mxu0 %v5630
        %5727 = vmatprep.subr.mxu0 0.0
        %5728 = vmatpush1.msra.mxu0 %v5629
        %5729 = vmatprep.subr.mxu0 0.0
        %5730 = vmatpush1.msra.mxu0 %v5628
        %5731 = vmatprep.subr.mxu0 0.0
        %5732 = vmatpush1.msra.mxu0 %v5627
        %5733 = vmatprep.subr.mxu0 0.0
        %5734 = vmatpush1.msra.mxu0 %v5626
        %5735 = vmatprep.subr.mxu0 0.0
        %5736 = vmatpush1.msra.mxu0 %v5625
        %5737 = vmatprep.subr.mxu0 0.0
        %5738 = vmatpush1.msra.mxu0 %v5624
        %5739 = vmatprep.subr.mxu0 0.0
        %5740 = vmatpush1.msra.mxu0 %v5623
        %5741 = vmatprep.subr.mxu0 0.0
        %5742 = vmatpush1.msra.mxu0 %v5622
        %5743 = vmatprep.subr.mxu0 0.0
        %5744 = vmatpush1.msra.mxu0 %v5621
        %5745 = vmatprep.subr.mxu0 0.0
        %5746 = vmatpush1.msra.mxu0 %v5620
        %5747 = vmatprep.subr.mxu0 0.0
        %5748 = vmatpush1.msra.mxu0 %v5619
        %5749 = vmatprep.subr.mxu0 0.0
        %5750 = vmatpush1.msra.mxu0 %v5618
        %5751 = vmatprep.subr.mxu0 0.0
        %5752 = vmatpush1.msra.mxu0 %v5617
        %5753 = vmatprep.subr.mxu0 0.0
        %5754 = vmatpush1.msra.mxu0 %v5616
        %5755 = vmatprep.subr.mxu0 0.0
        %5756 = vmatpush1.msra.mxu0 %v5615
        %5757 = vmatprep.subr.mxu0 0.0
        %5758 = vmatpush2.msra.mxu0 0.0
        %5759 = vmatprep.subr.mxu0 0.0
        %5760 = vmatpush2.msra.mxu0 %v5653
        %5761 = vmatprep.subr.mxu0 0.0
        %5762 = vmatpush2.msra.mxu0 %v5644
        %5763 = vmatprep.subr.mxu0 0.0
        %5764 = vmatpush2.msra.mxu0 %v5643
        %5765 = vmatprep.subr.mxu0 0.0
        %5766 = vmatpush2.msra.mxu0 %v5642
        %5767 = vmatprep.subr.mxu0 0.0
        %5768 = vmatpush2.msra.mxu0 %v5641
        %5769 = vmatprep.subr.mxu0 0.0
        %5770 = vmatpush2.msra.mxu0 %v5640
        %5771 = vmatprep.subr.mxu0 0.0
        %5772 = vmatpush2.msra.mxu0 %v5639
        %5773 = vmatprep.subr.mxu0 0.0
        %5774 = vmatpush2.msra.mxu0 %v5638
        %5775 = vmatprep.subr.mxu0 0.0
        %5776 = vmatpush2.msra.mxu0 %v5637
        %5777 = vmatprep.subr.mxu0 0.0
        %5778 = vmatpush2.msra.mxu0 %v5636
        %5779 = vmatprep.subr.mxu0 0.0
        %5780 = vmatpush2.msra.mxu0 %v5635
        %5781 = vmatprep.subr.mxu0 0.0
        %5782 = vmatpush2.msra.mxu0 %v5634
        %5783 = vmatprep.subr.mxu0 0.0
        %5784 = vmatpush2.msra.mxu0 %v5633
        %5785 = vmatprep.subr.mxu0 0.0
        %5786 = vmatpush2.msra.mxu0 %v5632
        %5787 = vmatprep.subr.mxu0 0.0
        %5788 = vmatpush2.msra.mxu0 %v5631
        %5789 = vmatprep.mubr.f32.mxu0 %v5649
        %5790 = vmatmul.mubr.f32.gmra.mxu0 %v5581
        %v5791 = vpop.f32.mrf.mxu0
        %v5792 = vadd.f32 %v5722, %v5791
        %v5793 = vpop.f32.mrf.mxu0
        %5794 = vdwg.mxu0
        %vm5795 = vcmask 73728
        %v5796 = vsel %vm5795, %v5792, -inf
        %5797 = vmax.xlane.f32.xlu0 %v5796
        %v5798 = vpop.xlane.xlu0 %5797
        %v5799 = vsub.f32 %v5792, %v5798
        %v5800 = vmul.f32 %v5799, 1.442695
        %v5801 = vpow.pop %v5800
        %v5802 = vsel %vm5795, %v5801, 0.0
        %5803 = vadd.xlane.f32.xlu0 %v5802
        %v5804 = vpop.xlane.xlu0 %5803
        %v5805 = vlog2.pop %v5804
        %v5806 = vmul.f32 %v5805, 0.6931472
        %v5807 = vsub.f32 %v5799, %v5806
        %5808 = vst.msk [vmem:[%s324] sm:$0x1] %vm5795, %v5807
        %s5809 = sand.u32 %s225, 1
        %s5810 = scalar_lea.sflag [#allocation6], %s5809
        %s5811 = sand.u32 %s225, 1
        %s5812 = scalar_lea.vmem [#allocation5], %s5811
        // Predicated region
        $region57: #{lenet_forward.1} parent=55 // pred_check
          %p5813 = pneg %p235
        $region58: #{lenet_forward.1} parent=55 // pred_check_branch
          %5815 = sbr.rel (%p5813) target = $region60
        $region59: #{lenet_forward.1} parent=55 // pred_region
          %s5817 = ssub.s32 16, 16
          %5818 = vsyncadd %s5810, %s5817
          %s5819 = smul.addr %s23, 16
          %s5820 = scalar_lea.hbm %s9, %s5819
          %s5822 = sshll.u32 %s5812, 4
          %s5823 = int_to_ptr.vmem [resolvable:$true] %s5822
          %5825 = dma.vmem_to_hbm [thread:$0]  %s5823, 16, %s5820, %s5810
        $region60: #{lenet_forward.1} parent=55 // pred_fallthru
          _
      $region56: #{lenet_forward.1} parent=5 // pred_fallthru
        _
      %p5826 = scmp.le.s32.totalorder 2, %s18
      // Predicated region
      $region61: #{lenet_forward.1} parent=5 // pred_check
        %p5827 = pneg %p5826
      $region62: #{lenet_forward.1} parent=5 // pred_check_branch
        %5829 = sbr.rel (%p5827) target = $region64
      $region63: #{lenet_forward.1} parent=5 // pred_region
        %s5830 = ssub.s32 %s18, 2
        // Predicated region
        $region65: #{lenet_forward.1} parent=63 // pred_check
          %p5831 = pneg %p241
        $region66: #{lenet_forward.1} parent=63 // pred_check_branch
          %5833 = sbr.rel (%p5831) target = $region68
        $region67: #{lenet_forward.1} parent=63 // pred_region
          %s5834 = sand.u32 %s226, 1
          %s5835 = scalar_lea.sflag [#allocation6], %s5834
          %s5836 = sand.u32 %s226, 1
          %s5837 = scalar_lea.vmem [#allocation5], %s5836
          %5838 = dma.done %s5835, 16
        $region68: #{lenet_forward.1} parent=63 // pred_fallthru
          _
      $region64: #{lenet_forward.1} parent=5 // pred_fallthru
        _
    $region6: #{lenet_forward.1} parent=1 // loop_footer
      %s22 = sadd.s32 1, %s18
    $region7: #{lenet_forward.1} parent=1 // loop_footer_branch
      %17 = sbr.rel target = $region3
    $region8: #{lenet_forward.1} parent=1 // loop_exit
      _
    %5839 = vsyncpa [#allocation6], 1
    %s5840 = scalar_lea.sflag [#allocation6], 1
    %5841 = vsyncpa %s5840, 1

</llo_original>
